<compile_context>
chip_gen: v7x
topology: tpu7x:2x2x1
jax: 0.10.0
libtpu: 0.0.40
codegen_flags: <defaults>
</compile_context>

<pallas_src>
import functools
import math

import jax
import jax.numpy as jnp
from jax.experimental import pallas as pl
from jax.experimental.pallas import tpu as pltpu


# ----------------------------- Pallas kernels ------------------------------

def _embed_kernel(win_ref, mean_ref, istd_ref, w_ref, enc_ref):
    # win: (1, T, P)  mean/istd: (1, T, 1)  w: (P, D) bf16  enc: (1, T, D)
    xn = (win_ref[0] - mean_ref[0]) * istd_ref[0]
    enc_ref[0] = jnp.dot(xn.astype(w_ref.dtype), w_ref[...],
                         preferred_element_type=jnp.float32)


def _mamba_mixer(res_new, norm_w_ref, in_w_ref, conv_w_ref, conv_b_ref,
                 xproj_w_ref, dt_b_ref, a_ref, d_ref, out_w_ref,
                 hid_out_ref, res_out_ref,
                 dA_ref, dBu_ref, c_ref, y_ref, h_ref, convc_ref):
    # res_new: (Tc, D) f32 — already has the residual added by the caller.
    Tc, _ = res_new.shape
    d_state, d_inner = a_ref.shape
    d_conv = conv_w_ref.shape[0]
    cdt = in_w_ref.dtype                                  # bf16 compute dtype

    # reset cross-chunk carries at the first token chunk of each batch element
    @pl.when(pl.program_id(1) == 0)
    def _():
        h_ref[...] = jnp.zeros_like(h_ref)
        convc_ref[...] = jnp.zeros_like(convc_ref)

    # fused add + RMSNorm
    # TODO(synk): MixerTSModel may use LayerNorm instead of RMSNorm.
    var = jnp.mean(res_new * res_new, axis=-1, keepdims=True)
    xn = res_new * jax.lax.rsqrt(var + 1e-5) * norm_w_ref[...]

    # in_proj: (Tc, D) @ (D, 2*d_inner) — bf16 operands, f32 accumulation
    xz = jnp.dot(xn.astype(cdt), in_w_ref[...],
                 preferred_element_type=jnp.float32)
    x_in = xz[:, :d_inner]
    z = xz[:, d_inner:]

    # causal depthwise conv1d with cross-chunk carry of the last d_conv-1 rows
    # TODO(synk): pltpu.roll-based taps would avoid the d_conv-1 slice copies.
    xpad = jnp.concatenate([convc_ref[...], x_in], axis=0)   # (Tc+K-1, d_inner)
    convc_ref[...] = x_in[Tc - (d_conv - 1):, :]
    acc = jnp.zeros((Tc, d_inner), jnp.float32)
    for k in range(d_conv):                                  # static tap unroll
        acc = acc + xpad[k:k + Tc, :] * conv_w_ref[k:k + 1, :]
    acc = acc + conv_b_ref[...]
    u = acc * jax.nn.sigmoid(acc)                            # SiLU

    # fused x_proj: ONE matmul gives the [B | C | dt] columns
    proj = jnp.dot(u.astype(cdt), xproj_w_ref[...],
                   preferred_element_type=jnp.float32)       # (Tc, 2S + I)
    b_mat = proj[:, :d_state]
    c_ref[...] = proj[:, d_state:2 * d_state][:, :, None]    # (Tc, S, 1)
    dt = jax.nn.softplus(proj[:, 2 * d_state:] + dt_b_ref[...])

    # vectorized scan pre-work: one batched exp / input term for the chunk
    # TODO(synk): bf16 dA/dBu scratch on v6e/v7x would halve scan traffic.
    dA_ref[...] = jnp.exp(dt[:, None, :] * a_ref[...][None, :, :])   # (Tc,S,I)
    dBu_ref[...] = b_mat[:, :, None] * (dt * u)[:, None, :]          # (Tc,S,I)

    # serial recurrence: FMA + fused C_t.h_t readout (no h history writeback,
    # no second pass over the (Tc, S, I) buffers)
    def step(t, h):
        h = dA_ref[t] * h + dBu_ref[t]
        y_ref[t] = jnp.sum(h * c_ref[t], axis=0, keepdims=True)
        return h

    h_ref[...] = jax.lax.fori_loop(0, Tc, step, h_ref[...],
                                   unroll=(Tc if Tc <= 32 else 8))

    y = y_ref[:, 0, :] + u * d_ref[...]
    y = y * (z * jax.nn.sigmoid(z))                          # SiLU gate

    hid_out_ref[0] = jnp.dot(y.astype(cdt), out_w_ref[...],
                             preferred_element_type=jnp.float32)
    res_out_ref[0] = res_new


def _mamba_block_kernel(hid_ref, res_ref, *rest):
    _mamba_mixer(hid_ref[0] + res_ref[0], *rest)


def _mamba_block_first_kernel(hid_ref, *rest):
    # first layer: residual is None in the reference -> skip the zeros DMA/add
    _mamba_mixer(hid_ref[0], *rest)


def _head_kernel(hid_ref, res_ref, normw_ref, headw_ref, headb_ref,
                 std_ref, mean_ref, out_ref, *, d_model):
    # hid/res: (1, C, L*D)   normw: (1, L*D)   headw: (L*D, pred) bf16
    # headb: (1, pred)       std/mean: (1, C, 1)     out: (1, C, pred)
    D = d_model
    LD = hid_ref.shape[2]
    L = LD // D

    x = hid_ref[0] + res_ref[0]                              # (C, L*D)

    # fused add + RMSNorm per D-wide segment (static lane slices; no reshape)
    parts = []
    for l in range(L):
        seg = x[:, l * D:(l + 1) * D]
        var = jnp.mean(seg * seg, axis=-1, keepdims=True)
        parts.append(seg * jax.lax.rsqrt(var + 1e-5))
    xn = (jnp.concatenate(parts, axis=1) * normw_ref[...]).astype(headw_ref.dtype)

    # PredictionHead: ONE (C, L*D) @ (L*D, pred) matmul (K accumulated on MXU)
    acc = jnp.dot(xn, headw_ref[...], preferred_element_type=jnp.float32)
    acc = acc + headb_ref[...]

    # fused de-normalization: * stdev + mean (per variable)
    out_ref[0] = acc * std_ref[0] + mean_ref[0]


# ------------------------------ wrappers ------------------------------------

def _choose_chunk(T, target=256):
    """Largest token chunk <= target that divides T and keeps (8,128) tiling."""
    if T <= target:
        return T
    for tc in range(target, 7, -1):
        if T % tc == 0 and tc % 8 == 0:
            return tc
    return T   # no clean divisor: fall back to a single chunk


def _mamba_vmem_limit(t_chunk, D, d_state, d_inner, d_conv, lp):
    scratch = 4 * (2 * t_chunk * d_state * d_inner            # dA, dB*u
                   + t_chunk * d_state + t_chunk * d_inner    # C, y
                   + d_state * d_inner + (d_conv - 1) * d_inner)
    blocks = 4 * (t_chunk * D * 4) * 2       # <=4 seq blocks, double-buffered
    weights = 2 * sum(int(w.size) * w.dtype.itemsize for w in lp.values())
    interm = 4 * t_chunk * (6 * d_inner + 2 * d_state)
    est = scratch + blocks + weights + interm
    return int(min(64 * 2 ** 20, max(32 * 2 ** 20, 2 * est)))


def mamba_block(hidden, residual, lp, *, first, t_chunk):
    B, T, D = hidden.shape
    d_state, d_inner = lp['a_neg'].shape
    d_conv = lp['conv_w'].shape[0]
    n_chunks = T // t_chunk

    seq_spec = pl.BlockSpec((1, t_chunk, D), lambda b, c: (b, c, 0))

    def rep(arr):
        nd = arr.ndim
        return pl.BlockSpec(arr.shape, lambda b, c, _n=nd: (0,) * _n)

    weight_names = ['norm_w', 'in_w', 'conv_w', 'conv_b', 'xproj_w',
                    'dt_b', 'a_neg', 'd', 'out_w']
    weights = [lp[n] for n in weight_names]
    # TODO(synk): pipeline_mode=pl.Buffered(1) on the (grid-invariant) weight
    # specs would drop their redundant double-buffer copies.

    if first:
        kern = _mamba_block_first_kernel
        operands = [hidden] + weights
        in_specs = [seq_spec] + [rep(w) for w in weights]
    else:
        kern = _mamba_block_kernel
        operands = [hidden, residual] + weights
        in_specs = [seq_spec, seq_spec] + [rep(w) for w in weights]

    scratch = [
        pltpu.VMEM((t_chunk, d_state, d_inner), jnp.float32),   # dA
        pltpu.VMEM((t_chunk, d_state, d_inner), jnp.float32),   # dB*u
        pltpu.VMEM((t_chunk, d_state, 1), jnp.float32),         # C
        pltpu.VMEM((t_chunk, 1, d_inner), jnp.float32),         # y
        pltpu.VMEM((d_state, d_inner), jnp.float32),            # h carry
        pltpu.VMEM((d_conv - 1, d_inner), jnp.float32),         # conv carry
    ]

    hid_out, res_out = pl.pallas_call(
        kern,
        grid=(B, n_chunks),
        in_specs=in_specs,
        out_specs=[seq_spec, seq_spec],
        out_shape=[jax.ShapeDtypeStruct((B, T, D), jnp.float32),
                   jax.ShapeDtypeStruct((B, T, D), jnp.float32)],
        scratch_shapes=scratch,
        compiler_params=pltpu.CompilerParams(
            dimension_semantics=("parallel", "arbitrary"),
            vmem_limit_bytes=_mamba_vmem_limit(t_chunk, D, d_state, d_inner,
                                               d_conv, lp)),
    )(*operands)
    return hid_out, res_out


def init_params(key, cfg):
    D = cfg['d_model']
    d_inner = 2 * D
    d_state = cfg['d_state']
    d_conv = cfg['d_conv']
    dt_rank = max(1, math.ceil(D / 16))
    P, stride, S = cfg['patch_len'], cfg['stride'], cfg['seq_len']
    L = (S - P) // stride + 1
    pred = cfg['pred_len']

    keys = iter(jax.random.split(key, 4 + 8 * cfg['e_layers']))

    def rnd(shape, scale=0.02):
        return scale * jax.random.normal(next(keys), shape, jnp.float32)

    bf = jnp.bfloat16  # MXU operand dtype (f32 accumulation inside kernels)

    params = {
        'emb_w': rnd((P, D)).astype(bf),                 # Linear(P -> D, no bias)
        'norm_f_w': jnp.ones((1, D), jnp.float32),
        'head_w': rnd((L * D, pred)).astype(bf),         # (l d)-flattened weight
        'head_b': jnp.zeros((1, pred), jnp.float32),
        'layers': [],
    }

    # A = -exp(A_log), precomputed once (layout (d_state, d_inner))
    a_neg = -jnp.broadcast_to(
        jnp.arange(1, d_state + 1, dtype=jnp.float32)[:, None],
        (d_state, d_inner))

    for _ in range(cfg['e_layers']):
        xproj_w = rnd((d_inner, dt_rank + 2 * d_state))
        dt_proj_w = rnd((dt_rank, d_inner), 0.5)
        # dt projection folded into x_proj and fused with the B/C columns:
        #   columns = [B (d_state) | C (d_state) | dt (d_inner)]
        xproj_full = jnp.concatenate(
            [xproj_w[:, dt_rank:], xproj_w[:, :dt_rank] @ dt_proj_w], axis=1)
        params['layers'].append({
            'norm_w': jnp.ones((1, D), jnp.float32),
            'in_w': rnd((D, 2 * d_inner)).astype(bf),
            'conv_w': rnd((d_conv, d_inner), 0.2),
            'conv_b': jnp.zeros((1, d_inner), jnp.float32),
            'xproj_w': xproj_full.astype(bf),
            'dt_b': jnp.full((1, d_inner), -2.0, jnp.float32),
            'a_neg': a_neg,
            'd': jnp.ones((1, d_inner), jnp.float32),
            'out_w': rnd((d_inner, D)).astype(bf),
        })
    return params


def mambats_forward(params, x_enc, cfg):
    B, S, C = x_enc.shape
    P, stride, D = cfg['patch_len'], cfg['stride'], cfg['d_model']
    L = (S - P) // stride + 1
    T = C * L
    pred = cfg['pred_len']
    # TODO(synk): for B == 1 on v7x add a second parallel grid axis (channel
    # groups) so both TensorCores are occupied.
    par = pltpu.CompilerParams(dimension_semantics=("parallel",))

    # --- XLA glue: RevIN statistics (tiny reductions), patch unfold (a pure
    # reshape when stride == patch_len) and layout transposes.  The heavy work
    # stays in the Pallas kernels below.
    mean_btc = jnp.mean(x_enc, axis=1, keepdims=True)                 # (B,1,C)
    var_btc = jnp.mean(jnp.square(x_enc - mean_btc), axis=1, keepdims=True)
    istd_btc = jax.lax.rsqrt(var_btc + 1e-5)
    std_btc = jnp.sqrt(var_btc + 1e-5)
    mean_c = jnp.transpose(mean_btc, (0, 2, 1))                       # (B,C,1)
    std_c = jnp.transpose(std_btc, (0, 2, 1))
    istd_c = jnp.transpose(istd_btc, (0, 2, 1))

    x_t = jnp.transpose(x_enc, (0, 2, 1))                             # (B,C,S)
    if stride == P and L * P == S:
        windows = x_t.reshape(B, C, L, P)
    else:
        windows = jnp.stack(
            [x_t[:, :, l * stride:l * stride + P] for l in range(L)], axis=2)
    windows = windows.reshape(B, T, P)                                # 'b (c l) p'
    mean_e = jnp.repeat(mean_c, L, axis=1)                            # (B,T,1)
    istd_e = jnp.repeat(istd_c, L, axis=1)

    # 1) fused RevIN-normalize + value embedding: one (T,P)@(P,D) matmul per b,
    #    one lane-dense (T, D) store.
    enc = pl.pallas_call(
        _embed_kernel,
        grid=(B,),
        in_specs=[pl.BlockSpec((1, T, P), lambda b: (b, 0, 0)),
                  pl.BlockSpec((1, T, 1), lambda b: (b, 0, 0)),
                  pl.BlockSpec((1, T, 1), lambda b: (b, 0, 0)),
                  pl.BlockSpec((P, D), lambda b: (0, 0))],
        out_specs=pl.BlockSpec((1, T, D), lambda b: (b, 0, 0)),
        out_shape=jax.ShapeDtypeStruct((B, T, D), jnp.float32),
        compiler_params=par,
    )(windows, mean_e, istd_e, params['emb_w'])

    # 2) encoder: chunked Mamba1 blocks with fused add + RMSNorm
    # TODO(synk): VPT_mode / ATSP variable reordering and dropout omitted
    # (identity ordering, eval mode).
    t_chunk = _choose_chunk(T)
    hidden, residual = enc, None
    for i, lp in enumerate(params['layers']):
        hidden, residual = mamba_block(hidden, residual, lp,
                                       first=(i == 0), t_chunk=t_chunk)

    # 3) fused final add + RMSNorm + prediction head + de-normalization
    hid2 = hidden.reshape(B, C, L * D)                                # 'b c (l d)'
    res2 = residual.reshape(B, C, L * D)
    normw_tiled = jnp.tile(params['norm_f_w'], (1, L))                # (1, L*D)
    out_bcp = pl.pallas_call(
        functools.partial(_head_kernel, d_model=D),
        grid=(B,),
        in_specs=[pl.BlockSpec((1, C, L * D), lambda b: (b, 0, 0)),
                  pl.BlockSpec((1, C, L * D), lambda b: (b, 0, 0)),
                  pl.BlockSpec((1, L * D), lambda b: (0, 0)),
                  pl.BlockSpec((L * D, pred), lambda b: (0, 0)),
                  pl.BlockSpec((1, pred), lambda b: (0, 0)),
                  pl.BlockSpec((1, C, 1), lambda b: (b, 0, 0)),
                  pl.BlockSpec((1, C, 1), lambda b: (b, 0, 0))],
        out_specs=pl.BlockSpec((1, C, pred), lambda b: (b, 0, 0)),
        out_shape=jax.ShapeDtypeStruct((B, C, pred), jnp.float32),
        compiler_params=par,
    )(hid2, res2, normw_tiled, params['head_w'], params['head_b'],
      std_c, mean_c)

    return jnp.transpose(out_bcp, (0, 2, 1))                          # (B, pred, C)


if __name__ == "__main__":
    # NOTE: demo shapes are intentionally tiny; for production, pick d_model /
    # d_inner / pred_len as multiples of 128 for lane-dense stores and full
    # MXU N-width (per the perf review).
    cfg = dict(seq_len=16, pred_len=8, patch_len=8, stride=8, enc_in=4,
               d_model=32, e_layers=2, d_state=16, d_conv=4)
    key = jax.random.PRNGKey(0)
    pkey, xkey = jax.random.split(key)
    params = init_params(pkey, cfg)

    B = 2
    x_enc = jax.random.normal(xkey, (B, cfg['seq_len'], cfg['enc_in']), jnp.float32)
    # x_mark_enc / x_dec / x_mark_dec are unused by the PyTorch forward.

    fwd = jax.jit(lambda p, x: mambats_forward(p, x, cfg))
    out = fwd(params, x_enc)
    jax.block_until_ready(out)
    assert out.shape == (B, cfg['pred_len'], cfg['enc_in'])
    assert bool(jnp.all(jnp.isfinite(out)))
    print("KERNEL_OK")
</pallas_src>

<mosaic_0001>
module attributes {stable_mosaic.version = 11 : i64} {
  func.func @_embed_kernel(%arg0: i32, %arg1: memref<1x8x8xf32, #tpu.memory_space<vmem>>, %arg2: memref<1x8x1xf32, #tpu.memory_space<vmem>>, %arg3: memref<1x8x1xf32, #tpu.memory_space<vmem>>, %arg4: memref<8x32xbf16, #tpu.memory_space<vmem>>, %arg5: memref<1x8x32xf32, #tpu.memory_space<vmem>>) attributes {dimension_semantics = [#tpu.dimension_semantics<parallel>], iteration_bounds = array<i64: 2>, scalar_prefetch = 0 : i64, scratch_operands = 0 : i64, tpu.core_type = #tpu.core_type<tc>, window_params = [{transform_indices = @transform_0, window_bounds = array<i64: 1, 8, 8>}, {transform_indices = @transform_1, window_bounds = array<i64: 1, 8, 1>}, {transform_indices = @transform_2, window_bounds = array<i64: 1, 8, 1>}, {pipeline_mode = #tpu.pipeline_mode<synchronous>, transform_indices = @transform_3, window_bounds = array<i64: 8, 32>}, {transform_indices = @transform_4, window_bounds = array<i64: 1, 8, 32>}]} {
    %c0 = arith.constant 0 : index
    %c0_0 = arith.constant 0 : index
    %c0_1 = arith.constant 0 : index
    %0 = vector.load %arg1[%c0, %c0_0, %c0_1] : memref<1x8x8xf32, #tpu.memory_space<vmem>>, vector<1x8x8xf32>
    %1 = vector.shape_cast %0 : vector<1x8x8xf32> to vector<8x8xf32>
    %c0_2 = arith.constant 0 : index
    %c0_3 = arith.constant 0 : index
    %c0_4 = arith.constant 0 : index
    %2 = vector.load %arg2[%c0_2, %c0_3, %c0_4] : memref<1x8x1xf32, #tpu.memory_space<vmem>>, vector<1x8x1xf32>
    %3 = vector.shape_cast %2 : vector<1x8x1xf32> to vector<8x1xf32>
    %4 = vector.broadcast %3 : vector<8x1xf32> to vector<8x8xf32>
    %5 = arith.subf %1, %4 : vector<8x8xf32>
    %c0_5 = arith.constant 0 : index
    %c0_6 = arith.constant 0 : index
    %c0_7 = arith.constant 0 : index
    %6 = vector.load %arg3[%c0_5, %c0_6, %c0_7] : memref<1x8x1xf32, #tpu.memory_space<vmem>>, vector<1x8x1xf32>
    %7 = vector.shape_cast %6 : vector<1x8x1xf32> to vector<8x1xf32>
    %8 = vector.broadcast %7 : vector<8x1xf32> to vector<8x8xf32>
    %9 = arith.mulf %5, %8 : vector<8x8xf32>
    %10 = arith.truncf %9 : vector<8x8xf32> to vector<8x8xbf16>
    %c0_8 = arith.constant 0 : index
    %c0_9 = arith.constant 0 : index
    %11 = vector.load %arg4[%c0_8, %c0_9] : memref<8x32xbf16, #tpu.memory_space<vmem>>, vector<8x32xbf16>
    %cst = arith.constant dense<0.000000e+00> : vector<8x32xf32>
    %12 = tpu.matmul %10, %11, %cst {dimension_numbers = #tpu.dot_dimension_numbers<[1], [0], [0], [1], [0, 0, 1, 1], [], []>} : vector<8x8xbf16>, vector<8x32xbf16>, vector<8x32xf32> -> vector<8x32xf32>
    %c0_10 = arith.constant 0 : index
    %c0_11 = arith.constant 0 : index
    %c0_12 = arith.constant 0 : index
    %13 = vector.load %arg5[%c0_10, %c0_11, %c0_12] : memref<1x8x32xf32, #tpu.memory_space<vmem>>, vector<1x8x32xf32>
    %14 = vector.shape_cast %13 : vector<1x8x32xf32> to vector<8x32xf32>
    %15 = vector.shape_cast %12 : vector<8x32xf32> to vector<1x8x32xf32>
    tpu.vector_store %arg5[%c0_10, %c0_11, %c0_12], %15 {strides = array<i32>} : memref<1x8x32xf32, #tpu.memory_space<vmem>>, vector<1x8x32xf32>,
    return
  }
  func.func @transform_0(%arg0: i32) -> (i32, i32, i32) {
    %c0_i32 = arith.constant 0 : i32
    %c0_i32_0 = arith.constant 0 : i32
    %c0_i32_1 = arith.constant 0 : i32
    return %arg0, %c0_i32, %c0_i32_0 : i32, i32, i32
  }
  func.func @transform_1(%arg0: i32) -> (i32, i32, i32) {
    %c0_i32 = arith.constant 0 : i32
    %c0_i32_0 = arith.constant 0 : i32
    %c0_i32_1 = arith.constant 0 : i32
    return %arg0, %c0_i32, %c0_i32_0 : i32, i32, i32
  }
  func.func @transform_2(%arg0: i32) -> (i32, i32, i32) {
    %c0_i32 = arith.constant 0 : i32
    %c0_i32_0 = arith.constant 0 : i32
    %c0_i32_1 = arith.constant 0 : i32
    return %arg0, %c0_i32, %c0_i32_0 : i32, i32, i32
  }
  func.func @transform_3(%arg0: i32) -> (i32, i32) {
    %c0_i32 = arith.constant 0 : i32
    %c0_i32_0 = arith.constant 0 : i32
    %c0_i32_1 = arith.constant 0 : i32
    return %c0_i32, %c0_i32_0 : i32, i32
  }
  func.func @transform_4(%arg0: i32) -> (i32, i32, i32) {
    %c0_i32 = arith.constant 0 : i32
    %c0_i32_0 = arith.constant 0 : i32
    %c0_i32_1 = arith.constant 0 : i32
    return %arg0, %c0_i32, %c0_i32_0 : i32, i32, i32
  }
}

module attributes {stable_mosaic.version = 11 : i64} {
  func.func @_mamba_block_kernel(%arg0: i32, %arg1: i32, %arg2: memref<1x8x32xf32, #tpu.memory_space<vmem>>, %arg3: memref<1x8x32xf32, #tpu.memory_space<vmem>>, %arg4: memref<1x32xf32, #tpu.memory_space<vmem>>, %arg5: memref<32x128xbf16, #tpu.memory_space<vmem>>, %arg6: memref<4x64xf32, #tpu.memory_space<vmem>>, %arg7: memref<1x64xf32, #tpu.memory_space<vmem>>, %arg8: memref<64x96xbf16, #tpu.memory_space<vmem>>, %arg9: memref<1x64xf32, #tpu.memory_space<vmem>>, %arg10: memref<16x64xf32, #tpu.memory_space<vmem>>, %arg11: memref<1x64xf32, #tpu.memory_space<vmem>>, %arg12: memref<64x32xbf16, #tpu.memory_space<vmem>>, %arg13: memref<1x8x32xf32, #tpu.memory_space<vmem>>, %arg14: memref<1x8x32xf32, #tpu.memory_space<vmem>>, %arg15: memref<8x16x64xf32, #tpu.memory_space<vmem>>, %arg16: memref<8x16x64xf32, #tpu.memory_space<vmem>>, %arg17: memref<8x16x1xf32, #tpu.memory_space<vmem>>, %arg18: memref<8x1x64xf32, #tpu.memory_space<vmem>>, %arg19: memref<16x64xf32, #tpu.memory_space<vmem>>, %arg20: memref<3x64xf32, #tpu.memory_space<vmem>>) attributes {dimension_semantics = [#tpu.dimension_semantics<parallel>, #tpu.dimension_semantics<arbitrary>], iteration_bounds = array<i64: 2, 1>, scalar_prefetch = 0 : i64, scratch_operands = 6 : i64, tpu.core_type = #tpu.core_type<tc>, window_params = [{transform_indices = @transform_0, window_bounds = array<i64: 1, 8, 32>}, {transform_indices = @transform_1, window_bounds = array<i64: 1, 8, 32>}, {pipeline_mode = #tpu.pipeline_mode<synchronous>, transform_indices = @transform_2, window_bounds = array<i64: 1, 32>}, {pipeline_mode = #tpu.pipeline_mode<synchronous>, transform_indices = @transform_3, window_bounds = array<i64: 32, 128>}, {pipeline_mode = #tpu.pipeline_mode<synchronous>, transform_indices = @transform_4, window_bounds = array<i64: 4, 64>}, {pipeline_mode = #tpu.pipeline_mode<synchronous>, transform_indices = @transform_5, window_bounds = array<i64: 1, 64>}, {pipeline_mode = #tpu.pipeline_mode<synchronous>, transform_indices = @transform_6, window_bounds = array<i64: 64, 96>}, {pipeline_mode = #tpu.pipeline_mode<synchronous>, transform_indices = @transform_7, window_bounds = array<i64: 1, 64>}, {pipeline_mode = #tpu.pipeline_mode<synchronous>, transform_indices = @transform_8, window_bounds = array<i64: 16, 64>}, {pipeline_mode = #tpu.pipeline_mode<synchronous>, transform_indices = @transform_9, window_bounds = array<i64: 1, 64>}, {pipeline_mode = #tpu.pipeline_mode<synchronous>, transform_indices = @transform_10, window_bounds = array<i64: 64, 32>}, {transform_indices = @transform_11, window_bounds = array<i64: 1, 8, 32>}, {transform_indices = @transform_12, window_bounds = array<i64: 1, 8, 32>}]} {
    %c0 = arith.constant 0 : index
    %c0_0 = arith.constant 0 : index
    %c0_1 = arith.constant 0 : index
    %0 = vector.load %arg2[%c0, %c0_0, %c0_1] : memref<1x8x32xf32, #tpu.memory_space<vmem>>, vector<1x8x32xf32>
    %1 = vector.shape_cast %0 : vector<1x8x32xf32> to vector<8x32xf32>
    %c0_2 = arith.constant 0 : index
    %c0_3 = arith.constant 0 : index
    %c0_4 = arith.constant 0 : index
    %2 = vector.load %arg3[%c0_2, %c0_3, %c0_4] : memref<1x8x32xf32, #tpu.memory_space<vmem>>, vector<1x8x32xf32>
    %3 = vector.shape_cast %2 : vector<1x8x32xf32> to vector<8x32xf32>
    %4 = arith.addf %1, %3 : vector<8x32xf32>
    %c0_i32 = arith.constant 0 : i32
    %5 = arith.cmpi eq, %arg1, %c0_i32 : i32
    %6 = arith.extui %5 : i1 to i32
    %c0_i32_5 = arith.constant 0 : i32
    %7 = arith.cmpi ne, %6, %c0_i32_5 : i32
    scf.if %7 {
      %cst_136 = arith.constant 0.000000e+00 : f32
      %276 = vector.broadcast %cst_136 : f32 to vector<16x64xf32>
      %c0_137 = arith.constant 0 : index
      %c0_138 = arith.constant 0 : index
      %277 = vector.load %arg19[%c0_137, %c0_138] : memref<16x64xf32, #tpu.memory_space<vmem>>, vector<16x64xf32>
      tpu.vector_store %arg19[%c0_137, %c0_138], %276 {strides = array<i32>} : memref<16x64xf32, #tpu.memory_space<vmem>>, vector<16x64xf32>,
      %cst_139 = arith.constant 0.000000e+00 : f32
      %278 = vector.broadcast %cst_139 : f32 to vector<3x64xf32>
      %c0_140 = arith.constant 0 : index
      %c0_141 = arith.constant 0 : index
      %279 = vector.load %arg20[%c0_140, %c0_141] : memref<3x64xf32, #tpu.memory_space<vmem>>, vector<3x64xf32>
      tpu.vector_store %arg20[%c0_140, %c0_141], %278 {strides = array<i32>} : memref<3x64xf32, #tpu.memory_space<vmem>>, vector<3x64xf32>,
    } else {
    }
    %8 = arith.mulf %4, %4 : vector<8x32xf32>
    %cst = arith.constant dense<0.000000e+00> : vector<8xf32>
    %9 = vector.multi_reduction <add>, %8, %cst [1] : vector<8x32xf32> to vector<8xf32>
    %10 = vector.shape_cast %9 : vector<8xf32> to vector<8x1xf32>
    %cst_6 = arith.constant 3.200000e+01 : f32
    %11 = vector.broadcast %cst_6 : f32 to vector<8x1xf32>
    %12 = arith.divf %10, %11 : vector<8x1xf32>
    %cst_7 = arith.constant 9.99999974E-6 : f32
    %13 = vector.broadcast %cst_7 : f32 to vector<8x1xf32>
    %14 = arith.addf %12, %13 : vector<8x1xf32>
    %15 = math.rsqrt %14 : vector<8x1xf32>
    %16 = vector.broadcast %15 : vector<8x1xf32> to vector<8x32xf32>
    %17 = arith.mulf %4, %16 : vector<8x32xf32>
    %c0_8 = arith.constant 0 : index
    %c0_9 = arith.constant 0 : index
    %18 = vector.load %arg4[%c0_8, %c0_9] : memref<1x32xf32, #tpu.memory_space<vmem>>, vector<1x32xf32>
    %19 = vector.broadcast %18 : vector<1x32xf32> to vector<8x32xf32>
    %20 = arith.mulf %17, %19 : vector<8x32xf32>
    %21 = arith.truncf %20 : vector<8x32xf32> to vector<8x32xbf16>
    %c0_10 = arith.constant 0 : index
    %c0_11 = arith.constant 0 : index
    %22 = vector.load %arg5[%c0_10, %c0_11] : memref<32x128xbf16, #tpu.memory_space<vmem>>, vector<32x128xbf16>
    %cst_12 = arith.constant dense<0.000000e+00> : vector<8x128xf32>
    %23 = tpu.matmul %21, %22, %cst_12 {dimension_numbers = #tpu.dot_dimension_numbers<[1], [0], [0], [1], [0, 0, 1, 1], [], []>} : vector<8x32xbf16>, vector<32x128xbf16>, vector<8x128xf32> -> vector<8x128xf32>
    %24 = vector.extract_strided_slice %23 {offsets = [0, 0], sizes = [8, 64], strides = [1, 1]} : vector<8x128xf32> to vector<8x64xf32>
    %25 = vector.extract_strided_slice %23 {offsets = [0, 64], sizes = [8, 64], strides = [1, 1]} : vector<8x128xf32> to vector<8x64xf32>
    %c0_13 = arith.constant 0 : index
    %c0_14 = arith.constant 0 : index
    %26 = vector.load %arg20[%c0_13, %c0_14] : memref<3x64xf32, #tpu.memory_space<vmem>>, vector<3x64xf32>
    %27 = tpu.concatenate %26, %24 in 0 : vector<3x64xf32>, vector<8x64xf32> -> vector<11x64xf32>
    %28 = vector.extract_strided_slice %24 {offsets = [5, 0], sizes = [3, 64], strides = [1, 1]} : vector<8x64xf32> to vector<3x64xf32>
    %c0_15 = arith.constant 0 : index
    %c0_16 = arith.constant 0 : index
    %29 = vector.load %arg20[%c0_15, %c0_16] : memref<3x64xf32, #tpu.memory_space<vmem>>, vector<3x64xf32>
    tpu.vector_store %arg20[%c0_15, %c0_16], %28 {strides = array<i32>} : memref<3x64xf32, #tpu.memory_space<vmem>>, vector<3x64xf32>,
    %cst_17 = arith.constant 0.000000e+00 : f32
    %30 = vector.broadcast %cst_17 : f32 to vector<8x64xf32>
    %31 = vector.extract_strided_slice %27 {offsets = [0, 0], sizes = [8, 64], strides = [1, 1]} : vector<11x64xf32> to vector<8x64xf32>
    %c0_18 = arith.constant 0 : index
    %c0_19 = arith.constant 0 : index
    %32 = vector.load %arg6[%c0_18, %c0_19] : memref<4x64xf32, #tpu.memory_space<vmem>>, vector<1x64xf32>
    %33 = vector.broadcast %32 : vector<1x64xf32> to vector<8x64xf32>
    %34 = arith.mulf %31, %33 : vector<8x64xf32>
    %35 = arith.addf %30, %34 : vector<8x64xf32>
    %36 = vector.extract_strided_slice %27 {offsets = [1, 0], sizes = [8, 64], strides = [1, 1]} : vector<11x64xf32> to vector<8x64xf32>
    %c1 = arith.constant 1 : index
    %c0_20 = arith.constant 0 : index
    %37 = vector.load %arg6[%c1, %c0_20] : memref<4x64xf32, #tpu.memory_space<vmem>>, vector<1x64xf32>
    %38 = vector.broadcast %37 : vector<1x64xf32> to vector<8x64xf32>
    %39 = arith.mulf %36, %38 : vector<8x64xf32>
    %40 = arith.addf %35, %39 : vector<8x64xf32>
    %41 = vector.extract_strided_slice %27 {offsets = [2, 0], sizes = [8, 64], strides = [1, 1]} : vector<11x64xf32> to vector<8x64xf32>
    %c2 = arith.constant 2 : index
    %c0_21 = arith.constant 0 : index
    %42 = vector.load %arg6[%c2, %c0_21] : memref<4x64xf32, #tpu.memory_space<vmem>>, vector<1x64xf32>
    %43 = vector.broadcast %42 : vector<1x64xf32> to vector<8x64xf32>
    %44 = arith.mulf %41, %43 : vector<8x64xf32>
    %45 = arith.addf %40, %44 : vector<8x64xf32>
    %46 = vector.extract_strided_slice %27 {offsets = [3, 0], sizes = [8, 64], strides = [1, 1]} : vector<11x64xf32> to vector<8x64xf32>
    %c3 = arith.constant 3 : index
    %c0_22 = arith.constant 0 : index
    %47 = vector.load %arg6[%c3, %c0_22] : memref<4x64xf32, #tpu.memory_space<vmem>>, vector<1x64xf32>
    %48 = vector.broadcast %47 : vector<1x64xf32> to vector<8x64xf32>
    %49 = arith.mulf %46, %48 : vector<8x64xf32>
    %50 = arith.addf %45, %49 : vector<8x64xf32>
    %c0_23 = arith.constant 0 : index
    %c0_24 = arith.constant 0 : index
    %51 = vector.load %arg7[%c0_23, %c0_24] : memref<1x64xf32, #tpu.memory_space<vmem>>, vector<1x64xf32>
    %52 = vector.broadcast %51 : vector<1x64xf32> to vector<8x64xf32>
    %53 = arith.addf %50, %52 : vector<8x64xf32>
    %54 = arith.negf %53 : vector<8x64xf32>
    %55 = math.exp %54 : vector<8x64xf32>
    %cst_25 = arith.constant 1.000000e+00 : f32
    %56 = vector.broadcast %cst_25 : f32 to vector<8x64xf32>
    %57 = arith.addf %56, %55 : vector<8x64xf32>
    %58 = arith.divf %56, %57 : vector<8x64xf32>
    %59 = arith.mulf %53, %58 : vector<8x64xf32>
    %60 = arith.truncf %59 : vector<8x64xf32> to vector<8x64xbf16>
    %c0_26 = arith.constant 0 : index
    %c0_27 = arith.constant 0 : index
    %61 = vector.load %arg8[%c0_26, %c0_27] : memref<64x96xbf16, #tpu.memory_space<vmem>>, vector<64x96xbf16>
    %cst_28 = arith.constant dense<0.000000e+00> : vector<8x96xf32>
    %62 = tpu.matmul %60, %61, %cst_28 {dimension_numbers = #tpu.dot_dimension_numbers<[1], [0], [0], [1], [0, 0, 1, 1], [], []>} : vector<8x64xbf16>, vector<64x96xbf16>, vector<8x96xf32> -> vector<8x96xf32>
    %63 = vector.extract_strided_slice %62 {offsets = [0, 0], sizes = [8, 16], strides = [1, 1]} : vector<8x96xf32> to vector<8x16xf32>
    %64 = vector.extract_strided_slice %62 {offsets = [0, 16], sizes = [8, 16], strides = [1, 1]} : vector<8x96xf32> to vector<8x16xf32>
    %65 = vector.shape_cast %64 : vector<8x16xf32> to vector<8x16x1xf32>
    %c0_29 = arith.constant 0 : index
    %c0_30 = arith.constant 0 : index
    %c0_31 = arith.constant 0 : index
    %66 = vector.load %arg17[%c0_29, %c0_30, %c0_31] : memref<8x16x1xf32, #tpu.memory_space<vmem>>, vector<8x16x1xf32>
    tpu.vector_store %arg17[%c0_29, %c0_30, %c0_31], %65 {strides = array<i32>} : memref<8x16x1xf32, #tpu.memory_space<vmem>>, vector<8x16x1xf32>,
    %67 = vector.extract_strided_slice %62 {offsets = [0, 32], sizes = [8, 64], strides = [1, 1]} : vector<8x96xf32> to vector<8x64xf32>
    %c0_32 = arith.constant 0 : index
    %c0_33 = arith.constant 0 : index
    %68 = vector.load %arg9[%c0_32, %c0_33] : memref<1x64xf32, #tpu.memory_space<vmem>>, vector<1x64xf32>
    %69 = vector.broadcast %68 : vector<1x64xf32> to vector<8x64xf32>
    %70 = arith.addf %67, %69 : vector<8x64xf32>
    %cst_34 = arith.constant 0.000000e+00 : f32
    %71 = vector.broadcast %cst_34 : f32 to vector<8x64xf32>
    %72 = arith.maximumf %70, %71 : vector<8x64xf32>
    %73 = vector.broadcast %cst_34 : f32 to vector<8x64xf32>
    %74 = arith.subf %70, %73 : vector<8x64xf32>
    %75 = arith.cmpf one, %74, %74 : vector<8x64xf32>
    %76 = vector.broadcast %cst_34 : f32 to vector<8x64xf32>
    %77 = arith.addf %70, %76 : vector<8x64xf32>
    %78 = math.absf %74 : vector<8x64xf32>
    %cst_35 = arith.constant 0.000000e+00 : f32
    %79 = vector.broadcast %cst_35 : f32 to vector<8x64xf32>
    %80 = arith.subf %79, %78 : vector<8x64xf32>
    %81 = math.exp %80 : vector<8x64xf32>
    %82 = math.log1p %81 : vector<8x64xf32>
    %83 = arith.addf %72, %82 : vector<8x64xf32>
    %84 = arith.select %75, %77, %83 : vector<8x64xi1>, vector<8x64xf32>
    %85 = vector.shape_cast %84 : vector<8x64xf32> to vector<8x1x64xf32>
    %c0_36 = arith.constant 0 : index
    %c0_37 = arith.constant 0 : index
    %86 = vector.load %arg10[%c0_36, %c0_37] : memref<16x64xf32, #tpu.memory_space<vmem>>, vector<16x64xf32>
    %87 = vector.shape_cast %86 : vector<16x64xf32> to vector<1x16x64xf32>
    %88 = vector.broadcast %85 : vector<8x1x64xf32> to vector<8x16x64xf32>
    %89 = vector.broadcast %87 : vector<1x16x64xf32> to vector<8x16x64xf32>
    %90 = arith.mulf %88, %89 : vector<8x16x64xf32>
    %91 = math.exp %90 : vector<8x16x64xf32>
    %c0_38 = arith.constant 0 : index
    %c0_39 = arith.constant 0 : index
    %c0_40 = arith.constant 0 : index
    %92 = vector.load %arg15[%c0_38, %c0_39, %c0_40] : memref<8x16x64xf32, #tpu.memory_space<vmem>>, vector<8x16x64xf32>
    tpu.vector_store %arg15[%c0_38, %c0_39, %c0_40], %91 {strides = array<i32>} : memref<8x16x64xf32, #tpu.memory_space<vmem>>, vector<8x16x64xf32>,
    %93 = vector.shape_cast %63 : vector<8x16xf32> to vector<8x16x1xf32>
    %94 = arith.mulf %84, %59 : vector<8x64xf32>
    %95 = vector.shape_cast %94 : vector<8x64xf32> to vector<8x1x64xf32>
    %96 = vector.broadcast %93 : vector<8x16x1xf32> to vector<8x16x64xf32>
    %97 = vector.broadcast %95 : vector<8x1x64xf32> to vector<8x16x64xf32>
    %98 = arith.mulf %96, %97 : vector<8x16x64xf32>
    %c0_41 = arith.constant 0 : index
    %c0_42 = arith.constant 0 : index
    %c0_43 = arith.constant 0 : index
    %99 = vector.load %arg16[%c0_41, %c0_42, %c0_43] : memref<8x16x64xf32, #tpu.memory_space<vmem>>, vector<8x16x64xf32>
    tpu.vector_store %arg16[%c0_41, %c0_42, %c0_43], %98 {strides = array<i32>} : memref<8x16x64xf32, #tpu.memory_space<vmem>>, vector<8x16x64xf32>,
    %c0_44 = arith.constant 0 : index
    %c0_45 = arith.constant 0 : index
    %100 = vector.load %arg19[%c0_44, %c0_45] : memref<16x64xf32, #tpu.memory_space<vmem>>, vector<16x64xf32>
    %c0_i32_46 = arith.constant 0 : i32
    %101 = arith.index_cast %c0_i32_46 : i32 to index
    %c0_47 = arith.constant 0 : index
    %c0_48 = arith.constant 0 : index
    %102 = vector.load %arg15[%101, %c0_47, %c0_48] : memref<8x16x64xf32, #tpu.memory_space<vmem>>, vector<1x16x64xf32>
    %103 = vector.shape_cast %102 : vector<1x16x64xf32> to vector<16x64xf32>
    %104 = arith.mulf %103, %100 : vector<16x64xf32>
    %105 = arith.index_cast %c0_i32_46 : i32 to index
    %c0_49 = arith.constant 0 : index
    %c0_50 = arith.constant 0 : index
    %106 = vector.load %arg16[%105, %c0_49, %c0_50] : memref<8x16x64xf32, #tpu.memory_space<vmem>>, vector<1x16x64xf32>
    %107 = vector.shape_cast %106 : vector<1x16x64xf32> to vector<16x64xf32>
    %108 = arith.addf %104, %107 : vector<16x64xf32>
    %109 = arith.index_cast %c0_i32_46 : i32 to index
    %c0_51 = arith.constant 0 : index
    %c0_52 = arith.constant 0 : index
    %110 = vector.load %arg17[%109, %c0_51, %c0_52] : memref<8x16x1xf32, #tpu.memory_space<vmem>>, vector<1x16x1xf32>
    %111 = vector.shape_cast %110 : vector<1x16x1xf32> to vector<16x1xf32>
    %112 = vector.broadcast %111 : vector<16x1xf32> to vector<16x64xf32>
    %113 = arith.mulf %108, %112 : vector<16x64xf32>
    %cst_53 = arith.constant dense<0.000000e+00> : vector<64xf32>
    %114 = vector.multi_reduction <add>, %113, %cst_53 [0] : vector<16x64xf32> to vector<64xf32>
    %115 = vector.shape_cast %114 : vector<64xf32> to vector<1x64xf32>
    %116 = arith.index_cast %c0_i32_46 : i32 to index
    %c0_54 = arith.constant 0 : index
    %c0_55 = arith.constant 0 : index
    %117 = vector.load %arg18[%116, %c0_54, %c0_55] : memref<8x1x64xf32, #tpu.memory_space<vmem>>, vector<1x1x64xf32>
    %118 = vector.shape_cast %117 : vector<1x1x64xf32> to vector<1x64xf32>
    %119 = vector.shape_cast %115 : vector<1x64xf32> to vector<1x1x64xf32>
    tpu.vector_store %arg18[%116, %c0_54, %c0_55], %119 {strides = array<i32>} : memref<8x1x64xf32, #tpu.memory_space<vmem>>, vector<1x1x64xf32>,
    %c1_i32 = arith.constant 1 : i32
    %120 = arith.index_cast %c1_i32 : i32 to index
    %c0_56 = arith.constant 0 : index
    %c0_57 = arith.constant 0 : index
    %121 = vector.load %arg15[%120, %c0_56, %c0_57] : memref<8x16x64xf32, #tpu.memory_space<vmem>>, vector<1x16x64xf32>
    %122 = vector.shape_cast %121 : vector<1x16x64xf32> to vector<16x64xf32>
    %123 = arith.mulf %122, %108 : vector<16x64xf32>
    %124 = arith.index_cast %c1_i32 : i32 to index
    %c0_58 = arith.constant 0 : index
    %c0_59 = arith.constant 0 : index
    %125 = vector.load %arg16[%124, %c0_58, %c0_59] : memref<8x16x64xf32, #tpu.memory_space<vmem>>, vector<1x16x64xf32>
    %126 = vector.shape_cast %125 : vector<1x16x64xf32> to vector<16x64xf32>
    %127 = arith.addf %123, %126 : vector<16x64xf32>
    %128 = arith.index_cast %c1_i32 : i32 to index
    %c0_60 = arith.constant 0 : index
    %c0_61 = arith.constant 0 : index
    %129 = vector.load %arg17[%128, %c0_60, %c0_61] : memref<8x16x1xf32, #tpu.memory_space<vmem>>, vector<1x16x1xf32>
    %130 = vector.shape_cast %129 : vector<1x16x1xf32> to vector<16x1xf32>
    %131 = vector.broadcast %130 : vector<16x1xf32> to vector<16x64xf32>
    %132 = arith.mulf %127, %131 : vector<16x64xf32>
    %cst_62 = arith.constant dense<0.000000e+00> : vector<64xf32>
    %133 = vector.multi_reduction <add>, %132, %cst_62 [0] : vector<16x64xf32> to vector<64xf32>
    %134 = vector.shape_cast %133 : vector<64xf32> to vector<1x64xf32>
    %135 = arith.index_cast %c1_i32 : i32 to index
    %c0_63 = arith.constant 0 : index
    %c0_64 = arith.constant 0 : index
    %136 = vector.load %arg18[%135, %c0_63, %c0_64] : memref<8x1x64xf32, #tpu.memory_space<vmem>>, vector<1x1x64xf32>
    %137 = vector.shape_cast %136 : vector<1x1x64xf32> to vector<1x64xf32>
    %138 = vector.shape_cast %134 : vector<1x64xf32> to vector<1x1x64xf32>
    tpu.vector_store %arg18[%135, %c0_63, %c0_64], %138 {strides = array<i32>} : memref<8x1x64xf32, #tpu.memory_space<vmem>>, vector<1x1x64xf32>,
    %c2_i32 = arith.constant 2 : i32
    %139 = arith.index_cast %c2_i32 : i32 to index
    %c0_65 = arith.constant 0 : index
    %c0_66 = arith.constant 0 : index
    %140 = vector.load %arg15[%139, %c0_65, %c0_66] : memref<8x16x64xf32, #tpu.memory_space<vmem>>, vector<1x16x64xf32>
    %141 = vector.shape_cast %140 : vector<1x16x64xf32> to vector<16x64xf32>
    %142 = arith.mulf %141, %127 : vector<16x64xf32>
    %143 = arith.index_cast %c2_i32 : i32 to index
    %c0_67 = arith.constant 0 : index
    %c0_68 = arith.constant 0 : index
    %144 = vector.load %arg16[%143, %c0_67, %c0_68] : memref<8x16x64xf32, #tpu.memory_space<vmem>>, vector<1x16x64xf32>
    %145 = vector.shape_cast %144 : vector<1x16x64xf32> to vector<16x64xf32>
    %146 = arith.addf %142, %145 : vector<16x64xf32>
    %147 = arith.index_cast %c2_i32 : i32 to index
    %c0_69 = arith.constant 0 : index
    %c0_70 = arith.constant 0 : index
    %148 = vector.load %arg17[%147, %c0_69, %c0_70] : memref<8x16x1xf32, #tpu.memory_space<vmem>>, vector<1x16x1xf32>
    %149 = vector.shape_cast %148 : vector<1x16x1xf32> to vector<16x1xf32>
    %150 = vector.broadcast %149 : vector<16x1xf32> to vector<16x64xf32>
    %151 = arith.mulf %146, %150 : vector<16x64xf32>
    %cst_71 = arith.constant dense<0.000000e+00> : vector<64xf32>
    %152 = vector.multi_reduction <add>, %151, %cst_71 [0] : vector<16x64xf32> to vector<64xf32>
    %153 = vector.shape_cast %152 : vector<64xf32> to vector<1x64xf32>
    %154 = arith.index_cast %c2_i32 : i32 to index
    %c0_72 = arith.constant 0 : index
    %c0_73 = arith.constant 0 : index
    %155 = vector.load %arg18[%154, %c0_72, %c0_73] : memref<8x1x64xf32, #tpu.memory_space<vmem>>, vector<1x1x64xf32>
    %156 = vector.shape_cast %155 : vector<1x1x64xf32> to vector<1x64xf32>
    %157 = vector.shape_cast %153 : vector<1x64xf32> to vector<1x1x64xf32>
    tpu.vector_store %arg18[%154, %c0_72, %c0_73], %157 {strides = array<i32>} : memref<8x1x64xf32, #tpu.memory_space<vmem>>, vector<1x1x64xf32>,
    %c3_i32 = arith.constant 3 : i32
    %158 = arith.index_cast %c3_i32 : i32 to index
    %c0_74 = arith.constant 0 : index
    %c0_75 = arith.constant 0 : index
    %159 = vector.load %arg15[%158, %c0_74, %c0_75] : memref<8x16x64xf32, #tpu.memory_space<vmem>>, vector<1x16x64xf32>
    %160 = vector.shape_cast %159 : vector<1x16x64xf32> to vector<16x64xf32>
    %161 = arith.mulf %160, %146 : vector<16x64xf32>
    %162 = arith.index_cast %c3_i32 : i32 to index
    %c0_76 = arith.constant 0 : index
    %c0_77 = arith.constant 0 : index
    %163 = vector.load %arg16[%162, %c0_76, %c0_77] : memref<8x16x64xf32, #tpu.memory_space<vmem>>, vector<1x16x64xf32>
    %164 = vector.shape_cast %163 : vector<1x16x64xf32> to vector<16x64xf32>
    %165 = arith.addf %161, %164 : vector<16x64xf32>
    %166 = arith.index_cast %c3_i32 : i32 to index
    %c0_78 = arith.constant 0 : index
    %c0_79 = arith.constant 0 : index
    %167 = vector.load %arg17[%166, %c0_78, %c0_79] : memref<8x16x1xf32, #tpu.memory_space<vmem>>, vector<1x16x1xf32>
    %168 = vector.shape_cast %167 : vector<1x16x1xf32> to vector<16x1xf32>
    %169 = vector.broadcast %168 : vector<16x1xf32> to vector<16x64xf32>
    %170 = arith.mulf %165, %169 : vector<16x64xf32>
    %cst_80 = arith.constant dense<0.000000e+00> : vector<64xf32>
    %171 = vector.multi_reduction <add>, %170, %cst_80 [0] : vector<16x64xf32> to vector<64xf32>
    %172 = vector.shape_cast %171 : vector<64xf32> to vector<1x64xf32>
    %173 = arith.index_cast %c3_i32 : i32 to index
    %c0_81 = arith.constant 0 : index
    %c0_82 = arith.constant 0 : index
    %174 = vector.load %arg18[%173, %c0_81, %c0_82] : memref<8x1x64xf32, #tpu.memory_space<vmem>>, vector<1x1x64xf32>
    %175 = vector.shape_cast %174 : vector<1x1x64xf32> to vector<1x64xf32>
    %176 = vector.shape_cast %172 : vector<1x64xf32> to vector<1x1x64xf32>
    tpu.vector_store %arg18[%173, %c0_81, %c0_82], %176 {strides = array<i32>} : memref<8x1x64xf32, #tpu.memory_space<vmem>>, vector<1x1x64xf32>,
    %c4_i32 = arith.constant 4 : i32
    %177 = arith.index_cast %c4_i32 : i32 to index
    %c0_83 = arith.constant 0 : index
    %c0_84 = arith.constant 0 : index
    %178 = vector.load %arg15[%177, %c0_83, %c0_84] : memref<8x16x64xf32, #tpu.memory_space<vmem>>, vector<1x16x64xf32>
    %179 = vector.shape_cast %178 : vector<1x16x64xf32> to vector<16x64xf32>
    %180 = arith.mulf %179, %165 : vector<16x64xf32>
    %181 = arith.index_cast %c4_i32 : i32 to index
    %c0_85 = arith.constant 0 : index
    %c0_86 = arith.constant 0 : index
    %182 = vector.load %arg16[%181, %c0_85, %c0_86] : memref<8x16x64xf32, #tpu.memory_space<vmem>>, vector<1x16x64xf32>
    %183 = vector.shape_cast %182 : vector<1x16x64xf32> to vector<16x64xf32>
    %184 = arith.addf %180, %183 : vector<16x64xf32>
    %185 = arith.index_cast %c4_i32 : i32 to index
    %c0_87 = arith.constant 0 : index
    %c0_88 = arith.constant 0 : index
    %186 = vector.load %arg17[%185, %c0_87, %c0_88] : memref<8x16x1xf32, #tpu.memory_space<vmem>>, vector<1x16x1xf32>
    %187 = vector.shape_cast %186 : vector<1x16x1xf32> to vector<16x1xf32>
    %188 = vector.broadcast %187 : vector<16x1xf32> to vector<16x64xf32>
    %189 = arith.mulf %184, %188 : vector<16x64xf32>
    %cst_89 = arith.constant dense<0.000000e+00> : vector<64xf32>
    %190 = vector.multi_reduction <add>, %189, %cst_89 [0] : vector<16x64xf32> to vector<64xf32>
    %191 = vector.shape_cast %190 : vector<64xf32> to vector<1x64xf32>
    %192 = arith.index_cast %c4_i32 : i32 to index
    %c0_90 = arith.constant 0 : index
    %c0_91 = arith.constant 0 : index
    %193 = vector.load %arg18[%192, %c0_90, %c0_91] : memref<8x1x64xf32, #tpu.memory_space<vmem>>, vector<1x1x64xf32>
    %194 = vector.shape_cast %193 : vector<1x1x64xf32> to vector<1x64xf32>
    %195 = vector.shape_cast %191 : vector<1x64xf32> to vector<1x1x64xf32>
    tpu.vector_store %arg18[%192, %c0_90, %c0_91], %195 {strides = array<i32>} : memref<8x1x64xf32, #tpu.memory_space<vmem>>, vector<1x1x64xf32>,
    %c5_i32 = arith.constant 5 : i32
    %196 = arith.index_cast %c5_i32 : i32 to index
    %c0_92 = arith.constant 0 : index
    %c0_93 = arith.constant 0 : index
    %197 = vector.load %arg15[%196, %c0_92, %c0_93] : memref<8x16x64xf32, #tpu.memory_space<vmem>>, vector<1x16x64xf32>
    %198 = vector.shape_cast %197 : vector<1x16x64xf32> to vector<16x64xf32>
    %199 = arith.mulf %198, %184 : vector<16x64xf32>
    %200 = arith.index_cast %c5_i32 : i32 to index
    %c0_94 = arith.constant 0 : index
    %c0_95 = arith.constant 0 : index
    %201 = vector.load %arg16[%200, %c0_94, %c0_95] : memref<8x16x64xf32, #tpu.memory_space<vmem>>, vector<1x16x64xf32>
    %202 = vector.shape_cast %201 : vector<1x16x64xf32> to vector<16x64xf32>
    %203 = arith.addf %199, %202 : vector<16x64xf32>
    %204 = arith.index_cast %c5_i32 : i32 to index
    %c0_96 = arith.constant 0 : index
    %c0_97 = arith.constant 0 : index
    %205 = vector.load %arg17[%204, %c0_96, %c0_97] : memref<8x16x1xf32, #tpu.memory_space<vmem>>, vector<1x16x1xf32>
    %206 = vector.shape_cast %205 : vector<1x16x1xf32> to vector<16x1xf32>
    %207 = vector.broadcast %206 : vector<16x1xf32> to vector<16x64xf32>
    %208 = arith.mulf %203, %207 : vector<16x64xf32>
    %cst_98 = arith.constant dense<0.000000e+00> : vector<64xf32>
    %209 = vector.multi_reduction <add>, %208, %cst_98 [0] : vector<16x64xf32> to vector<64xf32>
    %210 = vector.shape_cast %209 : vector<64xf32> to vector<1x64xf32>
    %211 = arith.index_cast %c5_i32 : i32 to index
    %c0_99 = arith.constant 0 : index
    %c0_100 = arith.constant 0 : index
    %212 = vector.load %arg18[%211, %c0_99, %c0_100] : memref<8x1x64xf32, #tpu.memory_space<vmem>>, vector<1x1x64xf32>
    %213 = vector.shape_cast %212 : vector<1x1x64xf32> to vector<1x64xf32>
    %214 = vector.shape_cast %210 : vector<1x64xf32> to vector<1x1x64xf32>
    tpu.vector_store %arg18[%211, %c0_99, %c0_100], %214 {strides = array<i32>} : memref<8x1x64xf32, #tpu.memory_space<vmem>>, vector<1x1x64xf32>,
    %c6_i32 = arith.constant 6 : i32
    %215 = arith.index_cast %c6_i32 : i32 to index
    %c0_101 = arith.constant 0 : index
    %c0_102 = arith.constant 0 : index
    %216 = vector.load %arg15[%215, %c0_101, %c0_102] : memref<8x16x64xf32, #tpu.memory_space<vmem>>, vector<1x16x64xf32>
    %217 = vector.shape_cast %216 : vector<1x16x64xf32> to vector<16x64xf32>
    %218 = arith.mulf %217, %203 : vector<16x64xf32>
    %219 = arith.index_cast %c6_i32 : i32 to index
    %c0_103 = arith.constant 0 : index
    %c0_104 = arith.constant 0 : index
    %220 = vector.load %arg16[%219, %c0_103, %c0_104] : memref<8x16x64xf32, #tpu.memory_space<vmem>>, vector<1x16x64xf32>
    %221 = vector.shape_cast %220 : vector<1x16x64xf32> to vector<16x64xf32>
    %222 = arith.addf %218, %221 : vector<16x64xf32>
    %223 = arith.index_cast %c6_i32 : i32 to index
    %c0_105 = arith.constant 0 : index
    %c0_106 = arith.constant 0 : index
    %224 = vector.load %arg17[%223, %c0_105, %c0_106] : memref<8x16x1xf32, #tpu.memory_space<vmem>>, vector<1x16x1xf32>
    %225 = vector.shape_cast %224 : vector<1x16x1xf32> to vector<16x1xf32>
    %226 = vector.broadcast %225 : vector<16x1xf32> to vector<16x64xf32>
    %227 = arith.mulf %222, %226 : vector<16x64xf32>
    %cst_107 = arith.constant dense<0.000000e+00> : vector<64xf32>
    %228 = vector.multi_reduction <add>, %227, %cst_107 [0] : vector<16x64xf32> to vector<64xf32>
    %229 = vector.shape_cast %228 : vector<64xf32> to vector<1x64xf32>
    %230 = arith.index_cast %c6_i32 : i32 to index
    %c0_108 = arith.constant 0 : index
    %c0_109 = arith.constant 0 : index
    %231 = vector.load %arg18[%230, %c0_108, %c0_109] : memref<8x1x64xf32, #tpu.memory_space<vmem>>, vector<1x1x64xf32>
    %232 = vector.shape_cast %231 : vector<1x1x64xf32> to vector<1x64xf32>
    %233 = vector.shape_cast %229 : vector<1x64xf32> to vector<1x1x64xf32>
    tpu.vector_store %arg18[%230, %c0_108, %c0_109], %233 {strides = array<i32>} : memref<8x1x64xf32, #tpu.memory_space<vmem>>, vector<1x1x64xf32>,
    %c7_i32 = arith.constant 7 : i32
    %234 = arith.index_cast %c7_i32 : i32 to index
    %c0_110 = arith.constant 0 : index
    %c0_111 = arith.constant 0 : index
    %235 = vector.load %arg15[%234, %c0_110, %c0_111] : memref<8x16x64xf32, #tpu.memory_space<vmem>>, vector<1x16x64xf32>
    %236 = vector.shape_cast %235 : vector<1x16x64xf32> to vector<16x64xf32>
    %237 = arith.mulf %236, %222 : vector<16x64xf32>
    %238 = arith.index_cast %c7_i32 : i32 to index
    %c0_112 = arith.constant 0 : index
    %c0_113 = arith.constant 0 : index
    %239 = vector.load %arg16[%238, %c0_112, %c0_113] : memref<8x16x64xf32, #tpu.memory_space<vmem>>, vector<1x16x64xf32>
    %240 = vector.shape_cast %239 : vector<1x16x64xf32> to vector<16x64xf32>
    %241 = arith.addf %237, %240 : vector<16x64xf32>
    %242 = arith.index_cast %c7_i32 : i32 to index
    %c0_114 = arith.constant 0 : index
    %c0_115 = arith.constant 0 : index
    %243 = vector.load %arg17[%242, %c0_114, %c0_115] : memref<8x16x1xf32, #tpu.memory_space<vmem>>, vector<1x16x1xf32>
    %244 = vector.shape_cast %243 : vector<1x16x1xf32> to vector<16x1xf32>
    %245 = vector.broadcast %244 : vector<16x1xf32> to vector<16x64xf32>
    %246 = arith.mulf %241, %245 : vector<16x64xf32>
    %cst_116 = arith.constant dense<0.000000e+00> : vector<64xf32>
    %247 = vector.multi_reduction <add>, %246, %cst_116 [0] : vector<16x64xf32> to vector<64xf32>
    %248 = vector.shape_cast %247 : vector<64xf32> to vector<1x64xf32>
    %249 = arith.index_cast %c7_i32 : i32 to index
    %c0_117 = arith.constant 0 : index
    %c0_118 = arith.constant 0 : index
    %250 = vector.load %arg18[%249, %c0_117, %c0_118] : memref<8x1x64xf32, #tpu.memory_space<vmem>>, vector<1x1x64xf32>
    %251 = vector.shape_cast %250 : vector<1x1x64xf32> to vector<1x64xf32>
    %252 = vector.shape_cast %248 : vector<1x64xf32> to vector<1x1x64xf32>
    tpu.vector_store %arg18[%249, %c0_117, %c0_118], %252 {strides = array<i32>} : memref<8x1x64xf32, #tpu.memory_space<vmem>>, vector<1x1x64xf32>,
    %c8_i32 = arith.constant 8 : i32
    %c0_119 = arith.constant 0 : index
    %c0_120 = arith.constant 0 : index
    %253 = vector.load %arg19[%c0_119, %c0_120] : memref<16x64xf32, #tpu.memory_space<vmem>>, vector<16x64xf32>
    tpu.vector_store %arg19[%c0_119, %c0_120], %241 {strides = array<i32>} : memref<16x64xf32, #tpu.memory_space<vmem>>, vector<16x64xf32>,
    %c0_121 = arith.constant 0 : index
    %c0_122 = arith.constant 0 : index
    %c0_123 = arith.constant 0 : index
    %254 = vector.load %arg18[%c0_121, %c0_122, %c0_123] : memref<8x1x64xf32, #tpu.memory_space<vmem>>, vector<8x1x64xf32>
    %255 = vector.shape_cast %254 : vector<8x1x64xf32> to vector<8x64xf32>
    %c0_124 = arith.constant 0 : index
    %c0_125 = arith.constant 0 : index
    %256 = vector.load %arg11[%c0_124, %c0_125] : memref<1x64xf32, #tpu.memory_space<vmem>>, vector<1x64xf32>
    %257 = vector.broadcast %256 : vector<1x64xf32> to vector<8x64xf32>
    %258 = arith.mulf %59, %257 : vector<8x64xf32>
    %259 = arith.addf %255, %258 : vector<8x64xf32>
    %260 = arith.negf %25 : vector<8x64xf32>
    %261 = math.exp %260 : vector<8x64xf32>
    %cst_126 = arith.constant 1.000000e+00 : f32
    %262 = vector.broadcast %cst_126 : f32 to vector<8x64xf32>
    %263 = arith.addf %262, %261 : vector<8x64xf32>
    %264 = arith.divf %262, %263 : vector<8x64xf32>
    %265 = arith.mulf %25, %264 : vector<8x64xf32>
    %266 = arith.mulf %259, %265 : vector<8x64xf32>
    %267 = arith.truncf %266 : vector<8x64xf32> to vector<8x64xbf16>
    %c0_127 = arith.constant 0 : index
    %c0_128 = arith.constant 0 : index
    %268 = vector.load %arg12[%c0_127, %c0_128] : memref<64x32xbf16, #tpu.memory_space<vmem>>, vector<64x32xbf16>
    %cst_129 = arith.constant dense<0.000000e+00> : vector<8x32xf32>
    %269 = tpu.matmul %267, %268, %cst_129 {dimension_numbers = #tpu.dot_dimension_numbers<[1], [0], [0], [1], [0, 0, 1, 1], [], []>} : vector<8x64xbf16>, vector<64x32xbf16>, vector<8x32xf32> -> vector<8x32xf32>
    %c0_130 = arith.constant 0 : index
    %c0_131 = arith.constant 0 : index
    %c0_132 = arith.constant 0 : index
    %270 = vector.load %arg13[%c0_130, %c0_131, %c0_132] : memref<1x8x32xf32, #tpu.memory_space<vmem>>, vector<1x8x32xf32>
    %271 = vector.shape_cast %270 : vector<1x8x32xf32> to vector<8x32xf32>
    %272 = vector.shape_cast %269 : vector<8x32xf32> to vector<1x8x32xf32>
    tpu.vector_store %arg13[%c0_130, %c0_131, %c0_132], %272 {strides = array<i32>} : memref<1x8x32xf32, #tpu.memory_space<vmem>>, vector<1x8x32xf32>,
    %c0_133 = arith.constant 0 : index
    %c0_134 = arith.constant 0 : index
    %c0_135 = arith.constant 0 : index
    %273 = vector.load %arg14[%c0_133, %c0_134, %c0_135] : memref<1x8x32xf32, #tpu.memory_space<vmem>>, vector<1x8x32xf32>
    %274 = vector.shape_cast %273 : vector<1x8x32xf32> to vector<8x32xf32>
    %275 = vector.shape_cast %4 : vector<8x32xf32> to vector<1x8x32xf32>
    tpu.vector_store %arg14[%c0_133, %c0_134, %c0_135], %275 {strides = array<i32>} : memref<1x8x32xf32, #tpu.memory_space<vmem>>, vector<1x8x32xf32>,
    return
  }
  func.func @transform_0(%arg0: i32, %arg1: i32) -> (i32, i32, i32) {
    %c0_i32 = arith.constant 0 : i32
    %c0_i32_0 = arith.constant 0 : i32
    return %arg0, %arg1, %c0_i32 : i32, i32, i32
  }
  func.func @transform_1(%arg0: i32, %arg1: i32) -> (i32, i32, i32) {
    %c0_i32 = arith.constant 0 : i32
    %c0_i32_0 = arith.constant 0 : i32
    return %arg0, %arg1, %c0_i32 : i32, i32, i32
  }
  func.func @transform_2(%arg0: i32, %arg1: i32) -> (i32, i32) {
    %c0_i32 = arith.constant 0 : i32
    %c0_i32_0 = arith.constant 0 : i32
    %c0_i32_1 = arith.constant 0 : i32
    return %c0_i32, %c0_i32_0 : i32, i32
  }
  func.func @transform_3(%arg0: i32, %arg1: i32) -> (i32, i32) {
    %c0_i32 = arith.constant 0 : i32
    %c0_i32_0 = arith.constant 0 : i32
    %c0_i32_1 = arith.constant 0 : i32
    return %c0_i32, %c0_i32_0 : i32, i32
  }
  func.func @transform_4(%arg0: i32, %arg1: i32) -> (i32, i32) {
    %c0_i32 = arith.constant 0 : i32
    %c0_i32_0 = arith.constant 0 : i32
    %c0_i32_1 = arith.constant 0 : i32
    return %c0_i32, %c0_i32_0 : i32, i32
  }
  func.func @transform_5(%arg0: i32, %arg1: i32) -> (i32, i32) {
    %c0_i32 = arith.constant 0 : i32
    %c0_i32_0 = arith.constant 0 : i32
    %c0_i32_1 = arith.constant 0 : i32
    return %c0_i32, %c0_i32_0 : i32, i32
  }
  func.func @transform_6(%arg0: i32, %arg1: i32) -> (i32, i32) {
    %c0_i32 = arith.constant 0 : i32
    %c0_i32_0 = arith.constant 0 : i32
    %c0_i32_1 = arith.constant 0 : i32
    return %c0_i32, %c0_i32_0 : i32, i32
  }
  func.func @transform_7(%arg0: i32, %arg1: i32) -> (i32, i32) {
    %c0_i32 = arith.constant 0 : i32
    %c0_i32_0 = arith.constant 0 : i32
    %c0_i32_1 = arith.constant 0 : i32
    return %c0_i32, %c0_i32_0 : i32, i32
  }
  func.func @transform_8(%arg0: i32, %arg1: i32) -> (i32, i32) {
    %c0_i32 = arith.constant 0 : i32
    %c0_i32_0 = arith.constant 0 : i32
    %c0_i32_1 = arith.constant 0 : i32
    return %c0_i32, %c0_i32_0 : i32, i32
  }
  func.func @transform_9(%arg0: i32, %arg1: i32) -> (i32, i32) {
    %c0_i32 = arith.constant 0 : i32
    %c0_i32_0 = arith.constant 0 : i32
    %c0_i32_1 = arith.constant 0 : i32
    return %c0_i32, %c0_i32_0 : i32, i32
  }
  func.func @transform_10(%arg0: i32, %arg1: i32) -> (i32, i32) {
    %c0_i32 = arith.constant 0 : i32
    %c0_i32_0 = arith.constant 0 : i32
    %c0_i32_1 = arith.constant 0 : i32
    return %c0_i32, %c0_i32_0 : i32, i32
  }
  func.func @transform_11(%arg0: i32, %arg1: i32) -> (i32, i32, i32) {
    %c0_i32 = arith.constant 0 : i32
    %c0_i32_0 = arith.constant 0 : i32
    return %arg0, %arg1, %c0_i32 : i32, i32, i32
  }
  func.func @transform_12(%arg0: i32, %arg1: i32) -> (i32, i32, i32) {
    %c0_i32 = arith.constant 0 : i32
    %c0_i32_0 = arith.constant 0 : i32
    return %arg0, %arg1, %c0_i32 : i32, i32, i32
  }
}

module attributes {stable_mosaic.version = 11 : i64} {
  func.func @_mamba_block_first_kernel(%arg0: i32, %arg1: i32, %arg2: memref<1x8x32xf32, #tpu.memory_space<vmem>>, %arg3: memref<1x32xf32, #tpu.memory_space<vmem>>, %arg4: memref<32x128xbf16, #tpu.memory_space<vmem>>, %arg5: memref<4x64xf32, #tpu.memory_space<vmem>>, %arg6: memref<1x64xf32, #tpu.memory_space<vmem>>, %arg7: memref<64x96xbf16, #tpu.memory_space<vmem>>, %arg8: memref<1x64xf32, #tpu.memory_space<vmem>>, %arg9: memref<16x64xf32, #tpu.memory_space<vmem>>, %arg10: memref<1x64xf32, #tpu.memory_space<vmem>>, %arg11: memref<64x32xbf16, #tpu.memory_space<vmem>>, %arg12: memref<1x8x32xf32, #tpu.memory_space<vmem>>, %arg13: memref<1x8x32xf32, #tpu.memory_space<vmem>>, %arg14: memref<8x16x64xf32, #tpu.memory_space<vmem>>, %arg15: memref<8x16x64xf32, #tpu.memory_space<vmem>>, %arg16: memref<8x16x1xf32, #tpu.memory_space<vmem>>, %arg17: memref<8x1x64xf32, #tpu.memory_space<vmem>>, %arg18: memref<16x64xf32, #tpu.memory_space<vmem>>, %arg19: memref<3x64xf32, #tpu.memory_space<vmem>>) attributes {dimension_semantics = [#tpu.dimension_semantics<parallel>, #tpu.dimension_semantics<arbitrary>], iteration_bounds = array<i64: 2, 1>, scalar_prefetch = 0 : i64, scratch_operands = 6 : i64, tpu.core_type = #tpu.core_type<tc>, window_params = [{transform_indices = @transform_0, window_bounds = array<i64: 1, 8, 32>}, {pipeline_mode = #tpu.pipeline_mode<synchronous>, transform_indices = @transform_1, window_bounds = array<i64: 1, 32>}, {pipeline_mode = #tpu.pipeline_mode<synchronous>, transform_indices = @transform_2, window_bounds = array<i64: 32, 128>}, {pipeline_mode = #tpu.pipeline_mode<synchronous>, transform_indices = @transform_3, window_bounds = array<i64: 4, 64>}, {pipeline_mode = #tpu.pipeline_mode<synchronous>, transform_indices = @transform_4, window_bounds = array<i64: 1, 64>}, {pipeline_mode = #tpu.pipeline_mode<synchronous>, transform_indices = @transform_5, window_bounds = array<i64: 64, 96>}, {pipeline_mode = #tpu.pipeline_mode<synchronous>, transform_indices = @transform_6, window_bounds = array<i64: 1, 64>}, {pipeline_mode = #tpu.pipeline_mode<synchronous>, transform_indices = @transform_7, window_bounds = array<i64: 16, 64>}, {pipeline_mode = #tpu.pipeline_mode<synchronous>, transform_indices = @transform_8, window_bounds = array<i64: 1, 64>}, {pipeline_mode = #tpu.pipeline_mode<synchronous>, transform_indices = @transform_9, window_bounds = array<i64: 64, 32>}, {transform_indices = @transform_10, window_bounds = array<i64: 1, 8, 32>}, {transform_indices = @transform_11, window_bounds = array<i64: 1, 8, 32>}]} {
    %c0 = arith.constant 0 : index
    %c0_0 = arith.constant 0 : index
    %c0_1 = arith.constant 0 : index
    %0 = vector.load %arg2[%c0, %c0_0, %c0_1] : memref<1x8x32xf32, #tpu.memory_space<vmem>>, vector<1x8x32xf32>
    %1 = vector.shape_cast %0 : vector<1x8x32xf32> to vector<8x32xf32>
    %c0_i32 = arith.constant 0 : i32
    %2 = arith.cmpi eq, %arg1, %c0_i32 : i32
    %3 = arith.extui %2 : i1 to i32
    %c0_i32_2 = arith.constant 0 : i32
    %4 = arith.cmpi ne, %3, %c0_i32_2 : i32
    scf.if %4 {
      %cst_133 = arith.constant 0.000000e+00 : f32
      %273 = vector.broadcast %cst_133 : f32 to vector<16x64xf32>
      %c0_134 = arith.constant 0 : index
      %c0_135 = arith.constant 0 : index
      %274 = vector.load %arg18[%c0_134, %c0_135] : memref<16x64xf32, #tpu.memory_space<vmem>>, vector<16x64xf32>
      tpu.vector_store %arg18[%c0_134, %c0_135], %273 {strides = array<i32>} : memref<16x64xf32, #tpu.memory_space<vmem>>, vector<16x64xf32>,
      %cst_136 = arith.constant 0.000000e+00 : f32
      %275 = vector.broadcast %cst_136 : f32 to vector<3x64xf32>
      %c0_137 = arith.constant 0 : index
      %c0_138 = arith.constant 0 : index
      %276 = vector.load %arg19[%c0_137, %c0_138] : memref<3x64xf32, #tpu.memory_space<vmem>>, vector<3x64xf32>
      tpu.vector_store %arg19[%c0_137, %c0_138], %275 {strides = array<i32>} : memref<3x64xf32, #tpu.memory_space<vmem>>, vector<3x64xf32>,
    } else {
    }
    %5 = arith.mulf %1, %1 : vector<8x32xf32>
    %cst = arith.constant dense<0.000000e+00> : vector<8xf32>
    %6 = vector.multi_reduction <add>, %5, %cst [1] : vector<8x32xf32> to vector<8xf32>
    %7 = vector.shape_cast %6 : vector<8xf32> to vector<8x1xf32>
    %cst_3 = arith.constant 3.200000e+01 : f32
    %8 = vector.broadcast %cst_3 : f32 to vector<8x1xf32>
    %9 = arith.divf %7, %8 : vector<8x1xf32>
    %cst_4 = arith.constant 9.99999974E-6 : f32
    %10 = vector.broadcast %cst_4 : f32 to vector<8x1xf32>
    %11 = arith.addf %9, %10 : vector<8x1xf32>
    %12 = math.rsqrt %11 : vector<8x1xf32>
    %13 = vector.broadcast %12 : vector<8x1xf32> to vector<8x32xf32>
    %14 = arith.mulf %1, %13 : vector<8x32xf32>
    %c0_5 = arith.constant 0 : index
    %c0_6 = arith.constant 0 : index
    %15 = vector.load %arg3[%c0_5, %c0_6] : memref<1x32xf32, #tpu.memory_space<vmem>>, vector<1x32xf32>
    %16 = vector.broadcast %15 : vector<1x32xf32> to vector<8x32xf32>
    %17 = arith.mulf %14, %16 : vector<8x32xf32>
    %18 = arith.truncf %17 : vector<8x32xf32> to vector<8x32xbf16>
    %c0_7 = arith.constant 0 : index
    %c0_8 = arith.constant 0 : index
    %19 = vector.load %arg4[%c0_7, %c0_8] : memref<32x128xbf16, #tpu.memory_space<vmem>>, vector<32x128xbf16>
    %cst_9 = arith.constant dense<0.000000e+00> : vector<8x128xf32>
    %20 = tpu.matmul %18, %19, %cst_9 {dimension_numbers = #tpu.dot_dimension_numbers<[1], [0], [0], [1], [0, 0, 1, 1], [], []>} : vector<8x32xbf16>, vector<32x128xbf16>, vector<8x128xf32> -> vector<8x128xf32>
    %21 = vector.extract_strided_slice %20 {offsets = [0, 0], sizes = [8, 64], strides = [1, 1]} : vector<8x128xf32> to vector<8x64xf32>
    %22 = vector.extract_strided_slice %20 {offsets = [0, 64], sizes = [8, 64], strides = [1, 1]} : vector<8x128xf32> to vector<8x64xf32>
    %c0_10 = arith.constant 0 : index
    %c0_11 = arith.constant 0 : index
    %23 = vector.load %arg19[%c0_10, %c0_11] : memref<3x64xf32, #tpu.memory_space<vmem>>, vector<3x64xf32>
    %24 = tpu.concatenate %23, %21 in 0 : vector<3x64xf32>, vector<8x64xf32> -> vector<11x64xf32>
    %25 = vector.extract_strided_slice %21 {offsets = [5, 0], sizes = [3, 64], strides = [1, 1]} : vector<8x64xf32> to vector<3x64xf32>
    %c0_12 = arith.constant 0 : index
    %c0_13 = arith.constant 0 : index
    %26 = vector.load %arg19[%c0_12, %c0_13] : memref<3x64xf32, #tpu.memory_space<vmem>>, vector<3x64xf32>
    tpu.vector_store %arg19[%c0_12, %c0_13], %25 {strides = array<i32>} : memref<3x64xf32, #tpu.memory_space<vmem>>, vector<3x64xf32>,
    %cst_14 = arith.constant 0.000000e+00 : f32
    %27 = vector.broadcast %cst_14 : f32 to vector<8x64xf32>
    %28 = vector.extract_strided_slice %24 {offsets = [0, 0], sizes = [8, 64], strides = [1, 1]} : vector<11x64xf32> to vector<8x64xf32>
    %c0_15 = arith.constant 0 : index
    %c0_16 = arith.constant 0 : index
    %29 = vector.load %arg5[%c0_15, %c0_16] : memref<4x64xf32, #tpu.memory_space<vmem>>, vector<1x64xf32>
    %30 = vector.broadcast %29 : vector<1x64xf32> to vector<8x64xf32>
    %31 = arith.mulf %28, %30 : vector<8x64xf32>
    %32 = arith.addf %27, %31 : vector<8x64xf32>
    %33 = vector.extract_strided_slice %24 {offsets = [1, 0], sizes = [8, 64], strides = [1, 1]} : vector<11x64xf32> to vector<8x64xf32>
    %c1 = arith.constant 1 : index
    %c0_17 = arith.constant 0 : index
    %34 = vector.load %arg5[%c1, %c0_17] : memref<4x64xf32, #tpu.memory_space<vmem>>, vector<1x64xf32>
    %35 = vector.broadcast %34 : vector<1x64xf32> to vector<8x64xf32>
    %36 = arith.mulf %33, %35 : vector<8x64xf32>
    %37 = arith.addf %32, %36 : vector<8x64xf32>
    %38 = vector.extract_strided_slice %24 {offsets = [2, 0], sizes = [8, 64], strides = [1, 1]} : vector<11x64xf32> to vector<8x64xf32>
    %c2 = arith.constant 2 : index
    %c0_18 = arith.constant 0 : index
    %39 = vector.load %arg5[%c2, %c0_18] : memref<4x64xf32, #tpu.memory_space<vmem>>, vector<1x64xf32>
    %40 = vector.broadcast %39 : vector<1x64xf32> to vector<8x64xf32>
    %41 = arith.mulf %38, %40 : vector<8x64xf32>
    %42 = arith.addf %37, %41 : vector<8x64xf32>
    %43 = vector.extract_strided_slice %24 {offsets = [3, 0], sizes = [8, 64], strides = [1, 1]} : vector<11x64xf32> to vector<8x64xf32>
    %c3 = arith.constant 3 : index
    %c0_19 = arith.constant 0 : index
    %44 = vector.load %arg5[%c3, %c0_19] : memref<4x64xf32, #tpu.memory_space<vmem>>, vector<1x64xf32>
    %45 = vector.broadcast %44 : vector<1x64xf32> to vector<8x64xf32>
    %46 = arith.mulf %43, %45 : vector<8x64xf32>
    %47 = arith.addf %42, %46 : vector<8x64xf32>
    %c0_20 = arith.constant 0 : index
    %c0_21 = arith.constant 0 : index
    %48 = vector.load %arg6[%c0_20, %c0_21] : memref<1x64xf32, #tpu.memory_space<vmem>>, vector<1x64xf32>
    %49 = vector.broadcast %48 : vector<1x64xf32> to vector<8x64xf32>
    %50 = arith.addf %47, %49 : vector<8x64xf32>
    %51 = arith.negf %50 : vector<8x64xf32>
    %52 = math.exp %51 : vector<8x64xf32>
    %cst_22 = arith.constant 1.000000e+00 : f32
    %53 = vector.broadcast %cst_22 : f32 to vector<8x64xf32>
    %54 = arith.addf %53, %52 : vector<8x64xf32>
    %55 = arith.divf %53, %54 : vector<8x64xf32>
    %56 = arith.mulf %50, %55 : vector<8x64xf32>
    %57 = arith.truncf %56 : vector<8x64xf32> to vector<8x64xbf16>
    %c0_23 = arith.constant 0 : index
    %c0_24 = arith.constant 0 : index
    %58 = vector.load %arg7[%c0_23, %c0_24] : memref<64x96xbf16, #tpu.memory_space<vmem>>, vector<64x96xbf16>
    %cst_25 = arith.constant dense<0.000000e+00> : vector<8x96xf32>
    %59 = tpu.matmul %57, %58, %cst_25 {dimension_numbers = #tpu.dot_dimension_numbers<[1], [0], [0], [1], [0, 0, 1, 1], [], []>} : vector<8x64xbf16>, vector<64x96xbf16>, vector<8x96xf32> -> vector<8x96xf32>
    %60 = vector.extract_strided_slice %59 {offsets = [0, 0], sizes = [8, 16], strides = [1, 1]} : vector<8x96xf32> to vector<8x16xf32>
    %61 = vector.extract_strided_slice %59 {offsets = [0, 16], sizes = [8, 16], strides = [1, 1]} : vector<8x96xf32> to vector<8x16xf32>
    %62 = vector.shape_cast %61 : vector<8x16xf32> to vector<8x16x1xf32>
    %c0_26 = arith.constant 0 : index
    %c0_27 = arith.constant 0 : index
    %c0_28 = arith.constant 0 : index
    %63 = vector.load %arg16[%c0_26, %c0_27, %c0_28] : memref<8x16x1xf32, #tpu.memory_space<vmem>>, vector<8x16x1xf32>
    tpu.vector_store %arg16[%c0_26, %c0_27, %c0_28], %62 {strides = array<i32>} : memref<8x16x1xf32, #tpu.memory_space<vmem>>, vector<8x16x1xf32>,
    %64 = vector.extract_strided_slice %59 {offsets = [0, 32], sizes = [8, 64], strides = [1, 1]} : vector<8x96xf32> to vector<8x64xf32>
    %c0_29 = arith.constant 0 : index
    %c0_30 = arith.constant 0 : index
    %65 = vector.load %arg8[%c0_29, %c0_30] : memref<1x64xf32, #tpu.memory_space<vmem>>, vector<1x64xf32>
    %66 = vector.broadcast %65 : vector<1x64xf32> to vector<8x64xf32>
    %67 = arith.addf %64, %66 : vector<8x64xf32>
    %cst_31 = arith.constant 0.000000e+00 : f32
    %68 = vector.broadcast %cst_31 : f32 to vector<8x64xf32>
    %69 = arith.maximumf %67, %68 : vector<8x64xf32>
    %70 = vector.broadcast %cst_31 : f32 to vector<8x64xf32>
    %71 = arith.subf %67, %70 : vector<8x64xf32>
    %72 = arith.cmpf one, %71, %71 : vector<8x64xf32>
    %73 = vector.broadcast %cst_31 : f32 to vector<8x64xf32>
    %74 = arith.addf %67, %73 : vector<8x64xf32>
    %75 = math.absf %71 : vector<8x64xf32>
    %cst_32 = arith.constant 0.000000e+00 : f32
    %76 = vector.broadcast %cst_32 : f32 to vector<8x64xf32>
    %77 = arith.subf %76, %75 : vector<8x64xf32>
    %78 = math.exp %77 : vector<8x64xf32>
    %79 = math.log1p %78 : vector<8x64xf32>
    %80 = arith.addf %69, %79 : vector<8x64xf32>
    %81 = arith.select %72, %74, %80 : vector<8x64xi1>, vector<8x64xf32>
    %82 = vector.shape_cast %81 : vector<8x64xf32> to vector<8x1x64xf32>
    %c0_33 = arith.constant 0 : index
    %c0_34 = arith.constant 0 : index
    %83 = vector.load %arg9[%c0_33, %c0_34] : memref<16x64xf32, #tpu.memory_space<vmem>>, vector<16x64xf32>
    %84 = vector.shape_cast %83 : vector<16x64xf32> to vector<1x16x64xf32>
    %85 = vector.broadcast %82 : vector<8x1x64xf32> to vector<8x16x64xf32>
    %86 = vector.broadcast %84 : vector<1x16x64xf32> to vector<8x16x64xf32>
    %87 = arith.mulf %85, %86 : vector<8x16x64xf32>
    %88 = math.exp %87 : vector<8x16x64xf32>
    %c0_35 = arith.constant 0 : index
    %c0_36 = arith.constant 0 : index
    %c0_37 = arith.constant 0 : index
    %89 = vector.load %arg14[%c0_35, %c0_36, %c0_37] : memref<8x16x64xf32, #tpu.memory_space<vmem>>, vector<8x16x64xf32>
    tpu.vector_store %arg14[%c0_35, %c0_36, %c0_37], %88 {strides = array<i32>} : memref<8x16x64xf32, #tpu.memory_space<vmem>>, vector<8x16x64xf32>,
    %90 = vector.shape_cast %60 : vector<8x16xf32> to vector<8x16x1xf32>
    %91 = arith.mulf %81, %56 : vector<8x64xf32>
    %92 = vector.shape_cast %91 : vector<8x64xf32> to vector<8x1x64xf32>
    %93 = vector.broadcast %90 : vector<8x16x1xf32> to vector<8x16x64xf32>
    %94 = vector.broadcast %92 : vector<8x1x64xf32> to vector<8x16x64xf32>
    %95 = arith.mulf %93, %94 : vector<8x16x64xf32>
    %c0_38 = arith.constant 0 : index
    %c0_39 = arith.constant 0 : index
    %c0_40 = arith.constant 0 : index
    %96 = vector.load %arg15[%c0_38, %c0_39, %c0_40] : memref<8x16x64xf32, #tpu.memory_space<vmem>>, vector<8x16x64xf32>
    tpu.vector_store %arg15[%c0_38, %c0_39, %c0_40], %95 {strides = array<i32>} : memref<8x16x64xf32, #tpu.memory_space<vmem>>, vector<8x16x64xf32>,
    %c0_41 = arith.constant 0 : index
    %c0_42 = arith.constant 0 : index
    %97 = vector.load %arg18[%c0_41, %c0_42] : memref<16x64xf32, #tpu.memory_space<vmem>>, vector<16x64xf32>
    %c0_i32_43 = arith.constant 0 : i32
    %98 = arith.index_cast %c0_i32_43 : i32 to index
    %c0_44 = arith.constant 0 : index
    %c0_45 = arith.constant 0 : index
    %99 = vector.load %arg14[%98, %c0_44, %c0_45] : memref<8x16x64xf32, #tpu.memory_space<vmem>>, vector<1x16x64xf32>
    %100 = vector.shape_cast %99 : vector<1x16x64xf32> to vector<16x64xf32>
    %101 = arith.mulf %100, %97 : vector<16x64xf32>
    %102 = arith.index_cast %c0_i32_43 : i32 to index
    %c0_46 = arith.constant 0 : index
    %c0_47 = arith.constant 0 : index
    %103 = vector.load %arg15[%102, %c0_46, %c0_47] : memref<8x16x64xf32, #tpu.memory_space<vmem>>, vector<1x16x64xf32>
    %104 = vector.shape_cast %103 : vector<1x16x64xf32> to vector<16x64xf32>
    %105 = arith.addf %101, %104 : vector<16x64xf32>
    %106 = arith.index_cast %c0_i32_43 : i32 to index
    %c0_48 = arith.constant 0 : index
    %c0_49 = arith.constant 0 : index
    %107 = vector.load %arg16[%106, %c0_48, %c0_49] : memref<8x16x1xf32, #tpu.memory_space<vmem>>, vector<1x16x1xf32>
    %108 = vector.shape_cast %107 : vector<1x16x1xf32> to vector<16x1xf32>
    %109 = vector.broadcast %108 : vector<16x1xf32> to vector<16x64xf32>
    %110 = arith.mulf %105, %109 : vector<16x64xf32>
    %cst_50 = arith.constant dense<0.000000e+00> : vector<64xf32>
    %111 = vector.multi_reduction <add>, %110, %cst_50 [0] : vector<16x64xf32> to vector<64xf32>
    %112 = vector.shape_cast %111 : vector<64xf32> to vector<1x64xf32>
    %113 = arith.index_cast %c0_i32_43 : i32 to index
    %c0_51 = arith.constant 0 : index
    %c0_52 = arith.constant 0 : index
    %114 = vector.load %arg17[%113, %c0_51, %c0_52] : memref<8x1x64xf32, #tpu.memory_space<vmem>>, vector<1x1x64xf32>
    %115 = vector.shape_cast %114 : vector<1x1x64xf32> to vector<1x64xf32>
    %116 = vector.shape_cast %112 : vector<1x64xf32> to vector<1x1x64xf32>
    tpu.vector_store %arg17[%113, %c0_51, %c0_52], %116 {strides = array<i32>} : memref<8x1x64xf32, #tpu.memory_space<vmem>>, vector<1x1x64xf32>,
    %c1_i32 = arith.constant 1 : i32
    %117 = arith.index_cast %c1_i32 : i32 to index
    %c0_53 = arith.constant 0 : index
    %c0_54 = arith.constant 0 : index
    %118 = vector.load %arg14[%117, %c0_53, %c0_54] : memref<8x16x64xf32, #tpu.memory_space<vmem>>, vector<1x16x64xf32>
    %119 = vector.shape_cast %118 : vector<1x16x64xf32> to vector<16x64xf32>
    %120 = arith.mulf %119, %105 : vector<16x64xf32>
    %121 = arith.index_cast %c1_i32 : i32 to index
    %c0_55 = arith.constant 0 : index
    %c0_56 = arith.constant 0 : index
    %122 = vector.load %arg15[%121, %c0_55, %c0_56] : memref<8x16x64xf32, #tpu.memory_space<vmem>>, vector<1x16x64xf32>
    %123 = vector.shape_cast %122 : vector<1x16x64xf32> to vector<16x64xf32>
    %124 = arith.addf %120, %123 : vector<16x64xf32>
    %125 = arith.index_cast %c1_i32 : i32 to index
    %c0_57 = arith.constant 0 : index
    %c0_58 = arith.constant 0 : index
    %126 = vector.load %arg16[%125, %c0_57, %c0_58] : memref<8x16x1xf32, #tpu.memory_space<vmem>>, vector<1x16x1xf32>
    %127 = vector.shape_cast %126 : vector<1x16x1xf32> to vector<16x1xf32>
    %128 = vector.broadcast %127 : vector<16x1xf32> to vector<16x64xf32>
    %129 = arith.mulf %124, %128 : vector<16x64xf32>
    %cst_59 = arith.constant dense<0.000000e+00> : vector<64xf32>
    %130 = vector.multi_reduction <add>, %129, %cst_59 [0] : vector<16x64xf32> to vector<64xf32>
    %131 = vector.shape_cast %130 : vector<64xf32> to vector<1x64xf32>
    %132 = arith.index_cast %c1_i32 : i32 to index
    %c0_60 = arith.constant 0 : index
    %c0_61 = arith.constant 0 : index
    %133 = vector.load %arg17[%132, %c0_60, %c0_61] : memref<8x1x64xf32, #tpu.memory_space<vmem>>, vector<1x1x64xf32>
    %134 = vector.shape_cast %133 : vector<1x1x64xf32> to vector<1x64xf32>
    %135 = vector.shape_cast %131 : vector<1x64xf32> to vector<1x1x64xf32>
    tpu.vector_store %arg17[%132, %c0_60, %c0_61], %135 {strides = array<i32>} : memref<8x1x64xf32, #tpu.memory_space<vmem>>, vector<1x1x64xf32>,
    %c2_i32 = arith.constant 2 : i32
    %136 = arith.index_cast %c2_i32 : i32 to index
    %c0_62 = arith.constant 0 : index
    %c0_63 = arith.constant 0 : index
    %137 = vector.load %arg14[%136, %c0_62, %c0_63] : memref<8x16x64xf32, #tpu.memory_space<vmem>>, vector<1x16x64xf32>
    %138 = vector.shape_cast %137 : vector<1x16x64xf32> to vector<16x64xf32>
    %139 = arith.mulf %138, %124 : vector<16x64xf32>
    %140 = arith.index_cast %c2_i32 : i32 to index
    %c0_64 = arith.constant 0 : index
    %c0_65 = arith.constant 0 : index
    %141 = vector.load %arg15[%140, %c0_64, %c0_65] : memref<8x16x64xf32, #tpu.memory_space<vmem>>, vector<1x16x64xf32>
    %142 = vector.shape_cast %141 : vector<1x16x64xf32> to vector<16x64xf32>
    %143 = arith.addf %139, %142 : vector<16x64xf32>
    %144 = arith.index_cast %c2_i32 : i32 to index
    %c0_66 = arith.constant 0 : index
    %c0_67 = arith.constant 0 : index
    %145 = vector.load %arg16[%144, %c0_66, %c0_67] : memref<8x16x1xf32, #tpu.memory_space<vmem>>, vector<1x16x1xf32>
    %146 = vector.shape_cast %145 : vector<1x16x1xf32> to vector<16x1xf32>
    %147 = vector.broadcast %146 : vector<16x1xf32> to vector<16x64xf32>
    %148 = arith.mulf %143, %147 : vector<16x64xf32>
    %cst_68 = arith.constant dense<0.000000e+00> : vector<64xf32>
    %149 = vector.multi_reduction <add>, %148, %cst_68 [0] : vector<16x64xf32> to vector<64xf32>
    %150 = vector.shape_cast %149 : vector<64xf32> to vector<1x64xf32>
    %151 = arith.index_cast %c2_i32 : i32 to index
    %c0_69 = arith.constant 0 : index
    %c0_70 = arith.constant 0 : index
    %152 = vector.load %arg17[%151, %c0_69, %c0_70] : memref<8x1x64xf32, #tpu.memory_space<vmem>>, vector<1x1x64xf32>
    %153 = vector.shape_cast %152 : vector<1x1x64xf32> to vector<1x64xf32>
    %154 = vector.shape_cast %150 : vector<1x64xf32> to vector<1x1x64xf32>
    tpu.vector_store %arg17[%151, %c0_69, %c0_70], %154 {strides = array<i32>} : memref<8x1x64xf32, #tpu.memory_space<vmem>>, vector<1x1x64xf32>,
    %c3_i32 = arith.constant 3 : i32
    %155 = arith.index_cast %c3_i32 : i32 to index
    %c0_71 = arith.constant 0 : index
    %c0_72 = arith.constant 0 : index
    %156 = vector.load %arg14[%155, %c0_71, %c0_72] : memref<8x16x64xf32, #tpu.memory_space<vmem>>, vector<1x16x64xf32>
    %157 = vector.shape_cast %156 : vector<1x16x64xf32> to vector<16x64xf32>
    %158 = arith.mulf %157, %143 : vector<16x64xf32>
    %159 = arith.index_cast %c3_i32 : i32 to index
    %c0_73 = arith.constant 0 : index
    %c0_74 = arith.constant 0 : index
    %160 = vector.load %arg15[%159, %c0_73, %c0_74] : memref<8x16x64xf32, #tpu.memory_space<vmem>>, vector<1x16x64xf32>
    %161 = vector.shape_cast %160 : vector<1x16x64xf32> to vector<16x64xf32>
    %162 = arith.addf %158, %161 : vector<16x64xf32>
    %163 = arith.index_cast %c3_i32 : i32 to index
    %c0_75 = arith.constant 0 : index
    %c0_76 = arith.constant 0 : index
    %164 = vector.load %arg16[%163, %c0_75, %c0_76] : memref<8x16x1xf32, #tpu.memory_space<vmem>>, vector<1x16x1xf32>
    %165 = vector.shape_cast %164 : vector<1x16x1xf32> to vector<16x1xf32>
    %166 = vector.broadcast %165 : vector<16x1xf32> to vector<16x64xf32>
    %167 = arith.mulf %162, %166 : vector<16x64xf32>
    %cst_77 = arith.constant dense<0.000000e+00> : vector<64xf32>
    %168 = vector.multi_reduction <add>, %167, %cst_77 [0] : vector<16x64xf32> to vector<64xf32>
    %169 = vector.shape_cast %168 : vector<64xf32> to vector<1x64xf32>
    %170 = arith.index_cast %c3_i32 : i32 to index
    %c0_78 = arith.constant 0 : index
    %c0_79 = arith.constant 0 : index
    %171 = vector.load %arg17[%170, %c0_78, %c0_79] : memref<8x1x64xf32, #tpu.memory_space<vmem>>, vector<1x1x64xf32>
    %172 = vector.shape_cast %171 : vector<1x1x64xf32> to vector<1x64xf32>
    %173 = vector.shape_cast %169 : vector<1x64xf32> to vector<1x1x64xf32>
    tpu.vector_store %arg17[%170, %c0_78, %c0_79], %173 {strides = array<i32>} : memref<8x1x64xf32, #tpu.memory_space<vmem>>, vector<1x1x64xf32>,
    %c4_i32 = arith.constant 4 : i32
    %174 = arith.index_cast %c4_i32 : i32 to index
    %c0_80 = arith.constant 0 : index
    %c0_81 = arith.constant 0 : index
    %175 = vector.load %arg14[%174, %c0_80, %c0_81] : memref<8x16x64xf32, #tpu.memory_space<vmem>>, vector<1x16x64xf32>
    %176 = vector.shape_cast %175 : vector<1x16x64xf32> to vector<16x64xf32>
    %177 = arith.mulf %176, %162 : vector<16x64xf32>
    %178 = arith.index_cast %c4_i32 : i32 to index
    %c0_82 = arith.constant 0 : index
    %c0_83 = arith.constant 0 : index
    %179 = vector.load %arg15[%178, %c0_82, %c0_83] : memref<8x16x64xf32, #tpu.memory_space<vmem>>, vector<1x16x64xf32>
    %180 = vector.shape_cast %179 : vector<1x16x64xf32> to vector<16x64xf32>
    %181 = arith.addf %177, %180 : vector<16x64xf32>
    %182 = arith.index_cast %c4_i32 : i32 to index
    %c0_84 = arith.constant 0 : index
    %c0_85 = arith.constant 0 : index
    %183 = vector.load %arg16[%182, %c0_84, %c0_85] : memref<8x16x1xf32, #tpu.memory_space<vmem>>, vector<1x16x1xf32>
    %184 = vector.shape_cast %183 : vector<1x16x1xf32> to vector<16x1xf32>
    %185 = vector.broadcast %184 : vector<16x1xf32> to vector<16x64xf32>
    %186 = arith.mulf %181, %185 : vector<16x64xf32>
    %cst_86 = arith.constant dense<0.000000e+00> : vector<64xf32>
    %187 = vector.multi_reduction <add>, %186, %cst_86 [0] : vector<16x64xf32> to vector<64xf32>
    %188 = vector.shape_cast %187 : vector<64xf32> to vector<1x64xf32>
    %189 = arith.index_cast %c4_i32 : i32 to index
    %c0_87 = arith.constant 0 : index
    %c0_88 = arith.constant 0 : index
    %190 = vector.load %arg17[%189, %c0_87, %c0_88] : memref<8x1x64xf32, #tpu.memory_space<vmem>>, vector<1x1x64xf32>
    %191 = vector.shape_cast %190 : vector<1x1x64xf32> to vector<1x64xf32>
    %192 = vector.shape_cast %188 : vector<1x64xf32> to vector<1x1x64xf32>
    tpu.vector_store %arg17[%189, %c0_87, %c0_88], %192 {strides = array<i32>} : memref<8x1x64xf32, #tpu.memory_space<vmem>>, vector<1x1x64xf32>,
    %c5_i32 = arith.constant 5 : i32
    %193 = arith.index_cast %c5_i32 : i32 to index
    %c0_89 = arith.constant 0 : index
    %c0_90 = arith.constant 0 : index
    %194 = vector.load %arg14[%193, %c0_89, %c0_90] : memref<8x16x64xf32, #tpu.memory_space<vmem>>, vector<1x16x64xf32>
    %195 = vector.shape_cast %194 : vector<1x16x64xf32> to vector<16x64xf32>
    %196 = arith.mulf %195, %181 : vector<16x64xf32>
    %197 = arith.index_cast %c5_i32 : i32 to index
    %c0_91 = arith.constant 0 : index
    %c0_92 = arith.constant 0 : index
    %198 = vector.load %arg15[%197, %c0_91, %c0_92] : memref<8x16x64xf32, #tpu.memory_space<vmem>>, vector<1x16x64xf32>
    %199 = vector.shape_cast %198 : vector<1x16x64xf32> to vector<16x64xf32>
    %200 = arith.addf %196, %199 : vector<16x64xf32>
    %201 = arith.index_cast %c5_i32 : i32 to index
    %c0_93 = arith.constant 0 : index
    %c0_94 = arith.constant 0 : index
    %202 = vector.load %arg16[%201, %c0_93, %c0_94] : memref<8x16x1xf32, #tpu.memory_space<vmem>>, vector<1x16x1xf32>
    %203 = vector.shape_cast %202 : vector<1x16x1xf32> to vector<16x1xf32>
    %204 = vector.broadcast %203 : vector<16x1xf32> to vector<16x64xf32>
    %205 = arith.mulf %200, %204 : vector<16x64xf32>
    %cst_95 = arith.constant dense<0.000000e+00> : vector<64xf32>
    %206 = vector.multi_reduction <add>, %205, %cst_95 [0] : vector<16x64xf32> to vector<64xf32>
    %207 = vector.shape_cast %206 : vector<64xf32> to vector<1x64xf32>
    %208 = arith.index_cast %c5_i32 : i32 to index
    %c0_96 = arith.constant 0 : index
    %c0_97 = arith.constant 0 : index
    %209 = vector.load %arg17[%208, %c0_96, %c0_97] : memref<8x1x64xf32, #tpu.memory_space<vmem>>, vector<1x1x64xf32>
    %210 = vector.shape_cast %209 : vector<1x1x64xf32> to vector<1x64xf32>
    %211 = vector.shape_cast %207 : vector<1x64xf32> to vector<1x1x64xf32>
    tpu.vector_store %arg17[%208, %c0_96, %c0_97], %211 {strides = array<i32>} : memref<8x1x64xf32, #tpu.memory_space<vmem>>, vector<1x1x64xf32>,
    %c6_i32 = arith.constant 6 : i32
    %212 = arith.index_cast %c6_i32 : i32 to index
    %c0_98 = arith.constant 0 : index
    %c0_99 = arith.constant 0 : index
    %213 = vector.load %arg14[%212, %c0_98, %c0_99] : memref<8x16x64xf32, #tpu.memory_space<vmem>>, vector<1x16x64xf32>
    %214 = vector.shape_cast %213 : vector<1x16x64xf32> to vector<16x64xf32>
    %215 = arith.mulf %214, %200 : vector<16x64xf32>
    %216 = arith.index_cast %c6_i32 : i32 to index
    %c0_100 = arith.constant 0 : index
    %c0_101 = arith.constant 0 : index
    %217 = vector.load %arg15[%216, %c0_100, %c0_101] : memref<8x16x64xf32, #tpu.memory_space<vmem>>, vector<1x16x64xf32>
    %218 = vector.shape_cast %217 : vector<1x16x64xf32> to vector<16x64xf32>
    %219 = arith.addf %215, %218 : vector<16x64xf32>
    %220 = arith.index_cast %c6_i32 : i32 to index
    %c0_102 = arith.constant 0 : index
    %c0_103 = arith.constant 0 : index
    %221 = vector.load %arg16[%220, %c0_102, %c0_103] : memref<8x16x1xf32, #tpu.memory_space<vmem>>, vector<1x16x1xf32>
    %222 = vector.shape_cast %221 : vector<1x16x1xf32> to vector<16x1xf32>
    %223 = vector.broadcast %222 : vector<16x1xf32> to vector<16x64xf32>
    %224 = arith.mulf %219, %223 : vector<16x64xf32>
    %cst_104 = arith.constant dense<0.000000e+00> : vector<64xf32>
    %225 = vector.multi_reduction <add>, %224, %cst_104 [0] : vector<16x64xf32> to vector<64xf32>
    %226 = vector.shape_cast %225 : vector<64xf32> to vector<1x64xf32>
    %227 = arith.index_cast %c6_i32 : i32 to index
    %c0_105 = arith.constant 0 : index
    %c0_106 = arith.constant 0 : index
    %228 = vector.load %arg17[%227, %c0_105, %c0_106] : memref<8x1x64xf32, #tpu.memory_space<vmem>>, vector<1x1x64xf32>
    %229 = vector.shape_cast %228 : vector<1x1x64xf32> to vector<1x64xf32>
    %230 = vector.shape_cast %226 : vector<1x64xf32> to vector<1x1x64xf32>
    tpu.vector_store %arg17[%227, %c0_105, %c0_106], %230 {strides = array<i32>} : memref<8x1x64xf32, #tpu.memory_space<vmem>>, vector<1x1x64xf32>,
    %c7_i32 = arith.constant 7 : i32
    %231 = arith.index_cast %c7_i32 : i32 to index
    %c0_107 = arith.constant 0 : index
    %c0_108 = arith.constant 0 : index
    %232 = vector.load %arg14[%231, %c0_107, %c0_108] : memref<8x16x64xf32, #tpu.memory_space<vmem>>, vector<1x16x64xf32>
    %233 = vector.shape_cast %232 : vector<1x16x64xf32> to vector<16x64xf32>
    %234 = arith.mulf %233, %219 : vector<16x64xf32>
    %235 = arith.index_cast %c7_i32 : i32 to index
    %c0_109 = arith.constant 0 : index
    %c0_110 = arith.constant 0 : index
    %236 = vector.load %arg15[%235, %c0_109, %c0_110] : memref<8x16x64xf32, #tpu.memory_space<vmem>>, vector<1x16x64xf32>
    %237 = vector.shape_cast %236 : vector<1x16x64xf32> to vector<16x64xf32>
    %238 = arith.addf %234, %237 : vector<16x64xf32>
    %239 = arith.index_cast %c7_i32 : i32 to index
    %c0_111 = arith.constant 0 : index
    %c0_112 = arith.constant 0 : index
    %240 = vector.load %arg16[%239, %c0_111, %c0_112] : memref<8x16x1xf32, #tpu.memory_space<vmem>>, vector<1x16x1xf32>
    %241 = vector.shape_cast %240 : vector<1x16x1xf32> to vector<16x1xf32>
    %242 = vector.broadcast %241 : vector<16x1xf32> to vector<16x64xf32>
    %243 = arith.mulf %238, %242 : vector<16x64xf32>
    %cst_113 = arith.constant dense<0.000000e+00> : vector<64xf32>
    %244 = vector.multi_reduction <add>, %243, %cst_113 [0] : vector<16x64xf32> to vector<64xf32>
    %245 = vector.shape_cast %244 : vector<64xf32> to vector<1x64xf32>
    %246 = arith.index_cast %c7_i32 : i32 to index
    %c0_114 = arith.constant 0 : index
    %c0_115 = arith.constant 0 : index
    %247 = vector.load %arg17[%246, %c0_114, %c0_115] : memref<8x1x64xf32, #tpu.memory_space<vmem>>, vector<1x1x64xf32>
    %248 = vector.shape_cast %247 : vector<1x1x64xf32> to vector<1x64xf32>
    %249 = vector.shape_cast %245 : vector<1x64xf32> to vector<1x1x64xf32>
    tpu.vector_store %arg17[%246, %c0_114, %c0_115], %249 {strides = array<i32>} : memref<8x1x64xf32, #tpu.memory_space<vmem>>, vector<1x1x64xf32>,
    %c8_i32 = arith.constant 8 : i32
    %c0_116 = arith.constant 0 : index
    %c0_117 = arith.constant 0 : index
    %250 = vector.load %arg18[%c0_116, %c0_117] : memref<16x64xf32, #tpu.memory_space<vmem>>, vector<16x64xf32>
    tpu.vector_store %arg18[%c0_116, %c0_117], %238 {strides = array<i32>} : memref<16x64xf32, #tpu.memory_space<vmem>>, vector<16x64xf32>,
    %c0_118 = arith.constant 0 : index
    %c0_119 = arith.constant 0 : index
    %c0_120 = arith.constant 0 : index
    %251 = vector.load %arg17[%c0_118, %c0_119, %c0_120] : memref<8x1x64xf32, #tpu.memory_space<vmem>>, vector<8x1x64xf32>
    %252 = vector.shape_cast %251 : vector<8x1x64xf32> to vector<8x64xf32>
    %c0_121 = arith.constant 0 : index
    %c0_122 = arith.constant 0 : index
    %253 = vector.load %arg10[%c0_121, %c0_122] : memref<1x64xf32, #tpu.memory_space<vmem>>, vector<1x64xf32>
    %254 = vector.broadcast %253 : vector<1x64xf32> to vector<8x64xf32>
    %255 = arith.mulf %56, %254 : vector<8x64xf32>
    %256 = arith.addf %252, %255 : vector<8x64xf32>
    %257 = arith.negf %22 : vector<8x64xf32>
    %258 = math.exp %257 : vector<8x64xf32>
    %cst_123 = arith.constant 1.000000e+00 : f32
    %259 = vector.broadcast %cst_123 : f32 to vector<8x64xf32>
    %260 = arith.addf %259, %258 : vector<8x64xf32>
    %261 = arith.divf %259, %260 : vector<8x64xf32>
    %262 = arith.mulf %22, %261 : vector<8x64xf32>
    %263 = arith.mulf %256, %262 : vector<8x64xf32>
    %264 = arith.truncf %263 : vector<8x64xf32> to vector<8x64xbf16>
    %c0_124 = arith.constant 0 : index
    %c0_125 = arith.constant 0 : index
    %265 = vector.load %arg11[%c0_124, %c0_125] : memref<64x32xbf16, #tpu.memory_space<vmem>>, vector<64x32xbf16>
    %cst_126 = arith.constant dense<0.000000e+00> : vector<8x32xf32>
    %266 = tpu.matmul %264, %265, %cst_126 {dimension_numbers = #tpu.dot_dimension_numbers<[1], [0], [0], [1], [0, 0, 1, 1], [], []>} : vector<8x64xbf16>, vector<64x32xbf16>, vector<8x32xf32> -> vector<8x32xf32>
    %c0_127 = arith.constant 0 : index
    %c0_128 = arith.constant 0 : index
    %c0_129 = arith.constant 0 : index
    %267 = vector.load %arg12[%c0_127, %c0_128, %c0_129] : memref<1x8x32xf32, #tpu.memory_space<vmem>>, vector<1x8x32xf32>
    %268 = vector.shape_cast %267 : vector<1x8x32xf32> to vector<8x32xf32>
    %269 = vector.shape_cast %266 : vector<8x32xf32> to vector<1x8x32xf32>
    tpu.vector_store %arg12[%c0_127, %c0_128, %c0_129], %269 {strides = array<i32>} : memref<1x8x32xf32, #tpu.memory_space<vmem>>, vector<1x8x32xf32>,
    %c0_130 = arith.constant 0 : index
    %c0_131 = arith.constant 0 : index
    %c0_132 = arith.constant 0 : index
    %270 = vector.load %arg13[%c0_130, %c0_131, %c0_132] : memref<1x8x32xf32, #tpu.memory_space<vmem>>, vector<1x8x32xf32>
    %271 = vector.shape_cast %270 : vector<1x8x32xf32> to vector<8x32xf32>
    %272 = vector.shape_cast %1 : vector<8x32xf32> to vector<1x8x32xf32>
    tpu.vector_store %arg13[%c0_130, %c0_131, %c0_132], %272 {strides = array<i32>} : memref<1x8x32xf32, #tpu.memory_space<vmem>>, vector<1x8x32xf32>,
    return
  }
  func.func @transform_0(%arg0: i32, %arg1: i32) -> (i32, i32, i32) {
    %c0_i32 = arith.constant 0 : i32
    %c0_i32_0 = arith.constant 0 : i32
    return %arg0, %arg1, %c0_i32 : i32, i32, i32
  }
  func.func @transform_1(%arg0: i32, %arg1: i32) -> (i32, i32) {
    %c0_i32 = arith.constant 0 : i32
    %c0_i32_0 = arith.constant 0 : i32
    %c0_i32_1 = arith.constant 0 : i32
    return %c0_i32, %c0_i32_0 : i32, i32
  }
  func.func @transform_2(%arg0: i32, %arg1: i32) -> (i32, i32) {
    %c0_i32 = arith.constant 0 : i32
    %c0_i32_0 = arith.constant 0 : i32
    %c0_i32_1 = arith.constant 0 : i32
    return %c0_i32, %c0_i32_0 : i32, i32
  }
  func.func @transform_3(%arg0: i32, %arg1: i32) -> (i32, i32) {
    %c0_i32 = arith.constant 0 : i32
    %c0_i32_0 = arith.constant 0 : i32
    %c0_i32_1 = arith.constant 0 : i32
    return %c0_i32, %c0_i32_0 : i32, i32
  }
  func.func @transform_4(%arg0: i32, %arg1: i32) -> (i32, i32) {
    %c0_i32 = arith.constant 0 : i32
    %c0_i32_0 = arith.constant 0 : i32
    %c0_i32_1 = arith.constant 0 : i32
    return %c0_i32, %c0_i32_0 : i32, i32
  }
  func.func @transform_5(%arg0: i32, %arg1: i32) -> (i32, i32) {
    %c0_i32 = arith.constant 0 : i32
    %c0_i32_0 = arith.constant 0 : i32
    %c0_i32_1 = arith.constant 0 : i32
    return %c0_i32, %c0_i32_0 : i32, i32
  }
  func.func @transform_6(%arg0: i32, %arg1: i32) -> (i32, i32) {
    %c0_i32 = arith.constant 0 : i32
    %c0_i32_0 = arith.constant 0 : i32
    %c0_i32_1 = arith.constant 0 : i32
    return %c0_i32, %c0_i32_0 : i32, i32
  }
  func.func @transform_7(%arg0: i32, %arg1: i32) -> (i32, i32) {
    %c0_i32 = arith.constant 0 : i32
    %c0_i32_0 = arith.constant 0 : i32
    %c0_i32_1 = arith.constant 0 : i32
    return %c0_i32, %c0_i32_0 : i32, i32
  }
  func.func @transform_8(%arg0: i32, %arg1: i32) -> (i32, i32) {
    %c0_i32 = arith.constant 0 : i32
    %c0_i32_0 = arith.constant 0 : i32
    %c0_i32_1 = arith.constant 0 : i32
    return %c0_i32, %c0_i32_0 : i32, i32
  }
  func.func @transform_9(%arg0: i32, %arg1: i32) -> (i32, i32) {
    %c0_i32 = arith.constant 0 : i32
    %c0_i32_0 = arith.constant 0 : i32
    %c0_i32_1 = arith.constant 0 : i32
    return %c0_i32, %c0_i32_0 : i32, i32
  }
  func.func @transform_10(%arg0: i32, %arg1: i32) -> (i32, i32, i32) {
    %c0_i32 = arith.constant 0 : i32
    %c0_i32_0 = arith.constant 0 : i32
    return %arg0, %arg1, %c0_i32 : i32, i32, i32
  }
  func.func @transform_11(%arg0: i32, %arg1: i32) -> (i32, i32, i32) {
    %c0_i32 = arith.constant 0 : i32
    %c0_i32_0 = arith.constant 0 : i32
    return %arg0, %arg1, %c0_i32 : i32, i32, i32
  }
}

module attributes {stable_mosaic.version = 11 : i64} {
  func.func @_head_kernel(%arg0: i32, %arg1: memref<1x4x64xf32, #tpu.memory_space<vmem>>, %arg2: memref<1x4x64xf32, #tpu.memory_space<vmem>>, %arg3: memref<1x64xf32, #tpu.memory_space<vmem>>, %arg4: memref<64x8xbf16, #tpu.memory_space<vmem>>, %arg5: memref<1x8xf32, #tpu.memory_space<vmem>>, %arg6: memref<1x4x1xf32, #tpu.memory_space<vmem>>, %arg7: memref<1x4x1xf32, #tpu.memory_space<vmem>>, %arg8: memref<1x4x8xf32, #tpu.memory_space<vmem>>) attributes {dimension_semantics = [#tpu.dimension_semantics<parallel>], iteration_bounds = array<i64: 2>, scalar_prefetch = 0 : i64, scratch_operands = 0 : i64, tpu.core_type = #tpu.core_type<tc>, window_params = [{transform_indices = @transform_0, window_bounds = array<i64: 1, 4, 64>}, {transform_indices = @transform_1, window_bounds = array<i64: 1, 4, 64>}, {pipeline_mode = #tpu.pipeline_mode<synchronous>, transform_indices = @transform_2, window_bounds = array<i64: 1, 64>}, {pipeline_mode = #tpu.pipeline_mode<synchronous>, transform_indices = @transform_3, window_bounds = array<i64: 64, 8>}, {pipeline_mode = #tpu.pipeline_mode<synchronous>, transform_indices = @transform_4, window_bounds = array<i64: 1, 8>}, {transform_indices = @transform_5, window_bounds = array<i64: 1, 4, 1>}, {transform_indices = @transform_6, window_bounds = array<i64: 1, 4, 1>}, {transform_indices = @transform_7, window_bounds = array<i64: 1, 4, 8>}]} {
    %c0 = arith.constant 0 : index
    %c0_0 = arith.constant 0 : index
    %c0_1 = arith.constant 0 : index
    %0 = vector.load %arg1[%c0, %c0_0, %c0_1] : memref<1x4x64xf32, #tpu.memory_space<vmem>>, vector<1x4x64xf32>
    %1 = vector.shape_cast %0 : vector<1x4x64xf32> to vector<4x64xf32>
    %c0_2 = arith.constant 0 : index
    %c0_3 = arith.constant 0 : index
    %c0_4 = arith.constant 0 : index
    %2 = vector.load %arg2[%c0_2, %c0_3, %c0_4] : memref<1x4x64xf32, #tpu.memory_space<vmem>>, vector<1x4x64xf32>
    %3 = vector.shape_cast %2 : vector<1x4x64xf32> to vector<4x64xf32>
    %4 = arith.addf %1, %3 : vector<4x64xf32>
    %5 = vector.extract_strided_slice %4 {offsets = [0, 0], sizes = [4, 32], strides = [1, 1]} : vector<4x64xf32> to vector<4x32xf32>
    %6 = arith.mulf %5, %5 : vector<4x32xf32>
    %cst = arith.constant dense<0.000000e+00> : vector<4xf32>
    %7 = vector.multi_reduction <add>, %6, %cst [1] : vector<4x32xf32> to vector<4xf32>
    %8 = vector.shape_cast %7 : vector<4xf32> to vector<4x1xf32>
    %cst_5 = arith.constant 3.200000e+01 : f32
    %9 = vector.broadcast %cst_5 : f32 to vector<4x1xf32>
    %10 = arith.divf %8, %9 : vector<4x1xf32>
    %cst_6 = arith.constant 9.99999974E-6 : f32
    %11 = vector.broadcast %cst_6 : f32 to vector<4x1xf32>
    %12 = arith.addf %10, %11 : vector<4x1xf32>
    %13 = math.rsqrt %12 : vector<4x1xf32>
    %14 = vector.broadcast %13 : vector<4x1xf32> to vector<4x32xf32>
    %15 = arith.mulf %5, %14 : vector<4x32xf32>
    %16 = vector.extract_strided_slice %4 {offsets = [0, 32], sizes = [4, 32], strides = [1, 1]} : vector<4x64xf32> to vector<4x32xf32>
    %17 = arith.mulf %16, %16 : vector<4x32xf32>
    %cst_7 = arith.constant dense<0.000000e+00> : vector<4xf32>
    %18 = vector.multi_reduction <add>, %17, %cst_7 [1] : vector<4x32xf32> to vector<4xf32>
    %19 = vector.shape_cast %18 : vector<4xf32> to vector<4x1xf32>
    %cst_8 = arith.constant 3.200000e+01 : f32
    %20 = vector.broadcast %cst_8 : f32 to vector<4x1xf32>
    %21 = arith.divf %19, %20 : vector<4x1xf32>
    %cst_9 = arith.constant 9.99999974E-6 : f32
    %22 = vector.broadcast %cst_9 : f32 to vector<4x1xf32>
    %23 = arith.addf %21, %22 : vector<4x1xf32>
    %24 = math.rsqrt %23 : vector<4x1xf32>
    %25 = vector.broadcast %24 : vector<4x1xf32> to vector<4x32xf32>
    %26 = arith.mulf %16, %25 : vector<4x32xf32>
    %27 = tpu.concatenate %15, %26 in 1 : vector<4x32xf32>, vector<4x32xf32> -> vector<4x64xf32>
    %c0_10 = arith.constant 0 : index
    %c0_11 = arith.constant 0 : index
    %28 = vector.load %arg3[%c0_10, %c0_11] : memref<1x64xf32, #tpu.memory_space<vmem>>, vector<1x64xf32>
    %29 = vector.broadcast %28 : vector<1x64xf32> to vector<4x64xf32>
    %30 = arith.mulf %27, %29 : vector<4x64xf32>
    %31 = arith.truncf %30 : vector<4x64xf32> to vector<4x64xbf16>
    %c0_12 = arith.constant 0 : index
    %c0_13 = arith.constant 0 : index
    %32 = vector.load %arg4[%c0_12, %c0_13] : memref<64x8xbf16, #tpu.memory_space<vmem>>, vector<64x8xbf16>
    %cst_14 = arith.constant dense<0.000000e+00> : vector<4x8xf32>
    %33 = tpu.matmul %31, %32, %cst_14 {dimension_numbers = #tpu.dot_dimension_numbers<[1], [0], [0], [1], [0, 0, 1, 1], [], []>} : vector<4x64xbf16>, vector<64x8xbf16>, vector<4x8xf32> -> vector<4x8xf32>
    %c0_15 = arith.constant 0 : index
    %c0_16 = arith.constant 0 : index
    %34 = vector.load %arg5[%c0_15, %c0_16] : memref<1x8xf32, #tpu.memory_space<vmem>>, vector<1x8xf32>
    %35 = vector.broadcast %34 : vector<1x8xf32> to vector<4x8xf32>
    %36 = arith.addf %33, %35 : vector<4x8xf32>
    %c0_17 = arith.constant 0 : index
    %c0_18 = arith.constant 0 : index
    %c0_19 = arith.constant 0 : index
    %37 = vector.load %arg6[%c0_17, %c0_18, %c0_19] : memref<1x4x1xf32, #tpu.memory_space<vmem>>, vector<1x4x1xf32>
    %38 = vector.shape_cast %37 : vector<1x4x1xf32> to vector<4x1xf32>
    %39 = vector.broadcast %38 : vector<4x1xf32> to vector<4x8xf32>
    %40 = arith.mulf %36, %39 : vector<4x8xf32>
    %c0_20 = arith.constant 0 : index
    %c0_21 = arith.constant 0 : index
    %c0_22 = arith.constant 0 : index
    %41 = vector.load %arg7[%c0_20, %c0_21, %c0_22] : memref<1x4x1xf32, #tpu.memory_space<vmem>>, vector<1x4x1xf32>
    %42 = vector.shape_cast %41 : vector<1x4x1xf32> to vector<4x1xf32>
    %43 = vector.broadcast %42 : vector<4x1xf32> to vector<4x8xf32>
    %44 = arith.addf %40, %43 : vector<4x8xf32>
    %c0_23 = arith.constant 0 : index
    %c0_24 = arith.constant 0 : index
    %c0_25 = arith.constant 0 : index
    %45 = vector.load %arg8[%c0_23, %c0_24, %c0_25] : memref<1x4x8xf32, #tpu.memory_space<vmem>>, vector<1x4x8xf32>
    %46 = vector.shape_cast %45 : vector<1x4x8xf32> to vector<4x8xf32>
    %47 = vector.shape_cast %44 : vector<4x8xf32> to vector<1x4x8xf32>
    tpu.vector_store %arg8[%c0_23, %c0_24, %c0_25], %47 {strides = array<i32>} : memref<1x4x8xf32, #tpu.memory_space<vmem>>, vector<1x4x8xf32>,
    return
  }
  func.func @transform_0(%arg0: i32) -> (i32, i32, i32) {
    %c0_i32 = arith.constant 0 : i32
    %c0_i32_0 = arith.constant 0 : i32
    %c0_i32_1 = arith.constant 0 : i32
    return %arg0, %c0_i32, %c0_i32_0 : i32, i32, i32
  }
  func.func @transform_1(%arg0: i32) -> (i32, i32, i32) {
    %c0_i32 = arith.constant 0 : i32
    %c0_i32_0 = arith.constant 0 : i32
    %c0_i32_1 = arith.constant 0 : i32
    return %arg0, %c0_i32, %c0_i32_0 : i32, i32, i32
  }
  func.func @transform_2(%arg0: i32) -> (i32, i32) {
    %c0_i32 = arith.constant 0 : i32
    %c0_i32_0 = arith.constant 0 : i32
    %c0_i32_1 = arith.constant 0 : i32
    return %c0_i32, %c0_i32_0 : i32, i32
  }
  func.func @transform_3(%arg0: i32) -> (i32, i32) {
    %c0_i32 = arith.constant 0 : i32
    %c0_i32_0 = arith.constant 0 : i32
    %c0_i32_1 = arith.constant 0 : i32
    return %c0_i32, %c0_i32_0 : i32, i32
  }
  func.func @transform_4(%arg0: i32) -> (i32, i32) {
    %c0_i32 = arith.constant 0 : i32
    %c0_i32_0 = arith.constant 0 : i32
    %c0_i32_1 = arith.constant 0 : i32
    return %c0_i32, %c0_i32_0 : i32, i32
  }
  func.func @transform_5(%arg0: i32) -> (i32, i32, i32) {
    %c0_i32 = arith.constant 0 : i32
    %c0_i32_0 = arith.constant 0 : i32
    %c0_i32_1 = arith.constant 0 : i32
    return %arg0, %c0_i32, %c0_i32_0 : i32, i32, i32
  }
  func.func @transform_6(%arg0: i32) -> (i32, i32, i32) {
    %c0_i32 = arith.constant 0 : i32
    %c0_i32_0 = arith.constant 0 : i32
    %c0_i32_1 = arith.constant 0 : i32
    return %arg0, %c0_i32, %c0_i32_0 : i32, i32, i32
  }
  func.func @transform_7(%arg0: i32) -> (i32, i32, i32) {
    %c0_i32 = arith.constant 0 : i32
    %c0_i32_0 = arith.constant 0 : i32
    %c0_i32_1 = arith.constant 0 : i32
    return %arg0, %c0_i32, %c0_i32_0 : i32, i32, i32
  }
}

</mosaic_0001>

<llo_original>
// kernel: _lambda_.7
$region0: #{_lambda_.7}
  #allocation0 [shape = 'u32[]', space=smem, size = 0x4, offset = 0x4, fixed_abs, tag = 'smem constant byte address 0x4 - core index']
  #allocation1 [shape = 'u32[144,128]{1,0:T(1,128)}', space=vmem, size = 0x12000, scoped, tag = 'internal scratch']
  %s0 = inlined_call_operand.vmem [shape: f32[2,4,64], index: 0, kind: input, shape index: {}]
  %s1 = inlined_call_operand.vmem [shape: f32[2,4,64], index: 1, kind: input, shape index: {}]
  %s2 = inlined_call_operand.vmem [shape: f32[1,64], index: 2, kind: input, shape index: {}]
  %s3 = inlined_call_operand.vmem [shape: bf16[64,8], index: 3, kind: input, shape index: {}]
  %s4 = inlined_call_operand.vmem [shape: f32[1,8], index: 4, kind: input, shape index: {}]
  %s5 = inlined_call_operand.vmem [shape: f32[2,4,1], index: 5, kind: input, shape index: {}]
  %s6 = inlined_call_operand.vmem [shape: f32[2,4,1], index: 6, kind: input, shape index: {}]
  %s7 = inlined_call_operand.hbm [shape: f32[2,4,8], index: 7, kind: output, shape index: {}]
  %s8 = sld [smem:[#allocation0]]
  $region61: #{_lambda_.7} parent=0
    _
  %s10 = ssub.s32 1, %s8
  %s11 = scalar_select 0, %s10, %s8
  $region1: #{_lambda_.7} parent=0
    #allocation2 [shape = 'u8[4096]{0}', space=vmem, size = 0x1000, scoped, tag = 'output window, operand 0']
    #allocation3 [shape = 's32[2]{0}', space=sflag, size = 0x8, scoped, tag = 'scoped memory for _lambda_.7']
    %12 = vsyncpa [#allocation3], 0
    %s13 = scalar_lea.sflag [#allocation3], 1
    %14 = vsyncpa %s13, 0
    loop: start=0, step=1, limit=4
    $region2: #{_lambda_.7} parent=1 // loop_pre_header
      _
    $region3: #{_lambda_.7} parent=1 // loop_header
      %s16 = sphi 0, %s20
      %p17 = scmp.ge.s32.totalorder %s16, 4
      %s26 = sphi 0, %s28
      %s29 = sphi 0, %s26
      %s30 = sphi 0, %s29
      %s46 = sphi 0, %s30
      %s52 = sphi 0, %s54
      %s55 = sphi 0, %s52
      %s56 = sphi 0, %s55
      %s72 = sphi 0, %s56
      %s76 = sphi 0, %s76
      %s78 = sphi 0, %s76
      %s79 = sphi 0, %s78
      %s93 = sphi 0, %s79
      %s97 = sphi 0, %s97
      %s99 = sphi 0, %s97
      %s100 = sphi 0, %s99
      %s114 = sphi 0, %s100
      %s118 = sphi 0, %s118
      %s120 = sphi 0, %s118
      %s121 = sphi 0, %s120
      %s135 = sphi 0, %s121
      %s141 = sphi 0, %s143
      %s144 = sphi 0, %s141
      %s145 = sphi 0, %s144
      %s161 = sphi 0, %s145
      %s167 = sphi 0, %s169
      %s170 = sphi 0, %s167
      %s171 = sphi 0, %s170
      %s187 = sphi 0, %s171
      %s193 = sphi 0, %s195
      %s196 = sphi 0, %s193
      %s197 = sphi 0, %s196
      %s213 = sphi 0, %s197
    $region4: #{_lambda_.7} parent=1 // loop_header_branch
      %19 = sbr.rel (%p17) target = $region8
    $region5: #{_lambda_.7} parent=1 // loop_body
      %s21 = ssub.s32 %s16, 1
      %s22 = ssub.s32 %s16, 2
      %s23 = sadd.s32 %s16, 1
      %s24 = ssub.s32 %s16, %s23
      %p25 = scmp.eq.s32.totalorder %s24, 0
      %s27 = sadd.s32 %s26, 1
      %s28 = scalar_select %p25, %s26, %s27
      %p31 = pneg %p25
      %p32 = scmp.eq.s32.totalorder %s16, 1
      %p33 = por %p31, %p32
      %p34 = scmp.ne.s32.totalorder %s26, %s29
      %p35 = scmp.eq.s32.totalorder %s16, 0
      %p36 = por %p34, %p35
      %p37 = scmp.ne.s32.totalorder %s26, %s29
      %p38 = scmp.eq.s32.totalorder %s21, 1
      %p39 = por %p37, %p38
      %p40 = scmp.ne.s32.totalorder %s29, %s30
      %p41 = scmp.eq.s32.totalorder %s21, 0
      %p42 = por %p40, %p41
      %p43 = scmp.ne.s32.totalorder %s29, %s30
      %p44 = scmp.eq.s32.totalorder %s22, 1
      %p45 = por %p43, %p44
      %p47 = scmp.ne.s32.totalorder %s30, %s46
      %p48 = scmp.eq.s32.totalorder %s22, 0
      %p49 = por %p47, %p48
      %s50 = ssub.s32 %s16, %s23
      %p51 = scmp.eq.s32.totalorder %s50, 0
      %s53 = sadd.s32 %s52, 1
      %s54 = scalar_select %p51, %s52, %s53
      %p57 = pneg %p51
      %p58 = scmp.eq.s32.totalorder %s16, 1
      %p59 = por %p57, %p58
      %p60 = scmp.ne.s32.totalorder %s52, %s55
      %p61 = scmp.eq.s32.totalorder %s16, 0
      %p62 = por %p60, %p61
      %p63 = scmp.ne.s32.totalorder %s52, %s55
      %p64 = scmp.eq.s32.totalorder %s21, 1
      %p65 = por %p63, %p64
      %p66 = scmp.ne.s32.totalorder %s55, %s56
      %p67 = scmp.eq.s32.totalorder %s21, 0
      %p68 = por %p66, %p67
      %p69 = scmp.ne.s32.totalorder %s55, %s56
      %p70 = scmp.eq.s32.totalorder %s22, 1
      %p71 = por %p69, %p70
      %p73 = scmp.ne.s32.totalorder %s56, %s72
      %p74 = scmp.eq.s32.totalorder %s22, 0
      %p75 = por %p73, %p74
      %s77 = sadd.s32 %s76, 1
      %p80 = scmp.eq.s32.totalorder %s16, 1
      %p81 = scmp.ne.s32.totalorder %s76, %s78
      %p82 = scmp.eq.s32.totalorder %s16, 0
      %p83 = por %p81, %p82
      %p84 = scmp.ne.s32.totalorder %s76, %s78
      %p85 = scmp.eq.s32.totalorder %s21, 1
      %p86 = por %p84, %p85
      %p87 = scmp.ne.s32.totalorder %s78, %s79
      %p88 = scmp.eq.s32.totalorder %s21, 0
      %p89 = por %p87, %p88
      %p90 = scmp.ne.s32.totalorder %s78, %s79
      %p91 = scmp.eq.s32.totalorder %s22, 1
      %p92 = por %p90, %p91
      %p94 = scmp.ne.s32.totalorder %s79, %s93
      %p95 = scmp.eq.s32.totalorder %s22, 0
      %p96 = por %p94, %p95
      %s98 = sadd.s32 %s97, 1
      %p101 = scmp.eq.s32.totalorder %s16, 1
      %p102 = scmp.ne.s32.totalorder %s97, %s99
      %p103 = scmp.eq.s32.totalorder %s16, 0
      %p104 = por %p102, %p103
      %p105 = scmp.ne.s32.totalorder %s97, %s99
      %p106 = scmp.eq.s32.totalorder %s21, 1
      %p107 = por %p105, %p106
      %p108 = scmp.ne.s32.totalorder %s99, %s100
      %p109 = scmp.eq.s32.totalorder %s21, 0
      %p110 = por %p108, %p109
      %p111 = scmp.ne.s32.totalorder %s99, %s100
      %p112 = scmp.eq.s32.totalorder %s22, 1
      %p113 = por %p111, %p112
      %p115 = scmp.ne.s32.totalorder %s100, %s114
      %p116 = scmp.eq.s32.totalorder %s22, 0
      %p117 = por %p115, %p116
      %s119 = sadd.s32 %s118, 1
      %p122 = scmp.eq.s32.totalorder %s16, 1
      %p123 = scmp.ne.s32.totalorder %s118, %s120
      %p124 = scmp.eq.s32.totalorder %s16, 0
      %p125 = por %p123, %p124
      %p126 = scmp.ne.s32.totalorder %s118, %s120
      %p127 = scmp.eq.s32.totalorder %s21, 1
      %p128 = por %p126, %p127
      %p129 = scmp.ne.s32.totalorder %s120, %s121
      %p130 = scmp.eq.s32.totalorder %s21, 0
      %p131 = por %p129, %p130
      %p132 = scmp.ne.s32.totalorder %s120, %s121
      %p133 = scmp.eq.s32.totalorder %s22, 1
      %p134 = por %p132, %p133
      %p136 = scmp.ne.s32.totalorder %s121, %s135
      %p137 = scmp.eq.s32.totalorder %s22, 0
      %p138 = por %p136, %p137
      %s139 = ssub.s32 %s16, %s23
      %p140 = scmp.eq.s32.totalorder %s139, 0
      %s142 = sadd.s32 %s141, 1
      %s143 = scalar_select %p140, %s141, %s142
      %p146 = pneg %p140
      %p147 = scmp.eq.s32.totalorder %s16, 1
      %p148 = por %p146, %p147
      %p149 = scmp.ne.s32.totalorder %s141, %s144
      %p150 = scmp.eq.s32.totalorder %s16, 0
      %p151 = por %p149, %p150
      %p152 = scmp.ne.s32.totalorder %s141, %s144
      %p153 = scmp.eq.s32.totalorder %s21, 1
      %p154 = por %p152, %p153
      %p155 = scmp.ne.s32.totalorder %s144, %s145
      %p156 = scmp.eq.s32.totalorder %s21, 0
      %p157 = por %p155, %p156
      %p158 = scmp.ne.s32.totalorder %s144, %s145
      %p159 = scmp.eq.s32.totalorder %s22, 1
      %p160 = por %p158, %p159
      %p162 = scmp.ne.s32.totalorder %s145, %s161
      %p163 = scmp.eq.s32.totalorder %s22, 0
      %p164 = por %p162, %p163
      %s165 = ssub.s32 %s16, %s23
      %p166 = scmp.eq.s32.totalorder %s165, 0
      %s168 = sadd.s32 %s167, 1
      %s169 = scalar_select %p166, %s167, %s168
      %p172 = pneg %p166
      %p173 = scmp.eq.s32.totalorder %s16, 1
      %p174 = por %p172, %p173
      %p175 = scmp.ne.s32.totalorder %s167, %s170
      %p176 = scmp.eq.s32.totalorder %s16, 0
      %p177 = por %p175, %p176
      %p178 = scmp.ne.s32.totalorder %s167, %s170
      %p179 = scmp.eq.s32.totalorder %s21, 1
      %p180 = por %p178, %p179
      %p181 = scmp.ne.s32.totalorder %s170, %s171
      %p182 = scmp.eq.s32.totalorder %s21, 0
      %p183 = por %p181, %p182
      %p184 = scmp.ne.s32.totalorder %s170, %s171
      %p185 = scmp.eq.s32.totalorder %s22, 1
      %p186 = por %p184, %p185
      %p188 = scmp.ne.s32.totalorder %s171, %s187
      %p189 = scmp.eq.s32.totalorder %s22, 0
      %p190 = por %p188, %p189
      %s191 = ssub.s32 %s16, %s23
      %p192 = scmp.eq.s32.totalorder %s191, 0
      %s194 = sadd.s32 %s193, 1
      %s195 = scalar_select %p192, %s193, %s194
      %p198 = pneg %p192
      %p199 = scmp.eq.s32.totalorder %s16, 1
      %p200 = por %p198, %p199
      %p201 = scmp.ne.s32.totalorder %s193, %s196
      %p202 = scmp.eq.s32.totalorder %s16, 0
      %p203 = por %p201, %p202
      %p204 = scmp.ne.s32.totalorder %s193, %s196
      %p205 = scmp.eq.s32.totalorder %s21, 1
      %p206 = por %p204, %p205
      %p207 = scmp.ne.s32.totalorder %s196, %s197
      %p208 = scmp.eq.s32.totalorder %s21, 0
      %p209 = por %p207, %p208
      %p210 = scmp.ne.s32.totalorder %s196, %s197
      %p211 = scmp.eq.s32.totalorder %s22, 1
      %p212 = por %p210, %p211
      %p214 = scmp.ne.s32.totalorder %s197, %s213
      %p215 = scmp.eq.s32.totalorder %s22, 0
      %p216 = por %p214, %p215
      %p217 = scmp.le.s32.totalorder 1, %s16
      %p218 = scmp.lt.s32.totalorder %s16, 3
      %p219 = pnand %p217, %p218
      %p220 = pneg %p219
      // Predicated region
      $region9: #{_lambda_.7} parent=5 // pred_check
        _
      $region10: #{_lambda_.7} parent=5 // pred_check_branch
        %222 = sbr.rel (%p219) target = $region12
      $region11: #{_lambda_.7} parent=5 // pred_region
        %s223 = ssub.s32 %s16, 1
        // Predicated region
        $region13: #{_lambda_.7} parent=11 // pred_check
          %p224 = pneg %p89
        $region14: #{_lambda_.7} parent=11 // pred_check_branch
          %226 = sbr.rel (%p224) target = $region16
        $region15: #{_lambda_.7} parent=11 // pred_region
          _
        $region16: #{_lambda_.7} parent=11 // pred_fallthru
          _
        // Predicated region
        $region17: #{_lambda_.7} parent=11 // pred_check
          %p227 = pneg %p110
        $region18: #{_lambda_.7} parent=11 // pred_check_branch
          %229 = sbr.rel (%p227) target = $region20
        $region19: #{_lambda_.7} parent=11 // pred_region
          _
        $region20: #{_lambda_.7} parent=11 // pred_fallthru
          _
        // Predicated region
        $region21: #{_lambda_.7} parent=11 // pred_check
          %p230 = pneg %p131
        $region22: #{_lambda_.7} parent=11 // pred_check_branch
          %232 = sbr.rel (%p230) target = $region24
        $region23: #{_lambda_.7} parent=11 // pred_region
          _
        $region24: #{_lambda_.7} parent=11 // pred_fallthru
          _
      $region12: #{_lambda_.7} parent=5 // pred_fallthru
        _
      %p233 = scmp.lt.s32.totalorder %s16, 2
      // Predicated region
      $region25: #{_lambda_.7} parent=5 // pred_check
        %p234 = pneg %p233
      $region26: #{_lambda_.7} parent=5 // pred_check_branch
        %236 = sbr.rel (%p234) target = $region28
      $region27: #{_lambda_.7} parent=5 // pred_region
        // Predicated region
        $region29: #{_lambda_.7} parent=27 // pred_check
          %p237 = pneg %p36
        $region30: #{_lambda_.7} parent=27 // pred_check_branch
          %239 = sbr.rel (%p237) target = $region32
        $region31: #{_lambda_.7} parent=27 // pred_region
          %p240 = scmp.lt.s32.totalorder %s16, 1
          %s241 = scalar_select %p240, %s16, 1
          %s242 = smul.addr %s241, 4
          %s243 = scalar_lea.vmem %s0, %s242
        $region32: #{_lambda_.7} parent=27 // pred_fallthru
          _
        // Predicated region
        $region33: #{_lambda_.7} parent=27 // pred_check
          %p244 = pneg %p62
        $region34: #{_lambda_.7} parent=27 // pred_check_branch
          %246 = sbr.rel (%p244) target = $region36
        $region35: #{_lambda_.7} parent=27 // pred_region
          %p247 = scmp.lt.s32.totalorder %s16, 1
          %s248 = scalar_select %p247, %s16, 1
          %s249 = smul.addr %s248, 4
          %s250 = scalar_lea.vmem %s1, %s249
        $region36: #{_lambda_.7} parent=27 // pred_fallthru
          _
        // Predicated region
        $region37: #{_lambda_.7} parent=27 // pred_check
          %p251 = pneg %p151
        $region38: #{_lambda_.7} parent=27 // pred_check_branch
          %253 = sbr.rel (%p251) target = $region40
        $region39: #{_lambda_.7} parent=27 // pred_region
          %p254 = scmp.lt.s32.totalorder %s16, 1
          %s255 = scalar_select %p254, %s16, 1
          %s256 = smul.addr %s255, 4
          %s257 = scalar_lea.vmem %s5, %s256
        $region40: #{_lambda_.7} parent=27 // pred_fallthru
          _
        // Predicated region
        $region41: #{_lambda_.7} parent=27 // pred_check
          %p258 = pneg %p177
        $region42: #{_lambda_.7} parent=27 // pred_check_branch
          %260 = sbr.rel (%p258) target = $region44
        $region43: #{_lambda_.7} parent=27 // pred_region
          %p261 = scmp.lt.s32.totalorder %s16, 1
          %s262 = scalar_select %p261, %s16, 1
          %s263 = smul.addr %s262, 4
          %s264 = scalar_lea.vmem %s6, %s263
        $region44: #{_lambda_.7} parent=27 // pred_fallthru
          _
      $region28: #{_lambda_.7} parent=5 // pred_fallthru
        _
      %p265 = scmp.le.s32.totalorder 1, %s16
      %p266 = scmp.lt.s32.totalorder %s16, 3
      %p267 = pnand %p265, %p266
      %p268 = pneg %p267
      // Predicated region
      $region45: #{_lambda_.7} parent=5 // pred_check
        _
      $region46: #{_lambda_.7} parent=5 // pred_check_branch
        %270 = sbr.rel (%p267) target = $region48
      $region47: #{_lambda_.7} parent=5 // pred_region
        %s271 = ssub.s32 %s16, 1
        %p272 = scmp.lt.s32.totalorder %s21, 1
        %s273 = scalar_select %p272, %s21, 1
        %s274 = smul.addr %s273, 4
        %s275 = scalar_lea.vmem %s0, %s274
        %p276 = pneg %p42
        %p277 = pneg %p39
        %p278 = scmp.lt.s32.totalorder %s21, 1
        %s279 = scalar_select %p278, %s21, 1
        %s280 = smul.addr %s279, 4
        %s281 = scalar_lea.vmem %s1, %s280
        %p282 = pneg %p68
        %p283 = pneg %p65
        %p284 = pneg %p89
        %p285 = pneg %p86
        %p286 = pneg %p110
        %p287 = pneg %p107
        %p288 = pneg %p131
        %p289 = pneg %p128
        %p290 = scmp.lt.s32.totalorder %s21, 1
        %s291 = scalar_select %p290, %s21, 1
        %s292 = smul.addr %s291, 4
        %s293 = scalar_lea.vmem %s5, %s292
        %p294 = pneg %p157
        %p295 = pneg %p154
        %p296 = scmp.lt.s32.totalorder %s21, 1
        %s297 = scalar_select %p296, %s21, 1
        %s298 = smul.addr %s297, 4
        %s299 = scalar_lea.vmem %s6, %s298
        %p300 = pneg %p183
        %p301 = pneg %p180
        %p302 = pneg %p209
        %p303 = pneg %p206
        %s304 = sand.u32 %s196, 1
        %s305 = scalar_lea.sflag [#allocation3], %s304
        %s306 = sand.u32 %s196, 1
        %s307 = smul.addr %s306, 4
        %s308 = scalar_lea.vmem [#allocation2], %s307
        %p309 = scmp.lt.s32.totalorder %s21, 1
        %s310 = scalar_select %p309, %s21, 1
        %s311 = smul.addr %s310, 4
        %s312 = scalar_lea.vmem %s0, %s311
        %p313 = scmp.lt.s32.totalorder %s21, 1
        %s314 = scalar_select %p313, %s21, 1
        %s315 = smul.addr %s314, 4
        %s316 = scalar_lea.vmem %s1, %s315
        %p317 = scmp.lt.s32.totalorder %s21, 1
        %s318 = scalar_select %p317, %s21, 1
        %s319 = smul.addr %s318, 4
        %s320 = scalar_lea.vmem %s5, %s319
        %p321 = scmp.lt.s32.totalorder %s21, 1
        %s322 = scalar_select %p321, %s21, 1
        %s323 = smul.addr %s322, 4
        %s324 = scalar_lea.vmem %s6, %s323
        %v326 = vld [vmem:[%s312] sm:$0xf]
        %v327 = vld [vmem:[%s316] sm:$0xf]
        %v328 = vadd.f32 %v326, %v327
        %v329 = vmul.f32 %v328, %v328
        %vm330 = vcmask 257024
        %v331 = vsel %vm330, %v329, 0.0
        %332 = vadd.xlane.f32.xlu0 %v331
        %v333 = vpop.xlane.xlu0 %332
        %v334 = vrcp.pop 32.0
        %v335 = vmul.f32 %v333, %v334
        %v336 = vadd.f32 %v335, 1e-05
        %v337 = vrsqrt.pop %v336
        %v338 = vmul.f32 %v328, %v337
        %340 = vrot.lane.b32.xlu0 %v329, 96
        %v341 = vpop.permute.xlu0 %340
        %v343 = vsel %vm330, %v341, 0.0
        %344 = vadd.xlane.f32.xlu0 %v343
        %v345 = vpop.xlane.xlu0 %344
        %v346 = vmul.f32 %v345, %v334
        %v347 = vadd.f32 %v346, 1e-05
        %v348 = vrsqrt.pop %v347
        %v349 = vmul.f32 %v328, %v348
        %vm350 = vcmask 261120
        %v351 = vsel %vm350, %v338, %v349
        %v352 = vld [vmem:[%s2] sm:$0x1]
        %v354 = vlaneseq
        %v355 = vshrl.u32 %v354, 7
        %v356 = vsub.s32 0, %v355
        %v357 = vrot.slane %v352, %v356
        %v359 = vmul.f32 %v351, %v357
        %v360 = vpack.c.bf16 %v359, %v359
        %v361 = vld [vmem:[%s3] sm:$0xf]
        %v362 = vld [vmem:[%s3 + $0x4] sm:$0xf]
        %v363 = vld [vmem:[%s3 + $0x8] sm:$0xf]
        %v364 = vld [vmem:[%s3 + $0xc] sm:$0xf]
        %v365 = vld [vmem:[%s3 + $0x10] sm:$0xf]
        %v366 = vld [vmem:[%s3 + $0x14] sm:$0xf]
        %v367 = vld [vmem:[%s3 + $0x18] sm:$0xf]
        %v368 = vld [vmem:[%s3 + $0x1c] sm:$0xf]
        %v369 = vld [vmem:[%s4] sm:$0x1]
        %v371 = vlaneseq
        %v372 = vshrl.u32 %v371, 7
        %v373 = vsub.s32 0, %v372
        %v374 = vrot.slane %v369, %v373
        %v384 = vunpack.c.l.b16 %v361
        %v385 = vunpack.c.l.b16 %v362
        %v386 = vunpack.c.l.b16 %v363
        %v387 = vunpack.c.l.b16 %v364
        %v388 = vunpack.c.l.b16 %v365
        %v389 = vunpack.c.l.b16 %v366
        %v390 = vunpack.c.l.b16 %v367
        %v391 = vunpack.c.l.b16 %v368
        %v392 = vpack.c.b16 %v385, %v384
        %v393 = vpack.c.b16 %v387, %v386
        %v394 = vpack.c.b16 %v389, %v388
        %v395 = vpack.c.b16 %v391, %v390
        %vm400 = vcmask 523264
        %v402 = vsel %vm400, %v360, 0
        %404 = vmatprep.subr.bf16.mxu0 0
        %405 = vmatpush1.bf16.msra.mxu0 %v392
        %406 = vmatprep.subr.bf16.mxu0 0
        %407 = vmatpush1.bf16.msra.mxu0 %v393
        %408 = vmatprep.subr.bf16.mxu0 0
        %409 = vmatpush1.bf16.msra.mxu0 %v394
        %410 = vmatprep.subr.bf16.mxu0 0
        %411 = vmatpush1.bf16.msra.mxu0 %v395
        %412 = vmatprep.subr.bf16.mxu0 0
        %413 = vmatpush1.bf16.msra.mxu0 0
        %414 = vmatprep.subr.bf16.mxu0 0
        %415 = vmatpush1.bf16.msra.mxu0 0
        %416 = vmatprep.subr.bf16.mxu0 0
        %417 = vmatpush1.bf16.msra.mxu0 0
        %418 = vmatprep.subr.bf16.mxu0 0
        %419 = vmatpush1.bf16.msra.mxu0 0
        %420 = vmatprep.subr.bf16.mxu0 0
        %421 = vmatpush1.bf16.msra.mxu0 0
        %422 = vmatprep.subr.bf16.mxu0 0
        %423 = vmatpush1.bf16.msra.mxu0 0
        %424 = vmatprep.subr.bf16.mxu0 0
        %425 = vmatpush1.bf16.msra.mxu0 0
        %426 = vmatprep.subr.bf16.mxu0 0
        %427 = vmatpush1.bf16.msra.mxu0 0
        %428 = vmatprep.subr.bf16.mxu0 0
        %429 = vmatpush1.bf16.msra.mxu0 0
        %430 = vmatprep.subr.bf16.mxu0 0
        %431 = vmatpush1.bf16.msra.mxu0 0
        %432 = vmatprep.subr.bf16.mxu0 0
        %433 = vmatpush1.bf16.msra.mxu0 0
        %434 = vmatprep.subr.bf16.mxu0 0
        %435 = vmatpush1.bf16.msra.mxu0 0
        %436 = vmatprep.mubr.bf16.mxu0 0
        %437 = vmatmul.mubr.bf16.gmra.mrb[0].mxu0 %v402
        %v438 = vpop.f32.mrb[0].mxu0
        %v439 = vadd.f32 %v374, %v438
        %v440 = vpop.f32.mrb[0].mxu0
        %v441 = vpop.f32.mrb[0].mxu0
        %v442 = vpop.f32.mrb[0].mxu0
        %443 = vdwg.mxu0
        %v444 = vld [vmem:[%s320] sm:$0xf]
        %446 = vset.pattern.permute.xlu0 0
        %447 = vperm.xlu0 %446, %v444
        %v448 = vpop.permute.xlu0 %447
        %v450 = vmul.f32 %v439, %v448
        %v451 = vld [vmem:[%s324] sm:$0xf]
        %453 = vset.pattern.permute.xlu0 0
        %454 = vperm.xlu0 %453, %v451
        %v455 = vpop.permute.xlu0 %454
        %v457 = vadd.f32 %v450, %v455
        %vm458 = vcmask 60416
        %459 = vst.msk [vmem:[%s308] sm:$0xf] %vm458, %v457
        %s460 = sand.u32 %s196, 1
        %s461 = scalar_lea.sflag [#allocation3], %s460
        %s462 = sand.u32 %s196, 1
        %s463 = smul.addr %s462, 4
        %s464 = scalar_lea.vmem [#allocation2], %s463
        // Predicated region
        $region49: #{_lambda_.7} parent=47 // pred_check
          %p465 = pneg %p206
        $region50: #{_lambda_.7} parent=47 // pred_check_branch
          %467 = sbr.rel (%p465) target = $region52
        $region51: #{_lambda_.7} parent=47 // pred_region
          %s469 = ssub.s32 64, 64
          %470 = vsyncadd %s461, %s469
          %s471 = smul.addr %s21, 64
          %s472 = scalar_lea.hbm %s7, %s471
          %s474 = sshll.u32 %s464, 4
          %s475 = int_to_ptr.vmem [resolvable:$true] %s474
          %477 = dma.vmem_to_hbm [thread:$0]  %s475, 64, %s472, %s461
        $region52: #{_lambda_.7} parent=47 // pred_fallthru
          _
      $region48: #{_lambda_.7} parent=5 // pred_fallthru
        _
      %p478 = scmp.le.s32.totalorder 2, %s16
      // Predicated region
      $region53: #{_lambda_.7} parent=5 // pred_check
        %p479 = pneg %p478
      $region54: #{_lambda_.7} parent=5 // pred_check_branch
        %481 = sbr.rel (%p479) target = $region56
      $region55: #{_lambda_.7} parent=5 // pred_region
        %s482 = ssub.s32 %s16, 2
        // Predicated region
        $region57: #{_lambda_.7} parent=55 // pred_check
          %p483 = pneg %p212
        $region58: #{_lambda_.7} parent=55 // pred_check_branch
          %485 = sbr.rel (%p483) target = $region60
        $region59: #{_lambda_.7} parent=55 // pred_region
          %s486 = sand.u32 %s197, 1
          %s487 = scalar_lea.sflag [#allocation3], %s486
          %s488 = sand.u32 %s197, 1
          %s489 = smul.addr %s488, 4
          %s490 = scalar_lea.vmem [#allocation2], %s489
          %491 = dma.done %s487, 64
        $region60: #{_lambda_.7} parent=55 // pred_fallthru
          _
      $region56: #{_lambda_.7} parent=5 // pred_fallthru
        _
    $region6: #{_lambda_.7} parent=1 // loop_footer
      %s20 = sadd.s32 1, %s16
    $region7: #{_lambda_.7} parent=1 // loop_footer_branch
      %15 = sbr.rel target = $region3
    $region8: #{_lambda_.7} parent=1 // loop_exit
      _
    %492 = vsyncpa [#allocation3], 1
    %s493 = scalar_lea.sflag [#allocation3], 1
    %494 = vsyncpa %s493, 1

// kernel: _lambda_.4
$region0: #{_lambda_.4}
  #allocation0 [shape = 'u32[]', space=smem, size = 0x4, offset = 0x4, fixed_abs, tag = 'smem constant byte address 0x4 - core index']
  #allocation1 [shape = 'u32[144,128]{1,0:T(1,128)}', space=vmem, size = 0x12000, scoped, tag = 'internal scratch']
  %s0 = inlined_call_operand.vmem [shape: f32[2,8,8], index: 0, kind: input, shape index: {}]
  %s1 = inlined_call_operand.vmem [shape: f32[2,8,1], index: 1, kind: input, shape index: {}]
  %s2 = inlined_call_operand.vmem [shape: f32[2,8,1], index: 2, kind: input, shape index: {}]
  %s3 = inlined_call_operand.vmem [shape: bf16[8,32], index: 3, kind: input, shape index: {}]
  %s4 = inlined_call_operand.vmem [shape: f32[2,8,32], index: 4, kind: output, shape index: {}]
  %s5 = sld [smem:[#allocation0]]
  $region49: #{_lambda_.4} parent=0
    _
  %s7 = ssub.s32 1, %s5
  %s8 = scalar_select 0, %s7, %s5
  loop: start=0, step=1, limit=4
  $region2: #{_lambda_.4} parent=0 // loop_pre_header
    _
  $region3: #{_lambda_.4} parent=0 // loop_header
    %s10 = sphi 0, %s14
    %p11 = scmp.ge.s32.totalorder %s10, 4
    %s20 = sphi 0, %s22
    %s23 = sphi 0, %s20
    %s24 = sphi 0, %s23
    %s40 = sphi 0, %s24
    %s46 = sphi 0, %s48
    %s49 = sphi 0, %s46
    %s50 = sphi 0, %s49
    %s66 = sphi 0, %s50
    %s72 = sphi 0, %s74
    %s75 = sphi 0, %s72
    %s76 = sphi 0, %s75
    %s92 = sphi 0, %s76
    %s96 = sphi 0, %s96
    %s98 = sphi 0, %s96
    %s99 = sphi 0, %s98
    %s113 = sphi 0, %s99
    %s119 = sphi 0, %s121
    %s122 = sphi 0, %s119
    %s123 = sphi 0, %s122
    %s139 = sphi 0, %s123
  $region4: #{_lambda_.4} parent=0 // loop_header_branch
    %13 = sbr.rel (%p11) target = $region8
  $region5: #{_lambda_.4} parent=0 // loop_body
    %s15 = ssub.s32 %s10, 1
    %s16 = ssub.s32 %s10, 2
    %s17 = sadd.s32 %s10, 1
    %s18 = ssub.s32 %s10, %s17
    %p19 = scmp.eq.s32.totalorder %s18, 0
    %s21 = sadd.s32 %s20, 1
    %s22 = scalar_select %p19, %s20, %s21
    %p25 = pneg %p19
    %p26 = scmp.eq.s32.totalorder %s10, 1
    %p27 = por %p25, %p26
    %p28 = scmp.ne.s32.totalorder %s20, %s23
    %p29 = scmp.eq.s32.totalorder %s10, 0
    %p30 = por %p28, %p29
    %p31 = scmp.ne.s32.totalorder %s20, %s23
    %p32 = scmp.eq.s32.totalorder %s15, 1
    %p33 = por %p31, %p32
    %p34 = scmp.ne.s32.totalorder %s23, %s24
    %p35 = scmp.eq.s32.totalorder %s15, 0
    %p36 = por %p34, %p35
    %p37 = scmp.ne.s32.totalorder %s23, %s24
    %p38 = scmp.eq.s32.totalorder %s16, 1
    %p39 = por %p37, %p38
    %p41 = scmp.ne.s32.totalorder %s24, %s40
    %p42 = scmp.eq.s32.totalorder %s16, 0
    %p43 = por %p41, %p42
    %s44 = ssub.s32 %s10, %s17
    %p45 = scmp.eq.s32.totalorder %s44, 0
    %s47 = sadd.s32 %s46, 1
    %s48 = scalar_select %p45, %s46, %s47
    %p51 = pneg %p45
    %p52 = scmp.eq.s32.totalorder %s10, 1
    %p53 = por %p51, %p52
    %p54 = scmp.ne.s32.totalorder %s46, %s49
    %p55 = scmp.eq.s32.totalorder %s10, 0
    %p56 = por %p54, %p55
    %p57 = scmp.ne.s32.totalorder %s46, %s49
    %p58 = scmp.eq.s32.totalorder %s15, 1
    %p59 = por %p57, %p58
    %p60 = scmp.ne.s32.totalorder %s49, %s50
    %p61 = scmp.eq.s32.totalorder %s15, 0
    %p62 = por %p60, %p61
    %p63 = scmp.ne.s32.totalorder %s49, %s50
    %p64 = scmp.eq.s32.totalorder %s16, 1
    %p65 = por %p63, %p64
    %p67 = scmp.ne.s32.totalorder %s50, %s66
    %p68 = scmp.eq.s32.totalorder %s16, 0
    %p69 = por %p67, %p68
    %s70 = ssub.s32 %s10, %s17
    %p71 = scmp.eq.s32.totalorder %s70, 0
    %s73 = sadd.s32 %s72, 1
    %s74 = scalar_select %p71, %s72, %s73
    %p77 = pneg %p71
    %p78 = scmp.eq.s32.totalorder %s10, 1
    %p79 = por %p77, %p78
    %p80 = scmp.ne.s32.totalorder %s72, %s75
    %p81 = scmp.eq.s32.totalorder %s10, 0
    %p82 = por %p80, %p81
    %p83 = scmp.ne.s32.totalorder %s72, %s75
    %p84 = scmp.eq.s32.totalorder %s15, 1
    %p85 = por %p83, %p84
    %p86 = scmp.ne.s32.totalorder %s75, %s76
    %p87 = scmp.eq.s32.totalorder %s15, 0
    %p88 = por %p86, %p87
    %p89 = scmp.ne.s32.totalorder %s75, %s76
    %p90 = scmp.eq.s32.totalorder %s16, 1
    %p91 = por %p89, %p90
    %p93 = scmp.ne.s32.totalorder %s76, %s92
    %p94 = scmp.eq.s32.totalorder %s16, 0
    %p95 = por %p93, %p94
    %s97 = sadd.s32 %s96, 1
    %p100 = scmp.eq.s32.totalorder %s10, 1
    %p101 = scmp.ne.s32.totalorder %s96, %s98
    %p102 = scmp.eq.s32.totalorder %s10, 0
    %p103 = por %p101, %p102
    %p104 = scmp.ne.s32.totalorder %s96, %s98
    %p105 = scmp.eq.s32.totalorder %s15, 1
    %p106 = por %p104, %p105
    %p107 = scmp.ne.s32.totalorder %s98, %s99
    %p108 = scmp.eq.s32.totalorder %s15, 0
    %p109 = por %p107, %p108
    %p110 = scmp.ne.s32.totalorder %s98, %s99
    %p111 = scmp.eq.s32.totalorder %s16, 1
    %p112 = por %p110, %p111
    %p114 = scmp.ne.s32.totalorder %s99, %s113
    %p115 = scmp.eq.s32.totalorder %s16, 0
    %p116 = por %p114, %p115
    %s117 = ssub.s32 %s10, %s17
    %p118 = scmp.eq.s32.totalorder %s117, 0
    %s120 = sadd.s32 %s119, 1
    %s121 = scalar_select %p118, %s119, %s120
    %p124 = pneg %p118
    %p125 = scmp.eq.s32.totalorder %s10, 1
    %p126 = por %p124, %p125
    %p127 = scmp.ne.s32.totalorder %s119, %s122
    %p128 = scmp.eq.s32.totalorder %s10, 0
    %p129 = por %p127, %p128
    %p130 = scmp.ne.s32.totalorder %s119, %s122
    %p131 = scmp.eq.s32.totalorder %s15, 1
    %p132 = por %p130, %p131
    %p133 = scmp.ne.s32.totalorder %s122, %s123
    %p134 = scmp.eq.s32.totalorder %s15, 0
    %p135 = por %p133, %p134
    %p136 = scmp.ne.s32.totalorder %s122, %s123
    %p137 = scmp.eq.s32.totalorder %s16, 1
    %p138 = por %p136, %p137
    %p140 = scmp.ne.s32.totalorder %s123, %s139
    %p141 = scmp.eq.s32.totalorder %s16, 0
    %p142 = por %p140, %p141
    %p143 = scmp.le.s32.totalorder 1, %s10
    %p144 = scmp.lt.s32.totalorder %s10, 3
    %p145 = pnand %p143, %p144
    %p146 = pneg %p145
    // Predicated region
    $region9: #{_lambda_.4} parent=5 // pred_check
      _
    $region10: #{_lambda_.4} parent=5 // pred_check_branch
      %148 = sbr.rel (%p145) target = $region12
    $region11: #{_lambda_.4} parent=5 // pred_region
      %s149 = ssub.s32 %s10, 1
      // Predicated region
      $region13: #{_lambda_.4} parent=11 // pred_check
        %p150 = pneg %p109
      $region14: #{_lambda_.4} parent=11 // pred_check_branch
        %152 = sbr.rel (%p150) target = $region16
      $region15: #{_lambda_.4} parent=11 // pred_region
        _
      $region16: #{_lambda_.4} parent=11 // pred_fallthru
        _
    $region12: #{_lambda_.4} parent=5 // pred_fallthru
      _
    %p153 = scmp.lt.s32.totalorder %s10, 2
    // Predicated region
    $region17: #{_lambda_.4} parent=5 // pred_check
      %p154 = pneg %p153
    $region18: #{_lambda_.4} parent=5 // pred_check_branch
      %156 = sbr.rel (%p154) target = $region20
    $region19: #{_lambda_.4} parent=5 // pred_region
      // Predicated region
      $region21: #{_lambda_.4} parent=19 // pred_check
        %p157 = pneg %p30
      $region22: #{_lambda_.4} parent=19 // pred_check_branch
        %159 = sbr.rel (%p157) target = $region24
      $region23: #{_lambda_.4} parent=19 // pred_region
        %p160 = scmp.lt.s32.totalorder %s10, 1
        %s161 = scalar_select %p160, %s10, 1
        %s162 = smul.addr %s161, 8
        %s163 = scalar_lea.vmem %s0, %s162
      $region24: #{_lambda_.4} parent=19 // pred_fallthru
        _
      // Predicated region
      $region25: #{_lambda_.4} parent=19 // pred_check
        %p164 = pneg %p56
      $region26: #{_lambda_.4} parent=19 // pred_check_branch
        %166 = sbr.rel (%p164) target = $region28
      $region27: #{_lambda_.4} parent=19 // pred_region
        %p167 = scmp.lt.s32.totalorder %s10, 1
        %s168 = scalar_select %p167, %s10, 1
        %s169 = smul.addr %s168, 8
        %s170 = scalar_lea.vmem %s1, %s169
      $region28: #{_lambda_.4} parent=19 // pred_fallthru
        _
      // Predicated region
      $region29: #{_lambda_.4} parent=19 // pred_check
        %p171 = pneg %p82
      $region30: #{_lambda_.4} parent=19 // pred_check_branch
        %173 = sbr.rel (%p171) target = $region32
      $region31: #{_lambda_.4} parent=19 // pred_region
        %p174 = scmp.lt.s32.totalorder %s10, 1
        %s175 = scalar_select %p174, %s10, 1
        %s176 = smul.addr %s175, 8
        %s177 = scalar_lea.vmem %s2, %s176
      $region32: #{_lambda_.4} parent=19 // pred_fallthru
        _
    $region20: #{_lambda_.4} parent=5 // pred_fallthru
      _
    %p178 = scmp.le.s32.totalorder 1, %s10
    %p179 = scmp.lt.s32.totalorder %s10, 3
    %p180 = pnand %p178, %p179
    %p181 = pneg %p180
    // Predicated region
    $region33: #{_lambda_.4} parent=5 // pred_check
      _
    $region34: #{_lambda_.4} parent=5 // pred_check_branch
      %183 = sbr.rel (%p180) target = $region36
    $region35: #{_lambda_.4} parent=5 // pred_region
      %s184 = ssub.s32 %s10, 1
      %p185 = scmp.lt.s32.totalorder %s15, 1
      %s186 = scalar_select %p185, %s15, 1
      %s187 = smul.addr %s186, 8
      %s188 = scalar_lea.vmem %s0, %s187
      %p189 = pneg %p36
      %p190 = pneg %p33
      %p191 = scmp.lt.s32.totalorder %s15, 1
      %s192 = scalar_select %p191, %s15, 1
      %s193 = smul.addr %s192, 8
      %s194 = scalar_lea.vmem %s1, %s193
      %p195 = pneg %p62
      %p196 = pneg %p59
      %p197 = scmp.lt.s32.totalorder %s15, 1
      %s198 = scalar_select %p197, %s15, 1
      %s199 = smul.addr %s198, 8
      %s200 = scalar_lea.vmem %s2, %s199
      %p201 = pneg %p88
      %p202 = pneg %p85
      %p203 = pneg %p109
      %p204 = pneg %p106
      %p205 = pneg %p135
      %p206 = pneg %p132
      %p207 = scmp.lt.s32.totalorder %s15, 1
      %s208 = scalar_select %p207, %s15, 1
      %s209 = smul.addr %s208, 8
      %s210 = scalar_lea.vmem %s4, %s209
      %p211 = scmp.lt.s32.totalorder %s15, 1
      %s212 = scalar_select %p211, %s15, 1
      %s213 = smul.addr %s212, 8
      %s214 = scalar_lea.vmem %s0, %s213
      %p215 = scmp.lt.s32.totalorder %s15, 1
      %s216 = scalar_select %p215, %s15, 1
      %s217 = smul.addr %s216, 8
      %s218 = scalar_lea.vmem %s1, %s217
      %p219 = scmp.lt.s32.totalorder %s15, 1
      %s220 = scalar_select %p219, %s15, 1
      %s221 = smul.addr %s220, 8
      %s222 = scalar_lea.vmem %s2, %s221
      %p223 = scmp.lt.s32.totalorder %s15, 1
      %s224 = scalar_select %p223, %s15, 1
      %s225 = smul.addr %s224, 8
      %s226 = scalar_lea.vmem %s4, %s225
      %v228 = vld [vmem:[%s214] sm:$0xff]
      %v229 = vld [vmem:[%s218] sm:$0xff]
      %231 = vset.pattern.permute.xlu0 0
      %232 = vperm.xlu0 %231, %v229
      %v233 = vpop.permute.xlu0 %232
      %v235 = vsub.f32 %v228, %v233
      %v236 = vld [vmem:[%s222] sm:$0xff]
      %238 = vset.pattern.permute.xlu0 0
      %239 = vperm.xlu0 %238, %v236
      %v240 = vpop.permute.xlu0 %239
      %v242 = vmul.f32 %v235, %v240
      %v243 = vpack.c.bf16 %v242, %v242
      %v244 = vld [vmem:[%s3] sm:$0xf]
      %vm245 = vcmask 64512
      %v247 = vsel %vm245, %v243, 0
      %vm249 = vcmask 1043456
      %v251 = vsel %vm249, %v244, 0
      %253 = vmatprep.subr.bf16.mxu0 0
      %254 = vmatpush1.bf16.msra.mxu0 %v251
      %255 = vmatprep.subr.bf16.mxu0 0
      %256 = vmatpush1.bf16.msra.mxu0 0
      %257 = vmatprep.subr.bf16.mxu0 0
      %258 = vmatpush1.bf16.msra.mxu0 0
      %259 = vmatprep.subr.bf16.mxu0 0
      %260 = vmatpush1.bf16.msra.mxu0 0
      %261 = vmatprep.subr.bf16.mxu0 0
      %262 = vmatpush1.bf16.msra.mxu0 0
      %263 = vmatprep.subr.bf16.mxu0 0
      %264 = vmatpush1.bf16.msra.mxu0 0
      %265 = vmatprep.subr.bf16.mxu0 0
      %266 = vmatpush1.bf16.msra.mxu0 0
      %267 = vmatprep.subr.bf16.mxu0 0
      %268 = vmatpush1.bf16.msra.mxu0 0
      %269 = vmatprep.subr.bf16.mxu0 0
      %270 = vmatpush1.bf16.msra.mxu0 0
      %271 = vmatprep.subr.bf16.mxu0 0
      %272 = vmatpush1.bf16.msra.mxu0 0
      %273 = vmatprep.subr.bf16.mxu0 0
      %274 = vmatpush1.bf16.msra.mxu0 0
      %275 = vmatprep.subr.bf16.mxu0 0
      %276 = vmatpush1.bf16.msra.mxu0 0
      %277 = vmatprep.subr.bf16.mxu0 0
      %278 = vmatpush1.bf16.msra.mxu0 0
      %279 = vmatprep.subr.bf16.mxu0 0
      %280 = vmatpush1.bf16.msra.mxu0 0
      %281 = vmatprep.subr.bf16.mxu0 0
      %282 = vmatpush1.bf16.msra.mxu0 0
      %283 = vmatprep.subr.bf16.mxu0 0
      %284 = vmatpush1.bf16.msra.mxu0 0
      %285 = vmatprep.mubr.bf16.mxu0 0
      %286 = vmatmul.mubr.bf16.gmra.mrb[0].mxu0 %v247
      %v287 = vpop.f32.mrb[0].mxu0
      %v288 = vadd.f32 0.0, %v287
      %v289 = vpop.f32.mrb[0].mxu0
      %v290 = vpop.f32.mrb[0].mxu0
      %v291 = vpop.f32.mrb[0].mxu0
      %292 = vdwg.mxu0
      %vm293 = vcmask 261120
      %294 = vst.msk [vmem:[%s226] sm:$0xff] %vm293, %v288
      %p295 = scmp.lt.s32.totalorder %s15, 1
      %s296 = scalar_select %p295, %s15, 1
      %s297 = smul.addr %s296, 8
      %s298 = scalar_lea.vmem %s4, %s297
      // Predicated region
      $region37: #{_lambda_.4} parent=35 // pred_check
        %p299 = pneg %p132
      $region38: #{_lambda_.4} parent=35 // pred_check_branch
        %301 = sbr.rel (%p299) target = $region40
      $region39: #{_lambda_.4} parent=35 // pred_region
        _
      $region40: #{_lambda_.4} parent=35 // pred_fallthru
        _
    $region36: #{_lambda_.4} parent=5 // pred_fallthru
      _
    %p302 = scmp.le.s32.totalorder 2, %s10
    // Predicated region
    $region41: #{_lambda_.4} parent=5 // pred_check
      %p303 = pneg %p302
    $region42: #{_lambda_.4} parent=5 // pred_check_branch
      %305 = sbr.rel (%p303) target = $region44
    $region43: #{_lambda_.4} parent=5 // pred_region
      %s306 = ssub.s32 %s10, 2
      // Predicated region
      $region45: #{_lambda_.4} parent=43 // pred_check
        %p307 = pneg %p138
      $region46: #{_lambda_.4} parent=43 // pred_check_branch
        %309 = sbr.rel (%p307) target = $region48
      $region47: #{_lambda_.4} parent=43 // pred_region
        %p310 = scmp.lt.s32.totalorder %s16, 1
        %s311 = scalar_select %p310, %s16, 1
        %s312 = smul.addr %s311, 8
        %s313 = scalar_lea.vmem %s4, %s312
      $region48: #{_lambda_.4} parent=43 // pred_fallthru
        _
    $region44: #{_lambda_.4} parent=5 // pred_fallthru
      _
  $region6: #{_lambda_.4} parent=0 // loop_footer
    %s14 = sadd.s32 1, %s10
  $region7: #{_lambda_.4} parent=0 // loop_footer_branch
    %9 = sbr.rel target = $region3
  $region8: #{_lambda_.4} parent=0 // loop_exit
    _

// kernel: _lambda_.6
$region0: #{_lambda_.6}
  #allocation0 [shape = 'u32[]', space=smem, size = 0x4, offset = 0x4, fixed_abs, tag = 'smem constant byte address 0x4 - core index']
  #allocation1 [shape = 'u32[144,128]{1,0:T(1,128)}', space=vmem, size = 0x12000, scoped, tag = 'internal scratch']
  #allocation2 [shape = 'f32[8,16,64]{2,1,0:T(8,128)}', space=vmem, size = 0x10000, scoped, tag = 'scratch operand']
  #allocation3 [shape = 'f32[8,16,64]{2,1,0:T(8,128)}', space=vmem, size = 0x10000, scoped, tag = 'scratch operand']
  #allocation4 [shape = 'f32[8,16,1]{2,1,0:T(8,128)}', space=vmem, size = 0x10000, scoped, tag = 'scratch operand']
  #allocation5 [shape = 'f32[8,1,64]{2,1,0:T(1,128)}', space=vmem, size = 0x1000, scoped, tag = 'scratch operand']
  #allocation6 [shape = 'f32[16,64]{1,0:T(8,128)}', space=vmem, size = 0x2000, scoped, tag = 'scratch operand']
  #allocation7 [shape = 'f32[3,64]{1,0:T(4,128)}', space=vmem, size = 0x800, scoped, tag = 'scratch operand']
  %s0 = inlined_call_operand.vmem [shape: f32[2,8,32], index: 0, kind: input, shape index: {}]
  %s1 = inlined_call_operand.vmem [shape: f32[2,8,32], index: 1, kind: input, shape index: {}]
  %s2 = inlined_call_operand.vmem [shape: f32[1,32], index: 2, kind: input, shape index: {}]
  %s3 = inlined_call_operand.vmem [shape: bf16[32,128], index: 3, kind: input, shape index: {}]
  %s4 = inlined_call_operand.vmem [shape: f32[4,64], index: 4, kind: input, shape index: {}]
  %s5 = inlined_call_operand.vmem [shape: f32[1,64], index: 5, kind: input, shape index: {}]
  %s6 = inlined_call_operand.vmem [shape: bf16[64,96], index: 6, kind: input, shape index: {}]
  %s7 = inlined_call_operand.vmem [shape: f32[1,64], index: 7, kind: input, shape index: {}]
  %s8 = inlined_call_operand.vmem [shape: f32[16,64], index: 8, kind: input, shape index: {}]
  %s9 = inlined_call_operand.vmem [shape: f32[1,64], index: 9, kind: input, shape index: {}]
  %s10 = inlined_call_operand.vmem [shape: bf16[64,32], index: 10, kind: input, shape index: {}]
  %s11 = inlined_call_operand.vmem [shape: f32[2,8,32], index: 11, kind: output, shape index: {0}]
  %s12 = inlined_call_operand.vmem [shape: f32[2,8,32], index: 12, kind: output, shape index: {1}]
  %13 = xla_tuple %s11, %s12
  %s14 = sld [smem:[#allocation0]]
  $region89: #{_lambda_.6} parent=0
    _
  %s16 = ssub.s32 1, %s14
  %s17 = scalar_select 0, %s16, %s14
  loop: start=0, step=1, limit=4
  $region2: #{_lambda_.6} parent=0 // loop_pre_header
    _
  $region3: #{_lambda_.6} parent=0 // loop_header
    %s19 = sphi 0, %s23
    %p20 = scmp.ge.s32.totalorder %s19, 4
    %s26 = sphi 0, %s38
    %s27 = sphi 0, %s34
    %s28 = sphi 0, %s26
    %s29 = sphi 0, %s27
    %s30 = sphi 0, %s28
    %s31 = sphi 0, %s29
    %s43 = sphi 0, %s45
    %s46 = sphi 0, %s43
    %s47 = sphi 0, %s46
    %s63 = sphi 0, %s47
    %s71 = sphi 0, %s73
    %s74 = sphi 0, %s71
    %s75 = sphi 0, %s74
    %s91 = sphi 0, %s75
    %s95 = sphi 0, %s95
    %s97 = sphi 0, %s95
    %s98 = sphi 0, %s97
    %s112 = sphi 0, %s98
    %s116 = sphi 0, %s116
    %s118 = sphi 0, %s116
    %s119 = sphi 0, %s118
    %s133 = sphi 0, %s119
    %s137 = sphi 0, %s137
    %s139 = sphi 0, %s137
    %s140 = sphi 0, %s139
    %s154 = sphi 0, %s140
    %s158 = sphi 0, %s158
    %s160 = sphi 0, %s158
    %s161 = sphi 0, %s160
    %s175 = sphi 0, %s161
    %s179 = sphi 0, %s179
    %s181 = sphi 0, %s179
    %s182 = sphi 0, %s181
    %s196 = sphi 0, %s182
    %s200 = sphi 0, %s200
    %s202 = sphi 0, %s200
    %s203 = sphi 0, %s202
    %s217 = sphi 0, %s203
    %s221 = sphi 0, %s221
    %s223 = sphi 0, %s221
    %s224 = sphi 0, %s223
    %s238 = sphi 0, %s224
    %s242 = sphi 0, %s242
    %s244 = sphi 0, %s242
    %s245 = sphi 0, %s244
    %s259 = sphi 0, %s245
    %s263 = sphi 0, %s263
    %s265 = sphi 0, %s263
    %s266 = sphi 0, %s265
    %s280 = sphi 0, %s266
    %s288 = sphi 0, %s290
    %s291 = sphi 0, %s288
    %s292 = sphi 0, %s291
    %s308 = sphi 0, %s292
    %s316 = sphi 0, %s318
    %s319 = sphi 0, %s316
    %s320 = sphi 0, %s319
    %s336 = sphi 0, %s320
  $region4: #{_lambda_.6} parent=0 // loop_header_branch
    %22 = sbr.rel (%p20) target = $region8
  $region5: #{_lambda_.6} parent=0 // loop_body
    %s24 = ssub.s32 %s19, 1
    %s25 = ssub.s32 %s19, 2
    %s32 = sadd.s32 1, %s27
    %p33 = scmp.ge.s32.totalorder %s32, 1
    %s34 = scalar_select %p33, 0, %s32
    %s35 = sadd.s32 1, %s26
    %s36 = scalar_select %p33, %s35, %s26
    %p37 = scmp.ge.s32.totalorder %s36, 2
    %s38 = scalar_select %p37, 0, %s36
    %s39 = ssub.s32 %s26, %s38
    %s40 = ssub.s32 %s27, %s34
    %s41 = sor.u32 %s39, %s40
    %p42 = scmp.eq.s32.totalorder %s41, 0
    %s44 = sadd.s32 %s43, 1
    %s45 = scalar_select %p42, %s43, %s44
    %p48 = pneg %p42
    %p49 = scmp.eq.s32.totalorder %s19, 1
    %p50 = por %p48, %p49
    %p51 = scmp.ne.s32.totalorder %s43, %s46
    %p52 = scmp.eq.s32.totalorder %s19, 0
    %p53 = por %p51, %p52
    %p54 = scmp.ne.s32.totalorder %s43, %s46
    %p55 = scmp.eq.s32.totalorder %s24, 1
    %p56 = por %p54, %p55
    %p57 = scmp.ne.s32.totalorder %s46, %s47
    %p58 = scmp.eq.s32.totalorder %s24, 0
    %p59 = por %p57, %p58
    %p60 = scmp.ne.s32.totalorder %s46, %s47
    %p61 = scmp.eq.s32.totalorder %s25, 1
    %p62 = por %p60, %p61
    %p64 = scmp.ne.s32.totalorder %s47, %s63
    %p65 = scmp.eq.s32.totalorder %s25, 0
    %p66 = por %p64, %p65
    %s67 = ssub.s32 %s26, %s38
    %s68 = ssub.s32 %s27, %s34
    %s69 = sor.u32 %s67, %s68
    %p70 = scmp.eq.s32.totalorder %s69, 0
    %s72 = sadd.s32 %s71, 1
    %s73 = scalar_select %p70, %s71, %s72
    %p76 = pneg %p70
    %p77 = scmp.eq.s32.totalorder %s19, 1
    %p78 = por %p76, %p77
    %p79 = scmp.ne.s32.totalorder %s71, %s74
    %p80 = scmp.eq.s32.totalorder %s19, 0
    %p81 = por %p79, %p80
    %p82 = scmp.ne.s32.totalorder %s71, %s74
    %p83 = scmp.eq.s32.totalorder %s24, 1
    %p84 = por %p82, %p83
    %p85 = scmp.ne.s32.totalorder %s74, %s75
    %p86 = scmp.eq.s32.totalorder %s24, 0
    %p87 = por %p85, %p86
    %p88 = scmp.ne.s32.totalorder %s74, %s75
    %p89 = scmp.eq.s32.totalorder %s25, 1
    %p90 = por %p88, %p89
    %p92 = scmp.ne.s32.totalorder %s75, %s91
    %p93 = scmp.eq.s32.totalorder %s25, 0
    %p94 = por %p92, %p93
    %s96 = sadd.s32 %s95, 1
    %p99 = scmp.eq.s32.totalorder %s19, 1
    %p100 = scmp.ne.s32.totalorder %s95, %s97
    %p101 = scmp.eq.s32.totalorder %s19, 0
    %p102 = por %p100, %p101
    %p103 = scmp.ne.s32.totalorder %s95, %s97
    %p104 = scmp.eq.s32.totalorder %s24, 1
    %p105 = por %p103, %p104
    %p106 = scmp.ne.s32.totalorder %s97, %s98
    %p107 = scmp.eq.s32.totalorder %s24, 0
    %p108 = por %p106, %p107
    %p109 = scmp.ne.s32.totalorder %s97, %s98
    %p110 = scmp.eq.s32.totalorder %s25, 1
    %p111 = por %p109, %p110
    %p113 = scmp.ne.s32.totalorder %s98, %s112
    %p114 = scmp.eq.s32.totalorder %s25, 0
    %p115 = por %p113, %p114
    %s117 = sadd.s32 %s116, 1
    %p120 = scmp.eq.s32.totalorder %s19, 1
    %p121 = scmp.ne.s32.totalorder %s116, %s118
    %p122 = scmp.eq.s32.totalorder %s19, 0
    %p123 = por %p121, %p122
    %p124 = scmp.ne.s32.totalorder %s116, %s118
    %p125 = scmp.eq.s32.totalorder %s24, 1
    %p126 = por %p124, %p125
    %p127 = scmp.ne.s32.totalorder %s118, %s119
    %p128 = scmp.eq.s32.totalorder %s24, 0
    %p129 = por %p127, %p128
    %p130 = scmp.ne.s32.totalorder %s118, %s119
    %p131 = scmp.eq.s32.totalorder %s25, 1
    %p132 = por %p130, %p131
    %p134 = scmp.ne.s32.totalorder %s119, %s133
    %p135 = scmp.eq.s32.totalorder %s25, 0
    %p136 = por %p134, %p135
    %s138 = sadd.s32 %s137, 1
    %p141 = scmp.eq.s32.totalorder %s19, 1
    %p142 = scmp.ne.s32.totalorder %s137, %s139
    %p143 = scmp.eq.s32.totalorder %s19, 0
    %p144 = por %p142, %p143
    %p145 = scmp.ne.s32.totalorder %s137, %s139
    %p146 = scmp.eq.s32.totalorder %s24, 1
    %p147 = por %p145, %p146
    %p148 = scmp.ne.s32.totalorder %s139, %s140
    %p149 = scmp.eq.s32.totalorder %s24, 0
    %p150 = por %p148, %p149
    %p151 = scmp.ne.s32.totalorder %s139, %s140
    %p152 = scmp.eq.s32.totalorder %s25, 1
    %p153 = por %p151, %p152
    %p155 = scmp.ne.s32.totalorder %s140, %s154
    %p156 = scmp.eq.s32.totalorder %s25, 0
    %p157 = por %p155, %p156
    %s159 = sadd.s32 %s158, 1
    %p162 = scmp.eq.s32.totalorder %s19, 1
    %p163 = scmp.ne.s32.totalorder %s158, %s160
    %p164 = scmp.eq.s32.totalorder %s19, 0
    %p165 = por %p163, %p164
    %p166 = scmp.ne.s32.totalorder %s158, %s160
    %p167 = scmp.eq.s32.totalorder %s24, 1
    %p168 = por %p166, %p167
    %p169 = scmp.ne.s32.totalorder %s160, %s161
    %p170 = scmp.eq.s32.totalorder %s24, 0
    %p171 = por %p169, %p170
    %p172 = scmp.ne.s32.totalorder %s160, %s161
    %p173 = scmp.eq.s32.totalorder %s25, 1
    %p174 = por %p172, %p173
    %p176 = scmp.ne.s32.totalorder %s161, %s175
    %p177 = scmp.eq.s32.totalorder %s25, 0
    %p178 = por %p176, %p177
    %s180 = sadd.s32 %s179, 1
    %p183 = scmp.eq.s32.totalorder %s19, 1
    %p184 = scmp.ne.s32.totalorder %s179, %s181
    %p185 = scmp.eq.s32.totalorder %s19, 0
    %p186 = por %p184, %p185
    %p187 = scmp.ne.s32.totalorder %s179, %s181
    %p188 = scmp.eq.s32.totalorder %s24, 1
    %p189 = por %p187, %p188
    %p190 = scmp.ne.s32.totalorder %s181, %s182
    %p191 = scmp.eq.s32.totalorder %s24, 0
    %p192 = por %p190, %p191
    %p193 = scmp.ne.s32.totalorder %s181, %s182
    %p194 = scmp.eq.s32.totalorder %s25, 1
    %p195 = por %p193, %p194
    %p197 = scmp.ne.s32.totalorder %s182, %s196
    %p198 = scmp.eq.s32.totalorder %s25, 0
    %p199 = por %p197, %p198
    %s201 = sadd.s32 %s200, 1
    %p204 = scmp.eq.s32.totalorder %s19, 1
    %p205 = scmp.ne.s32.totalorder %s200, %s202
    %p206 = scmp.eq.s32.totalorder %s19, 0
    %p207 = por %p205, %p206
    %p208 = scmp.ne.s32.totalorder %s200, %s202
    %p209 = scmp.eq.s32.totalorder %s24, 1
    %p210 = por %p208, %p209
    %p211 = scmp.ne.s32.totalorder %s202, %s203
    %p212 = scmp.eq.s32.totalorder %s24, 0
    %p213 = por %p211, %p212
    %p214 = scmp.ne.s32.totalorder %s202, %s203
    %p215 = scmp.eq.s32.totalorder %s25, 1
    %p216 = por %p214, %p215
    %p218 = scmp.ne.s32.totalorder %s203, %s217
    %p219 = scmp.eq.s32.totalorder %s25, 0
    %p220 = por %p218, %p219
    %s222 = sadd.s32 %s221, 1
    %p225 = scmp.eq.s32.totalorder %s19, 1
    %p226 = scmp.ne.s32.totalorder %s221, %s223
    %p227 = scmp.eq.s32.totalorder %s19, 0
    %p228 = por %p226, %p227
    %p229 = scmp.ne.s32.totalorder %s221, %s223
    %p230 = scmp.eq.s32.totalorder %s24, 1
    %p231 = por %p229, %p230
    %p232 = scmp.ne.s32.totalorder %s223, %s224
    %p233 = scmp.eq.s32.totalorder %s24, 0
    %p234 = por %p232, %p233
    %p235 = scmp.ne.s32.totalorder %s223, %s224
    %p236 = scmp.eq.s32.totalorder %s25, 1
    %p237 = por %p235, %p236
    %p239 = scmp.ne.s32.totalorder %s224, %s238
    %p240 = scmp.eq.s32.totalorder %s25, 0
    %p241 = por %p239, %p240
    %s243 = sadd.s32 %s242, 1
    %p246 = scmp.eq.s32.totalorder %s19, 1
    %p247 = scmp.ne.s32.totalorder %s242, %s244
    %p248 = scmp.eq.s32.totalorder %s19, 0
    %p249 = por %p247, %p248
    %p250 = scmp.ne.s32.totalorder %s242, %s244
    %p251 = scmp.eq.s32.totalorder %s24, 1
    %p252 = por %p250, %p251
    %p253 = scmp.ne.s32.totalorder %s244, %s245
    %p254 = scmp.eq.s32.totalorder %s24, 0
    %p255 = por %p253, %p254
    %p256 = scmp.ne.s32.totalorder %s244, %s245
    %p257 = scmp.eq.s32.totalorder %s25, 1
    %p258 = por %p256, %p257
    %p260 = scmp.ne.s32.totalorder %s245, %s259
    %p261 = scmp.eq.s32.totalorder %s25, 0
    %p262 = por %p260, %p261
    %s264 = sadd.s32 %s263, 1
    %p267 = scmp.eq.s32.totalorder %s19, 1
    %p268 = scmp.ne.s32.totalorder %s263, %s265
    %p269 = scmp.eq.s32.totalorder %s19, 0
    %p270 = por %p268, %p269
    %p271 = scmp.ne.s32.totalorder %s263, %s265
    %p272 = scmp.eq.s32.totalorder %s24, 1
    %p273 = por %p271, %p272
    %p274 = scmp.ne.s32.totalorder %s265, %s266
    %p275 = scmp.eq.s32.totalorder %s24, 0
    %p276 = por %p274, %p275
    %p277 = scmp.ne.s32.totalorder %s265, %s266
    %p278 = scmp.eq.s32.totalorder %s25, 1
    %p279 = por %p277, %p278
    %p281 = scmp.ne.s32.totalorder %s266, %s280
    %p282 = scmp.eq.s32.totalorder %s25, 0
    %p283 = por %p281, %p282
    %s284 = ssub.s32 %s26, %s38
    %s285 = ssub.s32 %s27, %s34
    %s286 = sor.u32 %s284, %s285
    %p287 = scmp.eq.s32.totalorder %s286, 0
    %s289 = sadd.s32 %s288, 1
    %s290 = scalar_select %p287, %s288, %s289
    %p293 = pneg %p287
    %p294 = scmp.eq.s32.totalorder %s19, 1
    %p295 = por %p293, %p294
    %p296 = scmp.ne.s32.totalorder %s288, %s291
    %p297 = scmp.eq.s32.totalorder %s19, 0
    %p298 = por %p296, %p297
    %p299 = scmp.ne.s32.totalorder %s288, %s291
    %p300 = scmp.eq.s32.totalorder %s24, 1
    %p301 = por %p299, %p300
    %p302 = scmp.ne.s32.totalorder %s291, %s292
    %p303 = scmp.eq.s32.totalorder %s24, 0
    %p304 = por %p302, %p303
    %p305 = scmp.ne.s32.totalorder %s291, %s292
    %p306 = scmp.eq.s32.totalorder %s25, 1
    %p307 = por %p305, %p306
    %p309 = scmp.ne.s32.totalorder %s292, %s308
    %p310 = scmp.eq.s32.totalorder %s25, 0
    %p311 = por %p309, %p310
    %s312 = ssub.s32 %s26, %s38
    %s313 = ssub.s32 %s27, %s34
    %s314 = sor.u32 %s312, %s313
    %p315 = scmp.eq.s32.totalorder %s314, 0
    %s317 = sadd.s32 %s316, 1
    %s318 = scalar_select %p315, %s316, %s317
    %p321 = pneg %p315
    %p322 = scmp.eq.s32.totalorder %s19, 1
    %p323 = por %p321, %p322
    %p324 = scmp.ne.s32.totalorder %s316, %s319
    %p325 = scmp.eq.s32.totalorder %s19, 0
    %p326 = por %p324, %p325
    %p327 = scmp.ne.s32.totalorder %s316, %s319
    %p328 = scmp.eq.s32.totalorder %s24, 1
    %p329 = por %p327, %p328
    %p330 = scmp.ne.s32.totalorder %s319, %s320
    %p331 = scmp.eq.s32.totalorder %s24, 0
    %p332 = por %p330, %p331
    %p333 = scmp.ne.s32.totalorder %s319, %s320
    %p334 = scmp.eq.s32.totalorder %s25, 1
    %p335 = por %p333, %p334
    %p337 = scmp.ne.s32.totalorder %s320, %s336
    %p338 = scmp.eq.s32.totalorder %s25, 0
    %p339 = por %p337, %p338
    %p340 = scmp.le.s32.totalorder 1, %s19
    %p341 = scmp.lt.s32.totalorder %s19, 3
    %p342 = pnand %p340, %p341
    %p343 = pneg %p342
    // Predicated region
    $region9: #{_lambda_.6} parent=5 // pred_check
      _
    $region10: #{_lambda_.6} parent=5 // pred_check_branch
      %345 = sbr.rel (%p342) target = $region12
    $region11: #{_lambda_.6} parent=5 // pred_region
      %s346 = ssub.s32 %s19, 1
      // Predicated region
      $region13: #{_lambda_.6} parent=11 // pred_check
        %p347 = pneg %p108
      $region14: #{_lambda_.6} parent=11 // pred_check_branch
        %349 = sbr.rel (%p347) target = $region16
      $region15: #{_lambda_.6} parent=11 // pred_region
        _
      $region16: #{_lambda_.6} parent=11 // pred_fallthru
        _
      // Predicated region
      $region17: #{_lambda_.6} parent=11 // pred_check
        %p350 = pneg %p129
      $region18: #{_lambda_.6} parent=11 // pred_check_branch
        %352 = sbr.rel (%p350) target = $region20
      $region19: #{_lambda_.6} parent=11 // pred_region
        _
      $region20: #{_lambda_.6} parent=11 // pred_fallthru
        _
      // Predicated region
      $region21: #{_lambda_.6} parent=11 // pred_check
        %p353 = pneg %p150
      $region22: #{_lambda_.6} parent=11 // pred_check_branch
        %355 = sbr.rel (%p353) target = $region24
      $region23: #{_lambda_.6} parent=11 // pred_region
        _
      $region24: #{_lambda_.6} parent=11 // pred_fallthru
        _
      // Predicated region
      $region25: #{_lambda_.6} parent=11 // pred_check
        %p356 = pneg %p171
      $region26: #{_lambda_.6} parent=11 // pred_check_branch
        %358 = sbr.rel (%p356) target = $region28
      $region27: #{_lambda_.6} parent=11 // pred_region
        _
      $region28: #{_lambda_.6} parent=11 // pred_fallthru
        _
      // Predicated region
      $region29: #{_lambda_.6} parent=11 // pred_check
        %p359 = pneg %p192
      $region30: #{_lambda_.6} parent=11 // pred_check_branch
        %361 = sbr.rel (%p359) target = $region32
      $region31: #{_lambda_.6} parent=11 // pred_region
        _
      $region32: #{_lambda_.6} parent=11 // pred_fallthru
        _
      // Predicated region
      $region33: #{_lambda_.6} parent=11 // pred_check
        %p362 = pneg %p213
      $region34: #{_lambda_.6} parent=11 // pred_check_branch
        %364 = sbr.rel (%p362) target = $region36
      $region35: #{_lambda_.6} parent=11 // pred_region
        _
      $region36: #{_lambda_.6} parent=11 // pred_fallthru
        _
      // Predicated region
      $region37: #{_lambda_.6} parent=11 // pred_check
        %p365 = pneg %p234
      $region38: #{_lambda_.6} parent=11 // pred_check_branch
        %367 = sbr.rel (%p365) target = $region40
      $region39: #{_lambda_.6} parent=11 // pred_region
        _
      $region40: #{_lambda_.6} parent=11 // pred_fallthru
        _
      // Predicated region
      $region41: #{_lambda_.6} parent=11 // pred_check
        %p368 = pneg %p255
      $region42: #{_lambda_.6} parent=11 // pred_check_branch
        %370 = sbr.rel (%p368) target = $region44
      $region43: #{_lambda_.6} parent=11 // pred_region
        _
      $region44: #{_lambda_.6} parent=11 // pred_fallthru
        _
      // Predicated region
      $region45: #{_lambda_.6} parent=11 // pred_check
        %p371 = pneg %p276
      $region46: #{_lambda_.6} parent=11 // pred_check_branch
        %373 = sbr.rel (%p371) target = $region48
      $region47: #{_lambda_.6} parent=11 // pred_region
        _
      $region48: #{_lambda_.6} parent=11 // pred_fallthru
        _
    $region12: #{_lambda_.6} parent=5 // pred_fallthru
      _
    %p374 = scmp.lt.s32.totalorder %s19, 2
    // Predicated region
    $region49: #{_lambda_.6} parent=5 // pred_check
      %p375 = pneg %p374
    $region50: #{_lambda_.6} parent=5 // pred_check_branch
      %377 = sbr.rel (%p375) target = $region52
    $region51: #{_lambda_.6} parent=5 // pred_region
      // Predicated region
      $region53: #{_lambda_.6} parent=51 // pred_check
        %p378 = pneg %p53
      $region54: #{_lambda_.6} parent=51 // pred_check_branch
        %380 = sbr.rel (%p378) target = $region56
      $region55: #{_lambda_.6} parent=51 // pred_region
        %p381 = scmp.lt.s32.totalorder %s26, 1
        %s382 = scalar_select %p381, %s26, 1
        %p383 = scmp.lt.s32.totalorder %s27, 0
        %s384 = scalar_select %p383, %s27, 0
        %s385 = sadd.s32 %s384, %s382
        %s386 = smul.addr %s385, 8
        %s387 = scalar_lea.vmem %s0, %s386
      $region56: #{_lambda_.6} parent=51 // pred_fallthru
        _
      // Predicated region
      $region57: #{_lambda_.6} parent=51 // pred_check
        %p388 = pneg %p81
      $region58: #{_lambda_.6} parent=51 // pred_check_branch
        %390 = sbr.rel (%p388) target = $region60
      $region59: #{_lambda_.6} parent=51 // pred_region
        %p391 = scmp.lt.s32.totalorder %s26, 1
        %s392 = scalar_select %p391, %s26, 1
        %p393 = scmp.lt.s32.totalorder %s27, 0
        %s394 = scalar_select %p393, %s27, 0
        %s395 = sadd.s32 %s394, %s392
        %s396 = smul.addr %s395, 8
        %s397 = scalar_lea.vmem %s1, %s396
      $region60: #{_lambda_.6} parent=51 // pred_fallthru
        _
    $region52: #{_lambda_.6} parent=5 // pred_fallthru
      _
    %p398 = scmp.le.s32.totalorder 1, %s19
    %p399 = scmp.lt.s32.totalorder %s19, 3
    %p400 = pnand %p398, %p399
    %p401 = pneg %p400
    // Predicated region
    $region61: #{_lambda_.6} parent=5 // pred_check
      _
    $region62: #{_lambda_.6} parent=5 // pred_check_branch
      %403 = sbr.rel (%p400) target = $region64
    $region63: #{_lambda_.6} parent=5 // pred_region
      %s404 = ssub.s32 %s19, 1
      %p405 = scmp.lt.s32.totalorder %s28, 1
      %s406 = scalar_select %p405, %s28, 1
      %p407 = scmp.lt.s32.totalorder %s29, 0
      %s408 = scalar_select %p407, %s29, 0
      %s409 = sadd.s32 %s408, %s406
      %s410 = smul.addr %s409, 8
      %s411 = scalar_lea.vmem %s0, %s410
      %p412 = pneg %p59
      %p413 = pneg %p56
      %p414 = scmp.lt.s32.totalorder %s28, 1
      %s415 = scalar_select %p414, %s28, 1
      %p416 = scmp.lt.s32.totalorder %s29, 0
      %s417 = scalar_select %p416, %s29, 0
      %s418 = sadd.s32 %s417, %s415
      %s419 = smul.addr %s418, 8
      %s420 = scalar_lea.vmem %s1, %s419
      %p421 = pneg %p87
      %p422 = pneg %p84
      %p423 = pneg %p108
      %p424 = pneg %p105
      %p425 = pneg %p129
      %p426 = pneg %p126
      %p427 = pneg %p150
      %p428 = pneg %p147
      %p429 = pneg %p171
      %p430 = pneg %p168
      %p431 = pneg %p192
      %p432 = pneg %p189
      %p433 = pneg %p213
      %p434 = pneg %p210
      %p435 = pneg %p234
      %p436 = pneg %p231
      %p437 = pneg %p255
      %p438 = pneg %p252
      %p439 = pneg %p276
      %p440 = pneg %p273
      %p441 = pneg %p304
      %p442 = pneg %p301
      %p443 = scmp.lt.s32.totalorder %s28, 1
      %s444 = scalar_select %p443, %s28, 1
      %p445 = scmp.lt.s32.totalorder %s29, 0
      %s446 = scalar_select %p445, %s29, 0
      %s447 = sadd.s32 %s446, %s444
      %s448 = smul.addr %s447, 8
      %s449 = scalar_lea.vmem %s11, %s448
      %p450 = pneg %p332
      %p451 = pneg %p329
      %p452 = scmp.lt.s32.totalorder %s28, 1
      %s453 = scalar_select %p452, %s28, 1
      %p454 = scmp.lt.s32.totalorder %s29, 0
      %s455 = scalar_select %p454, %s29, 0
      %s456 = sadd.s32 %s455, %s453
      %s457 = smul.addr %s456, 8
      %s458 = scalar_lea.vmem %s12, %s457
      %p459 = scmp.lt.s32.totalorder %s28, 1
      %s460 = scalar_select %p459, %s28, 1
      %p461 = scmp.lt.s32.totalorder %s29, 0
      %s462 = scalar_select %p461, %s29, 0
      %s463 = sadd.s32 %s462, %s460
      %s464 = smul.addr %s463, 8
      %s465 = scalar_lea.vmem %s0, %s464
      %p466 = scmp.lt.s32.totalorder %s28, 1
      %s467 = scalar_select %p466, %s28, 1
      %p468 = scmp.lt.s32.totalorder %s29, 0
      %s469 = scalar_select %p468, %s29, 0
      %s470 = sadd.s32 %s469, %s467
      %s471 = smul.addr %s470, 8
      %s472 = scalar_lea.vmem %s1, %s471
      %p473 = scmp.lt.s32.totalorder %s28, 1
      %s474 = scalar_select %p473, %s28, 1
      %p475 = scmp.lt.s32.totalorder %s29, 0
      %s476 = scalar_select %p475, %s29, 0
      %s477 = sadd.s32 %s476, %s474
      %s478 = smul.addr %s477, 8
      %s479 = scalar_lea.vmem %s11, %s478
      %p480 = scmp.lt.s32.totalorder %s28, 1
      %s481 = scalar_select %p480, %s28, 1
      %p482 = scmp.lt.s32.totalorder %s29, 0
      %s483 = scalar_select %p482, %s29, 0
      %s484 = sadd.s32 %s483, %s481
      %s485 = smul.addr %s484, 8
      %s486 = scalar_lea.vmem %s12, %s485
      %v488 = vld [vmem:[%s465] sm:$0xff]
      %v489 = vld [vmem:[%s472] sm:$0xff]
      %v490 = vadd.f32 %v488, %v489
      %p491 = scmp.eq.s32.totalorder %s29, 0
      // Predicated region
      $region65: #{_lambda_.6} parent=63 // pred_check
        %p492 = pneg %p491
      $region66: #{_lambda_.6} parent=63 // pred_check_branch
        %494 = sbr.rel (%p492) target = $region68
      $region67: #{_lambda_.6} parent=63 // pred_region
        %vm495 = vcmask 523264
        %496 = vst.msk [vmem:[#allocation6] sm:$0xff] %vm495, 0.0
        %497 = vst.msk [vmem:[#allocation6 + $0x8] sm:$0xff] %vm495, 0.0
        %vm498 = vcmask 518144
        %499 = vst.msk [vmem:[#allocation7] sm:$0x7] %vm498, 0.0
      $region68: #{_lambda_.6} parent=63 // pred_fallthru
        _
      %v500 = vmul.f32 %v490, %v490
      %vm501 = vcmask 261120
      %v502 = vsel %vm501, %v500, 0.0
      %503 = vadd.xlane.f32.xlu0 %v502
      %v504 = vpop.xlane.xlu0 %503
      %v505 = vrcp.pop 32.0
      %v506 = vmul.f32 %v504, %v505
      %v507 = vadd.f32 %v506, 1e-05
      %v508 = vrsqrt.pop %v507
      %v509 = vmul.f32 %v490, %v508
      %v510 = vld [vmem:[%s2] sm:$0x1]
      %v512 = vlaneseq
      %v513 = vshrl.u32 %v512, 7
      %v514 = vsub.s32 0, %v513
      %v515 = vrot.slane %v510, %v514
      %v517 = vmul.f32 %v509, %v515
      %v518 = vpack.c.bf16 %v517, %v517
      %v519 = vld [vmem:[%s3] sm:$0xf]
      %v520 = vld [vmem:[%s3 + $0x4] sm:$0xf]
      %v521 = vld [vmem:[%s3 + $0x8] sm:$0xf]
      %v522 = vld [vmem:[%s3 + $0xc] sm:$0xf]
      %v527 = vunpack.c.l.b16 %v519
      %v528 = vunpack.c.l.b16 %v520
      %v529 = vunpack.c.l.b16 %v521
      %v530 = vunpack.c.l.b16 %v522
      %v531 = vpack.c.b16 %v528, %v527
      %v532 = vpack.c.b16 %v530, %v529
      %v536 = vsel %vm501, %v518, 0
      %538 = vmatprep.subr.bf16.mxu0 0
      %539 = vmatpush1.bf16.msra.mxu0 %v531
      %540 = vmatprep.subr.bf16.mxu0 0
      %541 = vmatpush1.bf16.msra.mxu0 %v532
      %542 = vmatprep.subr.bf16.mxu0 0
      %543 = vmatpush1.bf16.msra.mxu0 0
      %544 = vmatprep.subr.bf16.mxu0 0
      %545 = vmatpush1.bf16.msra.mxu0 0
      %546 = vmatprep.subr.bf16.mxu0 0
      %547 = vmatpush1.bf16.msra.mxu0 0
      %548 = vmatprep.subr.bf16.mxu0 0
      %549 = vmatpush1.bf16.msra.mxu0 0
      %550 = vmatprep.subr.bf16.mxu0 0
      %551 = vmatpush1.bf16.msra.mxu0 0
      %552 = vmatprep.subr.bf16.mxu0 0
      %553 = vmatpush1.bf16.msra.mxu0 0
      %554 = vmatprep.subr.bf16.mxu0 0
      %555 = vmatpush1.bf16.msra.mxu0 0
      %556 = vmatprep.subr.bf16.mxu0 0
      %557 = vmatpush1.bf16.msra.mxu0 0
      %558 = vmatprep.subr.bf16.mxu0 0
      %559 = vmatpush1.bf16.msra.mxu0 0
      %560 = vmatprep.subr.bf16.mxu0 0
      %561 = vmatpush1.bf16.msra.mxu0 0
      %562 = vmatprep.subr.bf16.mxu0 0
      %563 = vmatpush1.bf16.msra.mxu0 0
      %564 = vmatprep.subr.bf16.mxu0 0
      %565 = vmatpush1.bf16.msra.mxu0 0
      %566 = vmatprep.subr.bf16.mxu0 0
      %567 = vmatpush1.bf16.msra.mxu0 0
      %568 = vmatprep.subr.bf16.mxu0 0
      %569 = vmatpush1.bf16.msra.mxu0 0
      %570 = vmatprep.mubr.bf16.mxu0 0
      %571 = vmatmul.mubr.bf16.gmra.mrb[0].mxu0 %v536
      %v572 = vpop.f32.mrb[0].mxu0
      %v573 = vadd.f32 0.0, %v572
      %v574 = vpop.f32.mrb[0].mxu0
      %v575 = vpop.f32.mrb[0].mxu0
      %v576 = vpop.f32.mrb[0].mxu0
      %577 = vdwg.mxu0
      %v578 = vld [vmem:[#allocation7] sm:$0x7]
      %v580 = vrot.slane %v573, 5
      %vm582 = vcmask 1042432
      %v583 = vsel %vm582, %v578, %v580
      %vm584 = vcmask 523269
      %585 = vst.msk [vmem:[#allocation7 - $0x5] sm:$0xe0] %vm584, %v573
      %v586 = vld [vmem:[%s4] sm:$0x1]
      %v587 = vlaneseq
      %v588 = vshrl.u32 %v587, 7
      %v589 = vsub.s32 0, %v588
      %v590 = vrot.slane %v586, %v589
      %v591 = vmul.f32 %v583, %v590
      %v592 = vadd.f32 %v591, 0.0
      %v593 = vld [vmem:[%s4 + $0x1] sm:$0x1]
      %v594 = vlaneseq
      %v595 = vshrl.u32 %v594, 7
      %v596 = vsub.s32 0, %v595
      %v597 = vrot.slane %v593, %v596
      %v598 = vmul.f32 %v583, %v597
      %v599 = vmul.f32 %v580, %v597
      %vm602 = vcmask 1046528
      %v603 = vrot.slane %v598, 1
      %v604 = vrot.slane %v599, 1
      %v605 = vsel %vm602, %v603, %v604
      %v607 = vadd.f32 %v592, %v605
      %v608 = vld [vmem:[%s4 + $0x2] sm:$0x1]
      %v609 = vlaneseq
      %v610 = vshrl.u32 %v609, 7
      %v611 = vsub.s32 0, %v610
      %v612 = vrot.slane %v608, %v611
      %v613 = vmul.f32 %v583, %v612
      %v614 = vmul.f32 %v580, %v612
      %vm617 = vcmask 1045504
      %v618 = vrot.slane %v613, 2
      %v619 = vrot.slane %v614, 2
      %v620 = vsel %vm617, %v618, %v619
      %v622 = vadd.f32 %v607, %v620
      %v623 = vld [vmem:[%s4 + $0x3] sm:$0x1]
      %v624 = vlaneseq
      %v625 = vshrl.u32 %v624, 7
      %v626 = vsub.s32 0, %v625
      %v627 = vrot.slane %v623, %v626
      %v628 = vmul.f32 %v583, %v627
      %v629 = vmul.f32 %v580, %v627
      %vm632 = vcmask 1044480
      %v633 = vrot.slane %v628, 3
      %v634 = vrot.slane %v629, 3
      %v635 = vsel %vm632, %v633, %v634
      %v637 = vadd.f32 %v622, %v635
      %v638 = vld [vmem:[%s5] sm:$0x1]
      %v640 = vlaneseq
      %v641 = vshrl.u32 %v640, 7
      %v642 = vsub.s32 0, %v641
      %v643 = vrot.slane %v638, %v642
      %v645 = vadd.f32 %v637, %v643
      %v646 = vxor.u32 %v645, 2147483648
      %v647 = vmul.f32 %v646, 1.442695
      %v648 = vpow.pop %v647
      %v649 = vadd.f32 %v648, 1.0
      %v650 = vrcp.pop %v649
      %v651 = vmul.f32 1.0, %v650
      %v652 = vmul.f32 %v645, %v651
      %v653 = vpack.c.bf16 %v652, %v652
      %v654 = vld [vmem:[%s6] sm:$0xf]
      %v655 = vld [vmem:[%s6 + $0x4] sm:$0xf]
      %v656 = vld [vmem:[%s6 + $0x8] sm:$0xf]
      %v657 = vld [vmem:[%s6 + $0xc] sm:$0xf]
      %v658 = vld [vmem:[%s6 + $0x10] sm:$0xf]
      %v659 = vld [vmem:[%s6 + $0x14] sm:$0xf]
      %v660 = vld [vmem:[%s6 + $0x18] sm:$0xf]
      %v661 = vld [vmem:[%s6 + $0x1c] sm:$0xf]
      %v670 = vunpack.c.l.b16 %v654
      %v671 = vunpack.c.l.b16 %v655
      %v672 = vunpack.c.l.b16 %v656
      %v673 = vunpack.c.l.b16 %v657
      %v674 = vunpack.c.l.b16 %v658
      %v675 = vunpack.c.l.b16 %v659
      %v676 = vunpack.c.l.b16 %v660
      %v677 = vunpack.c.l.b16 %v661
      %v678 = vpack.c.b16 %v671, %v670
      %v679 = vpack.c.b16 %v673, %v672
      %v680 = vpack.c.b16 %v675, %v674
      %v681 = vpack.c.b16 %v677, %v676
      %vm686 = vcmask 523264
      %v688 = vsel %vm686, %v653, 0
      %690 = vmatprep.subr.bf16.mxu0 0
      %691 = vmatpush1.bf16.msra.mxu0 %v678
      %692 = vmatprep.subr.bf16.mxu0 0
      %693 = vmatpush1.bf16.msra.mxu0 %v679
      %694 = vmatprep.subr.bf16.mxu0 0
      %695 = vmatpush1.bf16.msra.mxu0 %v680
      %696 = vmatprep.subr.bf16.mxu0 0
      %697 = vmatpush1.bf16.msra.mxu0 %v681
      %698 = vmatprep.subr.bf16.mxu0 0
      %699 = vmatpush1.bf16.msra.mxu0 0
      %700 = vmatprep.subr.bf16.mxu0 0
      %701 = vmatpush1.bf16.msra.mxu0 0
      %702 = vmatprep.subr.bf16.mxu0 0
      %703 = vmatpush1.bf16.msra.mxu0 0
      %704 = vmatprep.subr.bf16.mxu0 0
      %705 = vmatpush1.bf16.msra.mxu0 0
      %706 = vmatprep.subr.bf16.mxu0 0
      %707 = vmatpush1.bf16.msra.mxu0 0
      %708 = vmatprep.subr.bf16.mxu0 0
      %709 = vmatpush1.bf16.msra.mxu0 0
      %710 = vmatprep.subr.bf16.mxu0 0
      %711 = vmatpush1.bf16.msra.mxu0 0
      %712 = vmatprep.subr.bf16.mxu0 0
      %713 = vmatpush1.bf16.msra.mxu0 0
      %714 = vmatprep.subr.bf16.mxu0 0
      %715 = vmatpush1.bf16.msra.mxu0 0
      %716 = vmatprep.subr.bf16.mxu0 0
      %717 = vmatpush1.bf16.msra.mxu0 0
      %718 = vmatprep.subr.bf16.mxu0 0
      %719 = vmatpush1.bf16.msra.mxu0 0
      %720 = vmatprep.subr.bf16.mxu0 0
      %721 = vmatpush1.bf16.msra.mxu0 0
      %722 = vmatprep.mubr.bf16.mxu0 0
      %723 = vmatmul.mubr.bf16.gmra.mrb[0].mxu0 %v688
      %v724 = vpop.f32.mrb[0].mxu0
      %v725 = vadd.f32 0.0, %v724
      %v726 = vpop.f32.mrb[0].mxu0
      %v727 = vpop.f32.mrb[0].mxu0
      %v728 = vpop.f32.mrb[0].mxu0
      %729 = vdwg.mxu0
      %v730 = vlaneseq
      %v731 = vshrl.u32 %v730, 7
      %v732 = vsub.s32 0, %v731
      %v733 = vrot.slane %v725, %v732
      %s735 = sor.u32 256, 16
      %736 = vbcast.lane.b32.xlu0 %v733, %s735
      %v737 = vpop.permute.xlu0 %736
      %s739 = sor.u32 256, 24
      %740 = vbcast.lane.b32.xlu0 %v733, %s739
      %v741 = vpop.permute.xlu0 %740
      %v742 = vlaneseq
      %v743 = vshrl.u32 %v742, 7
      %v744 = vsub.s32 1, %v743
      %v745 = vrot.slane %v725, %v744
      %s747 = sor.u32 256, 16
      %748 = vbcast.lane.b32.xlu0 %v745, %s747
      %v749 = vpop.permute.xlu0 %748
      %s751 = sor.u32 256, 24
      %752 = vbcast.lane.b32.xlu0 %v745, %s751
      %v753 = vpop.permute.xlu0 %752
      %v754 = vlaneseq
      %v755 = vshrl.u32 %v754, 7
      %v756 = vsub.s32 2, %v755
      %v757 = vrot.slane %v725, %v756
      %s759 = sor.u32 256, 16
      %760 = vbcast.lane.b32.xlu0 %v757, %s759
      %v761 = vpop.permute.xlu0 %760
      %s763 = sor.u32 256, 24
      %764 = vbcast.lane.b32.xlu0 %v757, %s763
      %v765 = vpop.permute.xlu0 %764
      %v766 = vlaneseq
      %v767 = vshrl.u32 %v766, 7
      %v768 = vsub.s32 3, %v767
      %v769 = vrot.slane %v725, %v768
      %s771 = sor.u32 256, 16
      %772 = vbcast.lane.b32.xlu0 %v769, %s771
      %v773 = vpop.permute.xlu0 %772
      %s775 = sor.u32 256, 24
      %776 = vbcast.lane.b32.xlu0 %v769, %s775
      %v777 = vpop.permute.xlu0 %776
      %v778 = vlaneseq
      %v779 = vshrl.u32 %v778, 7
      %v780 = vsub.s32 4, %v779
      %v781 = vrot.slane %v725, %v780
      %s783 = sor.u32 256, 16
      %784 = vbcast.lane.b32.xlu0 %v781, %s783
      %v785 = vpop.permute.xlu0 %784
      %s787 = sor.u32 256, 24
      %788 = vbcast.lane.b32.xlu0 %v781, %s787
      %v789 = vpop.permute.xlu0 %788
      %v790 = vlaneseq
      %v791 = vshrl.u32 %v790, 7
      %v792 = vsub.s32 5, %v791
      %v793 = vrot.slane %v725, %v792
      %s795 = sor.u32 256, 16
      %796 = vbcast.lane.b32.xlu0 %v793, %s795
      %v797 = vpop.permute.xlu0 %796
      %s799 = sor.u32 256, 24
      %800 = vbcast.lane.b32.xlu0 %v793, %s799
      %v801 = vpop.permute.xlu0 %800
      %v802 = vlaneseq
      %v803 = vshrl.u32 %v802, 7
      %v804 = vsub.s32 6, %v803
      %v805 = vrot.slane %v725, %v804
      %s807 = sor.u32 256, 16
      %808 = vbcast.lane.b32.xlu0 %v805, %s807
      %v809 = vpop.permute.xlu0 %808
      %s811 = sor.u32 256, 24
      %812 = vbcast.lane.b32.xlu0 %v805, %s811
      %v813 = vpop.permute.xlu0 %812
      %v814 = vlaneseq
      %v815 = vshrl.u32 %v814, 7
      %v816 = vsub.s32 7, %v815
      %v817 = vrot.slane %v725, %v816
      %s819 = sor.u32 256, 16
      %820 = vbcast.lane.b32.xlu0 %v817, %s819
      %v821 = vpop.permute.xlu0 %820
      %s823 = sor.u32 256, 24
      %824 = vbcast.lane.b32.xlu0 %v817, %s823
      %v825 = vpop.permute.xlu0 %824
      %vm826 = vcmask 7168
      %827 = vst.msk [vmem:[#allocation4] sm:$0xff] %vm826, %v737
      %828 = vst.msk [vmem:[#allocation4 + $0x8] sm:$0xff] %vm826, %v741
      %829 = vst.msk [vmem:[#allocation4 + $0x10] sm:$0xff] %vm826, %v749
      %830 = vst.msk [vmem:[#allocation4 + $0x18] sm:$0xff] %vm826, %v753
      %831 = vst.msk [vmem:[#allocation4 + $0x20] sm:$0xff] %vm826, %v761
      %832 = vst.msk [vmem:[#allocation4 + $0x28] sm:$0xff] %vm826, %v765
      %833 = vst.msk [vmem:[#allocation4 + $0x30] sm:$0xff] %vm826, %v773
      %834 = vst.msk [vmem:[#allocation4 + $0x38] sm:$0xff] %vm826, %v777
      %835 = vst.msk [vmem:[#allocation4 + $0x40] sm:$0xff] %vm826, %v785
      %836 = vst.msk [vmem:[#allocation4 + $0x48] sm:$0xff] %vm826, %v789
      %837 = vst.msk [vmem:[#allocation4 + $0x50] sm:$0xff] %vm826, %v797
      %838 = vst.msk [vmem:[#allocation4 + $0x58] sm:$0xff] %vm826, %v801
      %839 = vst.msk [vmem:[#allocation4 + $0x60] sm:$0xff] %vm826, %v809
      %840 = vst.msk [vmem:[#allocation4 + $0x68] sm:$0xff] %vm826, %v813
      %841 = vst.msk [vmem:[#allocation4 + $0x70] sm:$0xff] %vm826, %v821
      %842 = vst.msk [vmem:[#allocation4 + $0x78] sm:$0xff] %vm826, %v825
      %v843 = vld [vmem:[%s7] sm:$0x1]
      %v845 = vlaneseq
      %v846 = vshrl.u32 %v845, 7
      %v847 = vsub.s32 0, %v846
      %v848 = vrot.slane %v843, %v847
      %849 = vrot.lane.b32.xlu0 %v848, 32
      %v850 = vpop.permute.xlu0 %849
      %v852 = vadd.f32 %v725, %v850
      %v853 = vmax.f32 %v852, 0.0
      %vm854 = vcmp.ne.f32.partialorder %v852, %v852
      %v855 = vadd.f32 %v852, 0.0
      %v856 = vand.u32 2147483647, %v852
      %v857 = vsub.f32 0.0, %v856
      %v858 = vmul.f32 %v857, 1.442695
      %v859 = vpow.pop %v858
      %v860 = vadd.f32 %v859, 1.0
      %v861 = vlog2.pop %v860
      %v862 = vmul.f32 %v861, 0.6931472
      %v863 = vmul.f32 -0.5, %v859
      %v864 = vadd.f32 %v863, 1.0
      %v865 = vmul.f32 %v864, %v859
      %v866 = vand.u32 2147483647, %v859
      %vm867 = vcmp.lt.f32.partialorder %v866, 0.0004427343
      %v868 = vsel %vm867, %v865, %v862
      %v869 = vadd.f32 %v853, %v868
      %v870 = vsel %vm854, %v855, %v869
      %v872 = vcombine.high %v870, %v870
      %v874 = vunpack.c.l.s4 1966171168
      %v875 = vunpack.c.0.s8 %v874
      %v876 = vlaneseq
      %v877 = vshrl.u32 %v876, 7
      %v878 = vsub.s32 %v875, %v877
      %v879 = vrot.slane %v870, %v878
      %v881 = vunpack.c.l.s4 1966171168
      %v882 = vunpack.c.0.s8 %v881
      %v883 = vlaneseq
      %v884 = vshrl.u32 %v883, 7
      %v885 = vsub.s32 %v882, %v884
      %v886 = vrot.slane %v872, %v885
      %v887 = vcombine.high %v879, %v879
      %v888 = vcombine.high %v886, %v886
      %v890 = vunpack.c.l.s4 1966171168
      %v891 = vunpack.c.0.s8 %v890
      %v892 = vlaneseq
      %v893 = vshrl.u32 %v892, 7
      %v894 = vsub.s32 %v891, %v893
      %v895 = vrot.slane %v879, %v894
      %v897 = vunpack.c.l.s4 1966171168
      %v898 = vunpack.c.0.s8 %v897
      %v899 = vlaneseq
      %v900 = vshrl.u32 %v899, 7
      %v901 = vsub.s32 %v898, %v900
      %v902 = vrot.slane %v886, %v901
      %v904 = vunpack.c.l.s4 1966171168
      %v905 = vunpack.c.0.s8 %v904
      %v906 = vlaneseq
      %v907 = vshrl.u32 %v906, 7
      %v908 = vsub.s32 %v905, %v907
      %v909 = vrot.slane %v887, %v908
      %v911 = vunpack.c.l.s4 1966171168
      %v912 = vunpack.c.0.s8 %v911
      %v913 = vlaneseq
      %v914 = vshrl.u32 %v913, 7
      %v915 = vsub.s32 %v912, %v914
      %v916 = vrot.slane %v888, %v915
      %v917 = vcombine.high %v895, %v895
      %v918 = vcombine.high %v902, %v902
      %v919 = vcombine.high %v909, %v909
      %v920 = vcombine.high %v916, %v916
      %v921 = vld [vmem:[%s8] sm:$0xff]
      %v922 = vld [vmem:[%s8 + $0x8] sm:$0xff]
      %v923 = vlaneseq
      %v924 = vshrl.u32 %v923, 7
      %v925 = vsub.s32 0, %v924
      %v926 = vrot.slane %v895, %v925
      %v927 = vlaneseq
      %v928 = vshrl.u32 %v927, 7
      %v929 = vsub.s32 0, %v928
      %v930 = vrot.slane %v909, %v929
      %v931 = vlaneseq
      %v932 = vshrl.u32 %v931, 7
      %v933 = vsub.s32 0, %v932
      %v934 = vrot.slane %v917, %v933
      %v935 = vlaneseq
      %v936 = vshrl.u32 %v935, 7
      %v937 = vsub.s32 0, %v936
      %v938 = vrot.slane %v919, %v937
      %v939 = vlaneseq
      %v940 = vshrl.u32 %v939, 7
      %v941 = vsub.s32 0, %v940
      %v942 = vrot.slane %v902, %v941
      %v943 = vlaneseq
      %v944 = vshrl.u32 %v943, 7
      %v945 = vsub.s32 0, %v944
      %v946 = vrot.slane %v916, %v945
      %v947 = vlaneseq
      %v948 = vshrl.u32 %v947, 7
      %v949 = vsub.s32 0, %v948
      %v950 = vrot.slane %v918, %v949
      %v951 = vlaneseq
      %v952 = vshrl.u32 %v951, 7
      %v953 = vsub.s32 0, %v952
      %v954 = vrot.slane %v920, %v953
      %965 = vrot.lane.b32.xlu0 %v921, 32
      %v966 = vpop.permute.xlu0 %965
      %967 = vrot.lane.b32.xlu0 %v922, 32
      %v968 = vpop.permute.xlu0 %967
      %v971 = vmul.f32 %v926, %v966
      %v972 = vmul.f32 %v926, %v968
      %v973 = vmul.f32 %v930, %v966
      %v974 = vmul.f32 %v930, %v968
      %v975 = vmul.f32 %v934, %v966
      %v976 = vmul.f32 %v934, %v968
      %v977 = vmul.f32 %v938, %v966
      %v978 = vmul.f32 %v938, %v968
      %v979 = vmul.f32 %v942, %v966
      %v980 = vmul.f32 %v942, %v968
      %v981 = vmul.f32 %v946, %v966
      %v982 = vmul.f32 %v946, %v968
      %v983 = vmul.f32 %v950, %v966
      %v984 = vmul.f32 %v950, %v968
      %v985 = vmul.f32 %v954, %v966
      %v986 = vmul.f32 %v954, %v968
      %v987 = vmul.f32 %v971, 1.442695
      %v988 = vpow.pop %v987
      %v989 = vmul.f32 %v972, 1.442695
      %v990 = vpow.pop %v989
      %v991 = vmul.f32 %v973, 1.442695
      %v992 = vpow.pop %v991
      %v993 = vmul.f32 %v974, 1.442695
      %v994 = vpow.pop %v993
      %v995 = vmul.f32 %v975, 1.442695
      %v996 = vpow.pop %v995
      %v997 = vmul.f32 %v976, 1.442695
      %v998 = vpow.pop %v997
      %v999 = vmul.f32 %v977, 1.442695
      %v1000 = vpow.pop %v999
      %v1001 = vmul.f32 %v978, 1.442695
      %v1002 = vpow.pop %v1001
      %v1003 = vmul.f32 %v979, 1.442695
      %v1004 = vpow.pop %v1003
      %v1005 = vmul.f32 %v980, 1.442695
      %v1006 = vpow.pop %v1005
      %v1007 = vmul.f32 %v981, 1.442695
      %v1008 = vpow.pop %v1007
      %v1009 = vmul.f32 %v982, 1.442695
      %v1010 = vpow.pop %v1009
      %v1011 = vmul.f32 %v983, 1.442695
      %v1012 = vpow.pop %v1011
      %v1013 = vmul.f32 %v984, 1.442695
      %v1014 = vpow.pop %v1013
      %v1015 = vmul.f32 %v985, 1.442695
      %v1016 = vpow.pop %v1015
      %v1017 = vmul.f32 %v986, 1.442695
      %v1018 = vpow.pop %v1017
      %1035 = vrot.lane.b32.xlu0 %v988, 96
      %v1036 = vpop.permute.xlu0 %1035
      %1037 = vrot.lane.b32.xlu0 %v990, 96
      %v1038 = vpop.permute.xlu0 %1037
      %1039 = vrot.lane.b32.xlu0 %v992, 96
      %v1040 = vpop.permute.xlu0 %1039
      %1041 = vrot.lane.b32.xlu0 %v994, 96
      %v1042 = vpop.permute.xlu0 %1041
      %1043 = vrot.lane.b32.xlu0 %v996, 96
      %v1044 = vpop.permute.xlu0 %1043
      %1045 = vrot.lane.b32.xlu0 %v998, 96
      %v1046 = vpop.permute.xlu0 %1045
      %1047 = vrot.lane.b32.xlu0 %v1000, 96
      %v1048 = vpop.permute.xlu0 %1047
      %1049 = vrot.lane.b32.xlu0 %v1002, 96
      %v1050 = vpop.permute.xlu0 %1049
      %1051 = vrot.lane.b32.xlu0 %v1004, 96
      %v1052 = vpop.permute.xlu0 %1051
      %1053 = vrot.lane.b32.xlu0 %v1006, 96
      %v1054 = vpop.permute.xlu0 %1053
      %1055 = vrot.lane.b32.xlu0 %v1008, 96
      %v1056 = vpop.permute.xlu0 %1055
      %1057 = vrot.lane.b32.xlu0 %v1010, 96
      %v1058 = vpop.permute.xlu0 %1057
      %1059 = vrot.lane.b32.xlu0 %v1012, 96
      %v1060 = vpop.permute.xlu0 %1059
      %1061 = vrot.lane.b32.xlu0 %v1014, 96
      %v1062 = vpop.permute.xlu0 %1061
      %1063 = vrot.lane.b32.xlu0 %v1016, 96
      %v1064 = vpop.permute.xlu0 %1063
      %1065 = vrot.lane.b32.xlu0 %v1018, 96
      %v1066 = vpop.permute.xlu0 %1065
      %1083 = vst.msk [vmem:[#allocation2] sm:$0xff] %vm686, %v1036
      %1084 = vst.msk [vmem:[#allocation2 + $0x8] sm:$0xff] %vm686, %v1038
      %1085 = vst.msk [vmem:[#allocation2 + $0x10] sm:$0xff] %vm686, %v1040
      %1086 = vst.msk [vmem:[#allocation2 + $0x18] sm:$0xff] %vm686, %v1042
      %1087 = vst.msk [vmem:[#allocation2 + $0x20] sm:$0xff] %vm686, %v1044
      %1088 = vst.msk [vmem:[#allocation2 + $0x28] sm:$0xff] %vm686, %v1046
      %1089 = vst.msk [vmem:[#allocation2 + $0x30] sm:$0xff] %vm686, %v1048
      %1090 = vst.msk [vmem:[#allocation2 + $0x38] sm:$0xff] %vm686, %v1050
      %1091 = vst.msk [vmem:[#allocation2 + $0x40] sm:$0xff] %vm686, %v1052
      %1092 = vst.msk [vmem:[#allocation2 + $0x48] sm:$0xff] %vm686, %v1054
      %1093 = vst.msk [vmem:[#allocation2 + $0x50] sm:$0xff] %vm686, %v1056
      %1094 = vst.msk [vmem:[#allocation2 + $0x58] sm:$0xff] %vm686, %v1058
      %1095 = vst.msk [vmem:[#allocation2 + $0x60] sm:$0xff] %vm686, %v1060
      %1096 = vst.msk [vmem:[#allocation2 + $0x68] sm:$0xff] %vm686, %v1062
      %1097 = vst.msk [vmem:[#allocation2 + $0x70] sm:$0xff] %vm686, %v1064
      %1098 = vst.msk [vmem:[#allocation2 + $0x78] sm:$0xff] %vm686, %v1066
      %1100 = vbcast.lane.b32.xlu0 %v733, 256
      %v1101 = vpop.permute.xlu0 %1100
      %s1103 = sor.u32 256, 8
      %1104 = vbcast.lane.b32.xlu0 %v733, %s1103
      %v1105 = vpop.permute.xlu0 %1104
      %1107 = vbcast.lane.b32.xlu0 %v745, 256
      %v1108 = vpop.permute.xlu0 %1107
      %s1110 = sor.u32 256, 8
      %1111 = vbcast.lane.b32.xlu0 %v745, %s1110
      %v1112 = vpop.permute.xlu0 %1111
      %1114 = vbcast.lane.b32.xlu0 %v757, 256
      %v1115 = vpop.permute.xlu0 %1114
      %s1117 = sor.u32 256, 8
      %1118 = vbcast.lane.b32.xlu0 %v757, %s1117
      %v1119 = vpop.permute.xlu0 %1118
      %1121 = vbcast.lane.b32.xlu0 %v769, 256
      %v1122 = vpop.permute.xlu0 %1121
      %s1124 = sor.u32 256, 8
      %1125 = vbcast.lane.b32.xlu0 %v769, %s1124
      %v1126 = vpop.permute.xlu0 %1125
      %1128 = vbcast.lane.b32.xlu0 %v781, 256
      %v1129 = vpop.permute.xlu0 %1128
      %s1131 = sor.u32 256, 8
      %1132 = vbcast.lane.b32.xlu0 %v781, %s1131
      %v1133 = vpop.permute.xlu0 %1132
      %1135 = vbcast.lane.b32.xlu0 %v793, 256
      %v1136 = vpop.permute.xlu0 %1135
      %s1138 = sor.u32 256, 8
      %1139 = vbcast.lane.b32.xlu0 %v793, %s1138
      %v1140 = vpop.permute.xlu0 %1139
      %1142 = vbcast.lane.b32.xlu0 %v805, 256
      %v1143 = vpop.permute.xlu0 %1142
      %s1145 = sor.u32 256, 8
      %1146 = vbcast.lane.b32.xlu0 %v805, %s1145
      %v1147 = vpop.permute.xlu0 %1146
      %1149 = vbcast.lane.b32.xlu0 %v817, 256
      %v1150 = vpop.permute.xlu0 %1149
      %s1152 = sor.u32 256, 8
      %1153 = vbcast.lane.b32.xlu0 %v817, %s1152
      %v1154 = vpop.permute.xlu0 %1153
      %1156 = vrot.lane.b32.xlu0 %v652, 32
      %v1157 = vpop.permute.xlu0 %1156
      %v1159 = vmul.f32 %v870, %v1157
      %v1161 = vcombine.high %v1159, %v1159
      %v1163 = vunpack.c.l.s4 1966171168
      %v1164 = vunpack.c.0.s8 %v1163
      %v1165 = vlaneseq
      %v1166 = vshrl.u32 %v1165, 7
      %v1167 = vsub.s32 %v1164, %v1166
      %v1168 = vrot.slane %v1159, %v1167
      %v1170 = vunpack.c.l.s4 1966171168
      %v1171 = vunpack.c.0.s8 %v1170
      %v1172 = vlaneseq
      %v1173 = vshrl.u32 %v1172, 7
      %v1174 = vsub.s32 %v1171, %v1173
      %v1175 = vrot.slane %v1161, %v1174
      %v1176 = vcombine.high %v1168, %v1168
      %v1177 = vcombine.high %v1175, %v1175
      %v1179 = vunpack.c.l.s4 1966171168
      %v1180 = vunpack.c.0.s8 %v1179
      %v1181 = vlaneseq
      %v1182 = vshrl.u32 %v1181, 7
      %v1183 = vsub.s32 %v1180, %v1182
      %v1184 = vrot.slane %v1168, %v1183
      %v1186 = vunpack.c.l.s4 1966171168
      %v1187 = vunpack.c.0.s8 %v1186
      %v1188 = vlaneseq
      %v1189 = vshrl.u32 %v1188, 7
      %v1190 = vsub.s32 %v1187, %v1189
      %v1191 = vrot.slane %v1175, %v1190
      %v1193 = vunpack.c.l.s4 1966171168
      %v1194 = vunpack.c.0.s8 %v1193
      %v1195 = vlaneseq
      %v1196 = vshrl.u32 %v1195, 7
      %v1197 = vsub.s32 %v1194, %v1196
      %v1198 = vrot.slane %v1176, %v1197
      %v1200 = vunpack.c.l.s4 1966171168
      %v1201 = vunpack.c.0.s8 %v1200
      %v1202 = vlaneseq
      %v1203 = vshrl.u32 %v1202, 7
      %v1204 = vsub.s32 %v1201, %v1203
      %v1205 = vrot.slane %v1177, %v1204
      %v1206 = vcombine.high %v1184, %v1184
      %v1207 = vcombine.high %v1191, %v1191
      %v1208 = vcombine.high %v1198, %v1198
      %v1209 = vcombine.high %v1205, %v1205
      %v1210 = vlaneseq
      %v1211 = vshrl.u32 %v1210, 7
      %v1212 = vsub.s32 0, %v1211
      %v1213 = vrot.slane %v1184, %v1212
      %v1214 = vlaneseq
      %v1215 = vshrl.u32 %v1214, 7
      %v1216 = vsub.s32 0, %v1215
      %v1217 = vrot.slane %v1198, %v1216
      %v1218 = vlaneseq
      %v1219 = vshrl.u32 %v1218, 7
      %v1220 = vsub.s32 0, %v1219
      %v1221 = vrot.slane %v1206, %v1220
      %v1222 = vlaneseq
      %v1223 = vshrl.u32 %v1222, 7
      %v1224 = vsub.s32 0, %v1223
      %v1225 = vrot.slane %v1208, %v1224
      %v1226 = vlaneseq
      %v1227 = vshrl.u32 %v1226, 7
      %v1228 = vsub.s32 0, %v1227
      %v1229 = vrot.slane %v1191, %v1228
      %v1230 = vlaneseq
      %v1231 = vshrl.u32 %v1230, 7
      %v1232 = vsub.s32 0, %v1231
      %v1233 = vrot.slane %v1205, %v1232
      %v1234 = vlaneseq
      %v1235 = vshrl.u32 %v1234, 7
      %v1236 = vsub.s32 0, %v1235
      %v1237 = vrot.slane %v1207, %v1236
      %v1238 = vlaneseq
      %v1239 = vshrl.u32 %v1238, 7
      %v1240 = vsub.s32 0, %v1239
      %v1241 = vrot.slane %v1209, %v1240
      %v1250 = vmul.f32 %v1101, %v1213
      %v1251 = vmul.f32 %v1105, %v1213
      %v1252 = vmul.f32 %v1108, %v1217
      %v1253 = vmul.f32 %v1112, %v1217
      %v1254 = vmul.f32 %v1115, %v1221
      %v1255 = vmul.f32 %v1119, %v1221
      %v1256 = vmul.f32 %v1122, %v1225
      %v1257 = vmul.f32 %v1126, %v1225
      %v1258 = vmul.f32 %v1129, %v1229
      %v1259 = vmul.f32 %v1133, %v1229
      %v1260 = vmul.f32 %v1136, %v1233
      %v1261 = vmul.f32 %v1140, %v1233
      %v1262 = vmul.f32 %v1143, %v1237
      %v1263 = vmul.f32 %v1147, %v1237
      %v1264 = vmul.f32 %v1150, %v1241
      %v1265 = vmul.f32 %v1154, %v1241
      %1282 = vrot.lane.b32.xlu0 %v1250, 96
      %v1283 = vpop.permute.xlu0 %1282
      %1284 = vrot.lane.b32.xlu0 %v1251, 96
      %v1285 = vpop.permute.xlu0 %1284
      %1286 = vrot.lane.b32.xlu0 %v1252, 96
      %v1287 = vpop.permute.xlu0 %1286
      %1288 = vrot.lane.b32.xlu0 %v1253, 96
      %v1289 = vpop.permute.xlu0 %1288
      %1290 = vrot.lane.b32.xlu0 %v1254, 96
      %v1291 = vpop.permute.xlu0 %1290
      %1292 = vrot.lane.b32.xlu0 %v1255, 96
      %v1293 = vpop.permute.xlu0 %1292
      %1294 = vrot.lane.b32.xlu0 %v1256, 96
      %v1295 = vpop.permute.xlu0 %1294
      %1296 = vrot.lane.b32.xlu0 %v1257, 96
      %v1297 = vpop.permute.xlu0 %1296
      %1298 = vrot.lane.b32.xlu0 %v1258, 96
      %v1299 = vpop.permute.xlu0 %1298
      %1300 = vrot.lane.b32.xlu0 %v1259, 96
      %v1301 = vpop.permute.xlu0 %1300
      %1302 = vrot.lane.b32.xlu0 %v1260, 96
      %v1303 = vpop.permute.xlu0 %1302
      %1304 = vrot.lane.b32.xlu0 %v1261, 96
      %v1305 = vpop.permute.xlu0 %1304
      %1306 = vrot.lane.b32.xlu0 %v1262, 96
      %v1307 = vpop.permute.xlu0 %1306
      %1308 = vrot.lane.b32.xlu0 %v1263, 96
      %v1309 = vpop.permute.xlu0 %1308
      %1310 = vrot.lane.b32.xlu0 %v1264, 96
      %v1311 = vpop.permute.xlu0 %1310
      %1312 = vrot.lane.b32.xlu0 %v1265, 96
      %v1313 = vpop.permute.xlu0 %1312
      %1330 = vst.msk [vmem:[#allocation3] sm:$0xff] %vm686, %v1283
      %1331 = vst.msk [vmem:[#allocation3 + $0x8] sm:$0xff] %vm686, %v1285
      %1332 = vst.msk [vmem:[#allocation3 + $0x10] sm:$0xff] %vm686, %v1287
      %1333 = vst.msk [vmem:[#allocation3 + $0x18] sm:$0xff] %vm686, %v1289
      %1334 = vst.msk [vmem:[#allocation3 + $0x20] sm:$0xff] %vm686, %v1291
      %1335 = vst.msk [vmem:[#allocation3 + $0x28] sm:$0xff] %vm686, %v1293
      %1336 = vst.msk [vmem:[#allocation3 + $0x30] sm:$0xff] %vm686, %v1295
      %1337 = vst.msk [vmem:[#allocation3 + $0x38] sm:$0xff] %vm686, %v1297
      %1338 = vst.msk [vmem:[#allocation3 + $0x40] sm:$0xff] %vm686, %v1299
      %1339 = vst.msk [vmem:[#allocation3 + $0x48] sm:$0xff] %vm686, %v1301
      %1340 = vst.msk [vmem:[#allocation3 + $0x50] sm:$0xff] %vm686, %v1303
      %1341 = vst.msk [vmem:[#allocation3 + $0x58] sm:$0xff] %vm686, %v1305
      %1342 = vst.msk [vmem:[#allocation3 + $0x60] sm:$0xff] %vm686, %v1307
      %1343 = vst.msk [vmem:[#allocation3 + $0x68] sm:$0xff] %vm686, %v1309
      %1344 = vst.msk [vmem:[#allocation3 + $0x70] sm:$0xff] %vm686, %v1311
      %1345 = vst.msk [vmem:[#allocation3 + $0x78] sm:$0xff] %vm686, %v1313
      %v1346 = vld [vmem:[#allocation6] sm:$0xff]
      %v1347 = vld [vmem:[#allocation6 + $0x8] sm:$0xff]
      %v1348 = vld [vmem:[#allocation2] sm:$0xff]
      %v1349 = vld [vmem:[#allocation2 + $0x8] sm:$0xff]
      %v1350 = vmul.f32 %v1348, %v1346
      %v1351 = vmul.f32 %v1349, %v1347
      %v1352 = vld [vmem:[#allocation3] sm:$0xff]
      %v1353 = vld [vmem:[#allocation3 + $0x8] sm:$0xff]
      %v1354 = vadd.f32 %v1350, %v1352
      %v1355 = vadd.f32 %v1351, %v1353
      %v1356 = vld [vmem:[#allocation4] sm:$0xff]
      %v1357 = vld [vmem:[#allocation4 + $0x8] sm:$0xff]
      %1359 = vset.pattern.permute.xlu0 0
      %1360 = vperm.xlu0 %1359, %v1356
      %v1361 = vpop.permute.xlu0 %1360
      %1364 = vset.pattern.permute.xlu0 0
      %1365 = vperm.xlu0 %1364, %v1357
      %v1366 = vpop.permute.xlu0 %1365
      %v1368 = vmul.f32 %v1354, %v1361
      %v1369 = vmul.f32 %v1355, %v1366
      %v1370 = vsel %vm686, %v1368, 0.0
      %v1371 = vsel %vm686, %v1369, 0.0
      %v1372 = vadd.f32 %v1370, %v1371
      %v1373 = vrot.slane %v1372, 4
      %v1374 = vadd.f32 %v1372, %v1373
      %v1375 = vrot.slane %v1374, 2
      %v1376 = vadd.f32 %v1374, %v1375
      %v1377 = vrot.slane %v1376, 1
      %v1378 = vadd.f32 %v1376, %v1377
      %vm1379 = vcmask 516096
      %1380 = vst.msk [vmem:[#allocation5] sm:$0x1] %vm1379, %v1378
      %s1381 = scalar_lea.vmem [#allocation2], 16
      %v1382 = vld [vmem:[%s1381] sm:$0xff]
      %v1383 = vld [vmem:[%s1381 + $0x8] sm:$0xff]
      %v1384 = vmul.f32 %v1382, %v1354
      %v1385 = vmul.f32 %v1383, %v1355
      %s1386 = scalar_lea.vmem [#allocation3], 16
      %v1387 = vld [vmem:[%s1386] sm:$0xff]
      %v1388 = vld [vmem:[%s1386 + $0x8] sm:$0xff]
      %v1389 = vadd.f32 %v1384, %v1387
      %v1390 = vadd.f32 %v1385, %v1388
      %s1391 = scalar_lea.vmem [#allocation4], 16
      %v1392 = vld [vmem:[%s1391] sm:$0xff]
      %v1393 = vld [vmem:[%s1391 + $0x8] sm:$0xff]
      %1395 = vset.pattern.permute.xlu0 0
      %1396 = vperm.xlu0 %1395, %v1392
      %v1397 = vpop.permute.xlu0 %1396
      %1400 = vset.pattern.permute.xlu0 0
      %1401 = vperm.xlu0 %1400, %v1393
      %v1402 = vpop.permute.xlu0 %1401
      %v1404 = vmul.f32 %v1389, %v1397
      %v1405 = vmul.f32 %v1390, %v1402
      %v1406 = vsel %vm686, %v1404, 0.0
      %v1407 = vsel %vm686, %v1405, 0.0
      %v1408 = vadd.f32 %v1406, %v1407
      %v1409 = vrot.slane %v1408, 4
      %v1410 = vadd.f32 %v1408, %v1409
      %v1411 = vrot.slane %v1410, 2
      %v1412 = vadd.f32 %v1410, %v1411
      %v1413 = vrot.slane %v1412, 1
      %v1414 = vadd.f32 %v1412, %v1413
      %s1415 = scalar_lea.vmem [#allocation5], 1
      %1416 = vst.msk [vmem:[%s1415] sm:$0x1] %vm1379, %v1414
      %s1417 = scalar_lea.vmem [#allocation2], 32
      %v1418 = vld [vmem:[%s1417] sm:$0xff]
      %v1419 = vld [vmem:[%s1417 + $0x8] sm:$0xff]
      %v1420 = vmul.f32 %v1418, %v1389
      %v1421 = vmul.f32 %v1419, %v1390
      %s1422 = scalar_lea.vmem [#allocation3], 32
      %v1423 = vld [vmem:[%s1422] sm:$0xff]
      %v1424 = vld [vmem:[%s1422 + $0x8] sm:$0xff]
      %v1425 = vadd.f32 %v1420, %v1423
      %v1426 = vadd.f32 %v1421, %v1424
      %s1427 = scalar_lea.vmem [#allocation4], 32
      %v1428 = vld [vmem:[%s1427] sm:$0xff]
      %v1429 = vld [vmem:[%s1427 + $0x8] sm:$0xff]
      %1431 = vset.pattern.permute.xlu0 0
      %1432 = vperm.xlu0 %1431, %v1428
      %v1433 = vpop.permute.xlu0 %1432
      %1436 = vset.pattern.permute.xlu0 0
      %1437 = vperm.xlu0 %1436, %v1429
      %v1438 = vpop.permute.xlu0 %1437
      %v1440 = vmul.f32 %v1425, %v1433
      %v1441 = vmul.f32 %v1426, %v1438
      %v1442 = vsel %vm686, %v1440, 0.0
      %v1443 = vsel %vm686, %v1441, 0.0
      %v1444 = vadd.f32 %v1442, %v1443
      %v1445 = vrot.slane %v1444, 4
      %v1446 = vadd.f32 %v1444, %v1445
      %v1447 = vrot.slane %v1446, 2
      %v1448 = vadd.f32 %v1446, %v1447
      %v1449 = vrot.slane %v1448, 1
      %v1450 = vadd.f32 %v1448, %v1449
      %s1451 = scalar_lea.vmem [#allocation5], 2
      %1452 = vst.msk [vmem:[%s1451] sm:$0x1] %vm1379, %v1450
      %s1453 = scalar_lea.vmem [#allocation2], 48
      %v1454 = vld [vmem:[%s1453] sm:$0xff]
      %v1455 = vld [vmem:[%s1453 + $0x8] sm:$0xff]
      %v1456 = vmul.f32 %v1454, %v1425
      %v1457 = vmul.f32 %v1455, %v1426
      %s1458 = scalar_lea.vmem [#allocation3], 48
      %v1459 = vld [vmem:[%s1458] sm:$0xff]
      %v1460 = vld [vmem:[%s1458 + $0x8] sm:$0xff]
      %v1461 = vadd.f32 %v1456, %v1459
      %v1462 = vadd.f32 %v1457, %v1460
      %s1463 = scalar_lea.vmem [#allocation4], 48
      %v1464 = vld [vmem:[%s1463] sm:$0xff]
      %v1465 = vld [vmem:[%s1463 + $0x8] sm:$0xff]
      %1467 = vset.pattern.permute.xlu0 0
      %1468 = vperm.xlu0 %1467, %v1464
      %v1469 = vpop.permute.xlu0 %1468
      %1472 = vset.pattern.permute.xlu0 0
      %1473 = vperm.xlu0 %1472, %v1465
      %v1474 = vpop.permute.xlu0 %1473
      %v1476 = vmul.f32 %v1461, %v1469
      %v1477 = vmul.f32 %v1462, %v1474
      %v1478 = vsel %vm686, %v1476, 0.0
      %v1479 = vsel %vm686, %v1477, 0.0
      %v1480 = vadd.f32 %v1478, %v1479
      %v1481 = vrot.slane %v1480, 4
      %v1482 = vadd.f32 %v1480, %v1481
      %v1483 = vrot.slane %v1482, 2
      %v1484 = vadd.f32 %v1482, %v1483
      %v1485 = vrot.slane %v1484, 1
      %v1486 = vadd.f32 %v1484, %v1485
      %s1487 = scalar_lea.vmem [#allocation5], 3
      %1488 = vst.msk [vmem:[%s1487] sm:$0x1] %vm1379, %v1486
      %s1489 = scalar_lea.vmem [#allocation2], 64
      %v1490 = vld [vmem:[%s1489] sm:$0xff]
      %v1491 = vld [vmem:[%s1489 + $0x8] sm:$0xff]
      %v1492 = vmul.f32 %v1490, %v1461
      %v1493 = vmul.f32 %v1491, %v1462
      %s1494 = scalar_lea.vmem [#allocation3], 64
      %v1495 = vld [vmem:[%s1494] sm:$0xff]
      %v1496 = vld [vmem:[%s1494 + $0x8] sm:$0xff]
      %v1497 = vadd.f32 %v1492, %v1495
      %v1498 = vadd.f32 %v1493, %v1496
      %s1499 = scalar_lea.vmem [#allocation4], 64
      %v1500 = vld [vmem:[%s1499] sm:$0xff]
      %v1501 = vld [vmem:[%s1499 + $0x8] sm:$0xff]
      %1503 = vset.pattern.permute.xlu0 0
      %1504 = vperm.xlu0 %1503, %v1500
      %v1505 = vpop.permute.xlu0 %1504
      %1508 = vset.pattern.permute.xlu0 0
      %1509 = vperm.xlu0 %1508, %v1501
      %v1510 = vpop.permute.xlu0 %1509
      %v1512 = vmul.f32 %v1497, %v1505
      %v1513 = vmul.f32 %v1498, %v1510
      %v1514 = vsel %vm686, %v1512, 0.0
      %v1515 = vsel %vm686, %v1513, 0.0
      %v1516 = vadd.f32 %v1514, %v1515
      %v1517 = vrot.slane %v1516, 4
      %v1518 = vadd.f32 %v1516, %v1517
      %v1519 = vrot.slane %v1518, 2
      %v1520 = vadd.f32 %v1518, %v1519
      %v1521 = vrot.slane %v1520, 1
      %v1522 = vadd.f32 %v1520, %v1521
      %s1523 = scalar_lea.vmem [#allocation5], 4
      %1524 = vst.msk [vmem:[%s1523] sm:$0x1] %vm1379, %v1522
      %s1525 = scalar_lea.vmem [#allocation2], 80
      %v1526 = vld [vmem:[%s1525] sm:$0xff]
      %v1527 = vld [vmem:[%s1525 + $0x8] sm:$0xff]
      %v1528 = vmul.f32 %v1526, %v1497
      %v1529 = vmul.f32 %v1527, %v1498
      %s1530 = scalar_lea.vmem [#allocation3], 80
      %v1531 = vld [vmem:[%s1530] sm:$0xff]
      %v1532 = vld [vmem:[%s1530 + $0x8] sm:$0xff]
      %v1533 = vadd.f32 %v1528, %v1531
      %v1534 = vadd.f32 %v1529, %v1532
      %s1535 = scalar_lea.vmem [#allocation4], 80
      %v1536 = vld [vmem:[%s1535] sm:$0xff]
      %v1537 = vld [vmem:[%s1535 + $0x8] sm:$0xff]
      %1539 = vset.pattern.permute.xlu0 0
      %1540 = vperm.xlu0 %1539, %v1536
      %v1541 = vpop.permute.xlu0 %1540
      %1544 = vset.pattern.permute.xlu0 0
      %1545 = vperm.xlu0 %1544, %v1537
      %v1546 = vpop.permute.xlu0 %1545
      %v1548 = vmul.f32 %v1533, %v1541
      %v1549 = vmul.f32 %v1534, %v1546
      %v1550 = vsel %vm686, %v1548, 0.0
      %v1551 = vsel %vm686, %v1549, 0.0
      %v1552 = vadd.f32 %v1550, %v1551
      %v1553 = vrot.slane %v1552, 4
      %v1554 = vadd.f32 %v1552, %v1553
      %v1555 = vrot.slane %v1554, 2
      %v1556 = vadd.f32 %v1554, %v1555
      %v1557 = vrot.slane %v1556, 1
      %v1558 = vadd.f32 %v1556, %v1557
      %s1559 = scalar_lea.vmem [#allocation5], 5
      %1560 = vst.msk [vmem:[%s1559] sm:$0x1] %vm1379, %v1558
      %s1561 = scalar_lea.vmem [#allocation2], 96
      %v1562 = vld [vmem:[%s1561] sm:$0xff]
      %v1563 = vld [vmem:[%s1561 + $0x8] sm:$0xff]
      %v1564 = vmul.f32 %v1562, %v1533
      %v1565 = vmul.f32 %v1563, %v1534
      %s1566 = scalar_lea.vmem [#allocation3], 96
      %v1567 = vld [vmem:[%s1566] sm:$0xff]
      %v1568 = vld [vmem:[%s1566 + $0x8] sm:$0xff]
      %v1569 = vadd.f32 %v1564, %v1567
      %v1570 = vadd.f32 %v1565, %v1568
      %s1571 = scalar_lea.vmem [#allocation4], 96
      %v1572 = vld [vmem:[%s1571] sm:$0xff]
      %v1573 = vld [vmem:[%s1571 + $0x8] sm:$0xff]
      %1575 = vset.pattern.permute.xlu0 0
      %1576 = vperm.xlu0 %1575, %v1572
      %v1577 = vpop.permute.xlu0 %1576
      %1580 = vset.pattern.permute.xlu0 0
      %1581 = vperm.xlu0 %1580, %v1573
      %v1582 = vpop.permute.xlu0 %1581
      %v1584 = vmul.f32 %v1569, %v1577
      %v1585 = vmul.f32 %v1570, %v1582
      %v1586 = vsel %vm686, %v1584, 0.0
      %v1587 = vsel %vm686, %v1585, 0.0
      %v1588 = vadd.f32 %v1586, %v1587
      %v1589 = vrot.slane %v1588, 4
      %v1590 = vadd.f32 %v1588, %v1589
      %v1591 = vrot.slane %v1590, 2
      %v1592 = vadd.f32 %v1590, %v1591
      %v1593 = vrot.slane %v1592, 1
      %v1594 = vadd.f32 %v1592, %v1593
      %s1595 = scalar_lea.vmem [#allocation5], 6
      %1596 = vst.msk [vmem:[%s1595] sm:$0x1] %vm1379, %v1594
      %s1597 = scalar_lea.vmem [#allocation2], 112
      %v1598 = vld [vmem:[%s1597] sm:$0xff]
      %v1599 = vld [vmem:[%s1597 + $0x8] sm:$0xff]
      %v1600 = vmul.f32 %v1598, %v1569
      %v1601 = vmul.f32 %v1599, %v1570
      %s1602 = scalar_lea.vmem [#allocation3], 112
      %v1603 = vld [vmem:[%s1602] sm:$0xff]
      %v1604 = vld [vmem:[%s1602 + $0x8] sm:$0xff]
      %v1605 = vadd.f32 %v1600, %v1603
      %v1606 = vadd.f32 %v1601, %v1604
      %s1607 = scalar_lea.vmem [#allocation4], 112
      %v1608 = vld [vmem:[%s1607] sm:$0xff]
      %v1609 = vld [vmem:[%s1607 + $0x8] sm:$0xff]
      %1611 = vset.pattern.permute.xlu0 0
      %1612 = vperm.xlu0 %1611, %v1608
      %v1613 = vpop.permute.xlu0 %1612
      %1616 = vset.pattern.permute.xlu0 0
      %1617 = vperm.xlu0 %1616, %v1609
      %v1618 = vpop.permute.xlu0 %1617
      %v1620 = vmul.f32 %v1605, %v1613
      %v1621 = vmul.f32 %v1606, %v1618
      %v1622 = vsel %vm686, %v1620, 0.0
      %v1623 = vsel %vm686, %v1621, 0.0
      %v1624 = vadd.f32 %v1622, %v1623
      %v1625 = vrot.slane %v1624, 4
      %v1626 = vadd.f32 %v1624, %v1625
      %v1627 = vrot.slane %v1626, 2
      %v1628 = vadd.f32 %v1626, %v1627
      %v1629 = vrot.slane %v1628, 1
      %v1630 = vadd.f32 %v1628, %v1629
      %s1631 = scalar_lea.vmem [#allocation5], 7
      %1632 = vst.msk [vmem:[%s1631] sm:$0x1] %vm1379, %v1630
      %1633 = vst.msk [vmem:[#allocation6] sm:$0xff] %vm686, %v1605
      %1634 = vst.msk [vmem:[#allocation6 + $0x8] sm:$0xff] %vm686, %v1606
      %v1635 = vld [vmem:[#allocation5] sm:$0x1]
      %v1636 = vld [vmem:[#allocation5 + $0x1] sm:$0x1]
      %v1637 = vld [vmem:[#allocation5 + $0x2] sm:$0x1]
      %v1638 = vld [vmem:[#allocation5 + $0x3] sm:$0x1]
      %v1639 = vld [vmem:[#allocation5 + $0x4] sm:$0x1]
      %v1640 = vld [vmem:[#allocation5 + $0x5] sm:$0x1]
      %v1641 = vld [vmem:[#allocation5 + $0x6] sm:$0x1]
      %v1642 = vld [vmem:[#allocation5 + $0x7] sm:$0x1]
      %v1643 = vld [vmem:[%s9] sm:$0x1]
      %v1645 = vlaneseq
      %v1646 = vshrl.u32 %v1645, 7
      %v1647 = vsub.s32 0, %v1646
      %v1648 = vrot.slane %v1643, %v1647
      %v1650 = vmul.f32 %v652, %v1648
      %v1652 = vcombine.high %v1650, %v1650
      %v1654 = vunpack.c.l.s4 1966171168
      %v1655 = vunpack.c.0.s8 %v1654
      %v1656 = vlaneseq
      %v1657 = vshrl.u32 %v1656, 7
      %v1658 = vsub.s32 %v1655, %v1657
      %v1659 = vrot.slane %v1650, %v1658
      %v1661 = vunpack.c.l.s4 1966171168
      %v1662 = vunpack.c.0.s8 %v1661
      %v1663 = vlaneseq
      %v1664 = vshrl.u32 %v1663, 7
      %v1665 = vsub.s32 %v1662, %v1664
      %v1666 = vrot.slane %v1652, %v1665
      %v1667 = vcombine.high %v1659, %v1659
      %v1668 = vcombine.high %v1666, %v1666
      %v1670 = vunpack.c.l.s4 1966171168
      %v1671 = vunpack.c.0.s8 %v1670
      %v1672 = vlaneseq
      %v1673 = vshrl.u32 %v1672, 7
      %v1674 = vsub.s32 %v1671, %v1673
      %v1675 = vrot.slane %v1659, %v1674
      %v1677 = vunpack.c.l.s4 1966171168
      %v1678 = vunpack.c.0.s8 %v1677
      %v1679 = vlaneseq
      %v1680 = vshrl.u32 %v1679, 7
      %v1681 = vsub.s32 %v1678, %v1680
      %v1682 = vrot.slane %v1666, %v1681
      %v1684 = vunpack.c.l.s4 1966171168
      %v1685 = vunpack.c.0.s8 %v1684
      %v1686 = vlaneseq
      %v1687 = vshrl.u32 %v1686, 7
      %v1688 = vsub.s32 %v1685, %v1687
      %v1689 = vrot.slane %v1667, %v1688
      %v1691 = vunpack.c.l.s4 1966171168
      %v1692 = vunpack.c.0.s8 %v1691
      %v1693 = vlaneseq
      %v1694 = vshrl.u32 %v1693, 7
      %v1695 = vsub.s32 %v1692, %v1694
      %v1696 = vrot.slane %v1668, %v1695
      %v1697 = vcombine.high %v1675, %v1675
      %v1698 = vcombine.high %v1682, %v1682
      %v1699 = vcombine.high %v1689, %v1689
      %v1700 = vcombine.high %v1696, %v1696
      %v1709 = vadd.f32 %v1635, %v1675
      %v1710 = vadd.f32 %v1636, %v1689
      %v1711 = vadd.f32 %v1637, %v1697
      %v1712 = vadd.f32 %v1638, %v1699
      %v1713 = vadd.f32 %v1639, %v1682
      %v1714 = vadd.f32 %v1640, %v1696
      %v1715 = vadd.f32 %v1641, %v1698
      %v1716 = vadd.f32 %v1642, %v1700
      %v1717 = vxor.u32 %v573, 2147483648
      %v1718 = vmul.f32 %v1717, 1.442695
      %v1719 = vpow.pop %v1718
      %v1720 = vadd.f32 %v1719, 1.0
      %v1721 = vrcp.pop %v1720
      %v1722 = vmul.f32 1.0, %v1721
      %v1723 = vmul.f32 %v573, %v1722
      %v1725 = vcombine.high %v1723, %v1723
      %v1727 = vunpack.c.l.s4 1966171168
      %v1728 = vunpack.c.0.s8 %v1727
      %v1729 = vlaneseq
      %v1730 = vshrl.u32 %v1729, 7
      %v1731 = vsub.s32 %v1728, %v1730
      %v1732 = vrot.slane %v1723, %v1731
      %v1734 = vunpack.c.l.s4 1966171168
      %v1735 = vunpack.c.0.s8 %v1734
      %v1736 = vlaneseq
      %v1737 = vshrl.u32 %v1736, 7
      %v1738 = vsub.s32 %v1735, %v1737
      %v1739 = vrot.slane %v1725, %v1738
      %v1740 = vcombine.high %v1732, %v1732
      %v1741 = vcombine.high %v1739, %v1739
      %v1743 = vunpack.c.l.s4 1966171168
      %v1744 = vunpack.c.0.s8 %v1743
      %v1745 = vlaneseq
      %v1746 = vshrl.u32 %v1745, 7
      %v1747 = vsub.s32 %v1744, %v1746
      %v1748 = vrot.slane %v1732, %v1747
      %v1750 = vunpack.c.l.s4 1966171168
      %v1751 = vunpack.c.0.s8 %v1750
      %v1752 = vlaneseq
      %v1753 = vshrl.u32 %v1752, 7
      %v1754 = vsub.s32 %v1751, %v1753
      %v1755 = vrot.slane %v1739, %v1754
      %v1757 = vunpack.c.l.s4 1966171168
      %v1758 = vunpack.c.0.s8 %v1757
      %v1759 = vlaneseq
      %v1760 = vshrl.u32 %v1759, 7
      %v1761 = vsub.s32 %v1758, %v1760
      %v1762 = vrot.slane %v1740, %v1761
      %v1764 = vunpack.c.l.s4 1966171168
      %v1765 = vunpack.c.0.s8 %v1764
      %v1766 = vlaneseq
      %v1767 = vshrl.u32 %v1766, 7
      %v1768 = vsub.s32 %v1765, %v1767
      %v1769 = vrot.slane %v1741, %v1768
      %v1770 = vcombine.high %v1748, %v1748
      %v1771 = vcombine.high %v1755, %v1755
      %v1772 = vcombine.high %v1762, %v1762
      %v1773 = vcombine.high %v1769, %v1769
      %1774 = vrot.lane.b32.xlu0 %v1748, 64
      %v1775 = vpop.permute.xlu0 %1774
      %1776 = vrot.lane.b32.xlu0 %v1762, 64
      %v1777 = vpop.permute.xlu0 %1776
      %1778 = vrot.lane.b32.xlu0 %v1770, 64
      %v1779 = vpop.permute.xlu0 %1778
      %1780 = vrot.lane.b32.xlu0 %v1772, 64
      %v1781 = vpop.permute.xlu0 %1780
      %1782 = vrot.lane.b32.xlu0 %v1755, 64
      %v1783 = vpop.permute.xlu0 %1782
      %1784 = vrot.lane.b32.xlu0 %v1769, 64
      %v1785 = vpop.permute.xlu0 %1784
      %1786 = vrot.lane.b32.xlu0 %v1771, 64
      %v1787 = vpop.permute.xlu0 %1786
      %1788 = vrot.lane.b32.xlu0 %v1773, 64
      %v1789 = vpop.permute.xlu0 %1788
      %v1798 = vmul.f32 %v1709, %v1775
      %v1799 = vmul.f32 %v1710, %v1777
      %v1800 = vmul.f32 %v1711, %v1779
      %v1801 = vmul.f32 %v1712, %v1781
      %v1802 = vmul.f32 %v1713, %v1783
      %v1803 = vmul.f32 %v1714, %v1785
      %v1804 = vmul.f32 %v1715, %v1787
      %v1805 = vmul.f32 %v1716, %v1789
      %v1806 = vpack.c.bf16 %v1798, %v1798
      %v1807 = vpack.c.bf16 %v1799, %v1799
      %v1808 = vpack.c.bf16 %v1800, %v1800
      %v1809 = vpack.c.bf16 %v1801, %v1801
      %v1810 = vpack.c.bf16 %v1802, %v1802
      %v1811 = vpack.c.bf16 %v1803, %v1803
      %v1812 = vpack.c.bf16 %v1804, %v1804
      %v1813 = vpack.c.bf16 %v1805, %v1805
      %v1814 = vld [vmem:[%s10] sm:$0xf]
      %v1815 = vld [vmem:[%s10 + $0x4] sm:$0xf]
      %v1816 = vld [vmem:[%s10 + $0x8] sm:$0xf]
      %v1817 = vld [vmem:[%s10 + $0xc] sm:$0xf]
      %v1818 = vld [vmem:[%s10 + $0x10] sm:$0xf]
      %v1819 = vld [vmem:[%s10 + $0x14] sm:$0xf]
      %v1820 = vld [vmem:[%s10 + $0x18] sm:$0xf]
      %v1821 = vld [vmem:[%s10 + $0x1c] sm:$0xf]
      %v1830 = vunpack.c.l.b16 %v1806
      %v1831 = vunpack.c.l.b16 %v1807
      %v1832 = vunpack.c.l.b16 %v1808
      %v1833 = vunpack.c.l.b16 %v1809
      %v1834 = vunpack.c.l.b16 %v1810
      %v1835 = vunpack.c.l.b16 %v1811
      %v1836 = vunpack.c.l.b16 %v1812
      %v1837 = vunpack.c.l.b16 %v1813
      %v1838 = vrot.slane %v1831, 7
      %vm1839 = vcmask 1041409
      %v1840 = vsel %vm1839, %v1838, %v1830
      %v1841 = vrot.slane %v1832, 6
      %vm1842 = vcmask 1042434
      %v1843 = vsel %vm1842, %v1841, %v1840
      %v1844 = vrot.slane %v1833, 5
      %vm1845 = vcmask 1043459
      %v1846 = vsel %vm1845, %v1844, %v1843
      %v1847 = vrot.slane %v1834, 4
      %vm1848 = vcmask 1044484
      %v1849 = vsel %vm1848, %v1847, %v1846
      %v1850 = vrot.slane %v1835, 3
      %vm1851 = vcmask 1045509
      %v1852 = vsel %vm1851, %v1850, %v1849
      %v1853 = vrot.slane %v1836, 2
      %vm1854 = vcmask 1046534
      %v1855 = vsel %vm1854, %v1853, %v1852
      %v1856 = vrot.slane %v1837, 1
      %vm1857 = vcmask 1047559
      %v1858 = vsel %vm1857, %v1856, %v1855
      %v1859 = vpack.c.b16 %v1858, %v1858
      %v1868 = vunpack.c.l.b16 %v1814
      %v1869 = vunpack.c.l.b16 %v1815
      %v1870 = vunpack.c.l.b16 %v1816
      %v1871 = vunpack.c.l.b16 %v1817
      %v1872 = vunpack.c.l.b16 %v1818
      %v1873 = vunpack.c.l.b16 %v1819
      %v1874 = vunpack.c.l.b16 %v1820
      %v1875 = vunpack.c.l.b16 %v1821
      %v1876 = vpack.c.b16 %v1869, %v1868
      %v1877 = vpack.c.b16 %v1871, %v1870
      %v1878 = vpack.c.b16 %v1873, %v1872
      %v1879 = vpack.c.b16 %v1875, %v1874
      %v1885 = vsel %vm686, %v1859, 0
      %1887 = vmatprep.subr.bf16.mxu0 0
      %1888 = vmatpush1.bf16.msra.mxu0 %v1876
      %1889 = vmatprep.subr.bf16.mxu0 0
      %1890 = vmatpush1.bf16.msra.mxu0 %v1877
      %1891 = vmatprep.subr.bf16.mxu0 0
      %1892 = vmatpush1.bf16.msra.mxu0 %v1878
      %1893 = vmatprep.subr.bf16.mxu0 0
      %1894 = vmatpush1.bf16.msra.mxu0 %v1879
      %1895 = vmatprep.subr.bf16.mxu0 0
      %1896 = vmatpush1.bf16.msra.mxu0 0
      %1897 = vmatprep.subr.bf16.mxu0 0
      %1898 = vmatpush1.bf16.msra.mxu0 0
      %1899 = vmatprep.subr.bf16.mxu0 0
      %1900 = vmatpush1.bf16.msra.mxu0 0
      %1901 = vmatprep.subr.bf16.mxu0 0
      %1902 = vmatpush1.bf16.msra.mxu0 0
      %1903 = vmatprep.subr.bf16.mxu0 0
      %1904 = vmatpush1.bf16.msra.mxu0 0
      %1905 = vmatprep.subr.bf16.mxu0 0
      %1906 = vmatpush1.bf16.msra.mxu0 0
      %1907 = vmatprep.subr.bf16.mxu0 0
      %1908 = vmatpush1.bf16.msra.mxu0 0
      %1909 = vmatprep.subr.bf16.mxu0 0
      %1910 = vmatpush1.bf16.msra.mxu0 0
      %1911 = vmatprep.subr.bf16.mxu0 0
      %1912 = vmatpush1.bf16.msra.mxu0 0
      %1913 = vmatprep.subr.bf16.mxu0 0
      %1914 = vmatpush1.bf16.msra.mxu0 0
      %1915 = vmatprep.subr.bf16.mxu0 0
      %1916 = vmatpush1.bf16.msra.mxu0 0
      %1917 = vmatprep.subr.bf16.mxu0 0
      %1918 = vmatpush1.bf16.msra.mxu0 0
      %1919 = vmatprep.mubr.bf16.mxu0 0
      %1920 = vmatmul.mubr.bf16.gmra.mrb[0].mxu0 %v1885
      %v1921 = vpop.f32.mrb[0].mxu0
      %v1922 = vadd.f32 0.0, %v1921
      %v1923 = vpop.f32.mrb[0].mxu0
      %v1924 = vpop.f32.mrb[0].mxu0
      %v1925 = vpop.f32.mrb[0].mxu0
      %1926 = vdwg.mxu0
      %1927 = vst.msk [vmem:[%s479] sm:$0xff] %vm501, %v1922
      %1928 = vst.msk [vmem:[%s486] sm:$0xff] %vm501, %v490
      %p1929 = scmp.lt.s32.totalorder %s28, 1
      %s1930 = scalar_select %p1929, %s28, 1
      %p1931 = scmp.lt.s32.totalorder %s29, 0
      %s1932 = scalar_select %p1931, %s29, 0
      %s1933 = sadd.s32 %s1932, %s1930
      %s1934 = smul.addr %s1933, 8
      %s1935 = scalar_lea.vmem %s11, %s1934
      %p1936 = scmp.lt.s32.totalorder %s28, 1
      %s1937 = scalar_select %p1936, %s28, 1
      %p1938 = scmp.lt.s32.totalorder %s29, 0
      %s1939 = scalar_select %p1938, %s29, 0
      %s1940 = sadd.s32 %s1939, %s1937
      %s1941 = smul.addr %s1940, 8
      %s1942 = scalar_lea.vmem %s12, %s1941
      // Predicated region
      $region69: #{_lambda_.6} parent=63 // pred_check
        %p1943 = pneg %p301
      $region70: #{_lambda_.6} parent=63 // pred_check_branch
        %1945 = sbr.rel (%p1943) target = $region72
      $region71: #{_lambda_.6} parent=63 // pred_region
        _
      $region72: #{_lambda_.6} parent=63 // pred_fallthru
        _
      // Predicated region
      $region73: #{_lambda_.6} parent=63 // pred_check
        %p1946 = pneg %p329
      $region74: #{_lambda_.6} parent=63 // pred_check_branch
        %1948 = sbr.rel (%p1946) target = $region76
      $region75: #{_lambda_.6} parent=63 // pred_region
        _
      $region76: #{_lambda_.6} parent=63 // pred_fallthru
        _
    $region64: #{_lambda_.6} parent=5 // pred_fallthru
      _
    %p1949 = scmp.le.s32.totalorder 2, %s19
    // Predicated region
    $region77: #{_lambda_.6} parent=5 // pred_check
      %p1950 = pneg %p1949
    $region78: #{_lambda_.6} parent=5 // pred_check_branch
      %1952 = sbr.rel (%p1950) target = $region80
    $region79: #{_lambda_.6} parent=5 // pred_region
      %s1953 = ssub.s32 %s19, 2
      // Predicated region
      $region81: #{_lambda_.6} parent=79 // pred_check
        %p1954 = pneg %p307
      $region82: #{_lambda_.6} parent=79 // pred_check_branch
        %1956 = sbr.rel (%p1954) target = $region84
      $region83: #{_lambda_.6} parent=79 // pred_region
        %p1957 = scmp.lt.s32.totalorder %s30, 1
        %s1958 = scalar_select %p1957, %s30, 1
        %p1959 = scmp.lt.s32.totalorder %s31, 0
        %s1960 = scalar_select %p1959, %s31, 0
        %s1961 = sadd.s32 %s1960, %s1958
        %s1962 = smul.addr %s1961, 8
        %s1963 = scalar_lea.vmem %s11, %s1962
      $region84: #{_lambda_.6} parent=79 // pred_fallthru
        _
      // Predicated region
      $region85: #{_lambda_.6} parent=79 // pred_check
        %p1964 = pneg %p335
      $region86: #{_lambda_.6} parent=79 // pred_check_branch
        %1966 = sbr.rel (%p1964) target = $region88
      $region87: #{_lambda_.6} parent=79 // pred_region
        %p1967 = scmp.lt.s32.totalorder %s30, 1
        %s1968 = scalar_select %p1967, %s30, 1
        %p1969 = scmp.lt.s32.totalorder %s31, 0
        %s1970 = scalar_select %p1969, %s31, 0
        %s1971 = sadd.s32 %s1970, %s1968
        %s1972 = smul.addr %s1971, 8
        %s1973 = scalar_lea.vmem %s12, %s1972
      $region88: #{_lambda_.6} parent=79 // pred_fallthru
        _
    $region80: #{_lambda_.6} parent=5 // pred_fallthru
      _
  $region6: #{_lambda_.6} parent=0 // loop_footer
    %s23 = sadd.s32 1, %s19
  $region7: #{_lambda_.6} parent=0 // loop_footer_branch
    %18 = sbr.rel target = $region3
  $region8: #{_lambda_.6} parent=0 // loop_exit
    _

// kernel: _lambda_.5
$region0: #{_lambda_.5}
  #allocation0 [shape = 'u32[]', space=smem, size = 0x4, offset = 0x4, fixed_abs, tag = 'smem constant byte address 0x4 - core index']
  #allocation1 [shape = 'u32[144,128]{1,0:T(1,128)}', space=vmem, size = 0x12000, scoped, tag = 'internal scratch']
  #allocation2 [shape = 'f32[8,16,64]{2,1,0:T(8,128)}', space=vmem, size = 0x10000, scoped, tag = 'scratch operand']
  #allocation3 [shape = 'f32[8,16,64]{2,1,0:T(8,128)}', space=vmem, size = 0x10000, scoped, tag = 'scratch operand']
  #allocation4 [shape = 'f32[8,16,1]{2,1,0:T(8,128)}', space=vmem, size = 0x10000, scoped, tag = 'scratch operand']
  #allocation5 [shape = 'f32[8,1,64]{2,1,0:T(1,128)}', space=vmem, size = 0x1000, scoped, tag = 'scratch operand']
  #allocation6 [shape = 'f32[16,64]{1,0:T(8,128)}', space=vmem, size = 0x2000, scoped, tag = 'scratch operand']
  #allocation7 [shape = 'f32[3,64]{1,0:T(4,128)}', space=vmem, size = 0x800, scoped, tag = 'scratch operand']
  %s0 = inlined_call_operand.vmem [shape: f32[2,8,32], index: 0, kind: input, shape index: {}]
  %s1 = inlined_call_operand.vmem [shape: f32[1,32], index: 1, kind: input, shape index: {}]
  %s2 = inlined_call_operand.vmem [shape: bf16[32,128], index: 2, kind: input, shape index: {}]
  %s3 = inlined_call_operand.vmem [shape: f32[4,64], index: 3, kind: input, shape index: {}]
  %s4 = inlined_call_operand.vmem [shape: f32[1,64], index: 4, kind: input, shape index: {}]
  %s5 = inlined_call_operand.vmem [shape: bf16[64,96], index: 5, kind: input, shape index: {}]
  %s6 = inlined_call_operand.vmem [shape: f32[1,64], index: 6, kind: input, shape index: {}]
  %s7 = inlined_call_operand.vmem [shape: f32[16,64], index: 7, kind: input, shape index: {}]
  %s8 = inlined_call_operand.vmem [shape: f32[1,64], index: 8, kind: input, shape index: {}]
  %s9 = inlined_call_operand.vmem [shape: bf16[64,32], index: 9, kind: input, shape index: {}]
  %s10 = inlined_call_operand.vmem [shape: f32[2,8,32], index: 10, kind: output, shape index: {0}]
  %s11 = inlined_call_operand.vmem [shape: f32[2,8,32], index: 11, kind: output, shape index: {1}]
  %12 = xla_tuple %s10, %s11
  %s13 = sld [smem:[#allocation0]]
  $region85: #{_lambda_.5} parent=0
    _
  %s15 = ssub.s32 1, %s13
  %s16 = scalar_select 0, %s15, %s13
  loop: start=0, step=1, limit=4
  $region2: #{_lambda_.5} parent=0 // loop_pre_header
    _
  $region3: #{_lambda_.5} parent=0 // loop_header
    %s18 = sphi 0, %s22
    %p19 = scmp.ge.s32.totalorder %s18, 4
    %s25 = sphi 0, %s37
    %s26 = sphi 0, %s33
    %s27 = sphi 0, %s25
    %s28 = sphi 0, %s26
    %s29 = sphi 0, %s27
    %s30 = sphi 0, %s28
    %s42 = sphi 0, %s44
    %s45 = sphi 0, %s42
    %s46 = sphi 0, %s45
    %s62 = sphi 0, %s46
    %s66 = sphi 0, %s66
    %s68 = sphi 0, %s66
    %s69 = sphi 0, %s68
    %s83 = sphi 0, %s69
    %s87 = sphi 0, %s87
    %s89 = sphi 0, %s87
    %s90 = sphi 0, %s89
    %s104 = sphi 0, %s90
    %s108 = sphi 0, %s108
    %s110 = sphi 0, %s108
    %s111 = sphi 0, %s110
    %s125 = sphi 0, %s111
    %s129 = sphi 0, %s129
    %s131 = sphi 0, %s129
    %s132 = sphi 0, %s131
    %s146 = sphi 0, %s132
    %s150 = sphi 0, %s150
    %s152 = sphi 0, %s150
    %s153 = sphi 0, %s152
    %s167 = sphi 0, %s153
    %s171 = sphi 0, %s171
    %s173 = sphi 0, %s171
    %s174 = sphi 0, %s173
    %s188 = sphi 0, %s174
    %s192 = sphi 0, %s192
    %s194 = sphi 0, %s192
    %s195 = sphi 0, %s194
    %s209 = sphi 0, %s195
    %s213 = sphi 0, %s213
    %s215 = sphi 0, %s213
    %s216 = sphi 0, %s215
    %s230 = sphi 0, %s216
    %s234 = sphi 0, %s234
    %s236 = sphi 0, %s234
    %s237 = sphi 0, %s236
    %s251 = sphi 0, %s237
    %s259 = sphi 0, %s261
    %s262 = sphi 0, %s259
    %s263 = sphi 0, %s262
    %s279 = sphi 0, %s263
    %s287 = sphi 0, %s289
    %s290 = sphi 0, %s287
    %s291 = sphi 0, %s290
    %s307 = sphi 0, %s291
  $region4: #{_lambda_.5} parent=0 // loop_header_branch
    %21 = sbr.rel (%p19) target = $region8
  $region5: #{_lambda_.5} parent=0 // loop_body
    %s23 = ssub.s32 %s18, 1
    %s24 = ssub.s32 %s18, 2
    %s31 = sadd.s32 1, %s26
    %p32 = scmp.ge.s32.totalorder %s31, 1
    %s33 = scalar_select %p32, 0, %s31
    %s34 = sadd.s32 1, %s25
    %s35 = scalar_select %p32, %s34, %s25
    %p36 = scmp.ge.s32.totalorder %s35, 2
    %s37 = scalar_select %p36, 0, %s35
    %s38 = ssub.s32 %s25, %s37
    %s39 = ssub.s32 %s26, %s33
    %s40 = sor.u32 %s38, %s39
    %p41 = scmp.eq.s32.totalorder %s40, 0
    %s43 = sadd.s32 %s42, 1
    %s44 = scalar_select %p41, %s42, %s43
    %p47 = pneg %p41
    %p48 = scmp.eq.s32.totalorder %s18, 1
    %p49 = por %p47, %p48
    %p50 = scmp.ne.s32.totalorder %s42, %s45
    %p51 = scmp.eq.s32.totalorder %s18, 0
    %p52 = por %p50, %p51
    %p53 = scmp.ne.s32.totalorder %s42, %s45
    %p54 = scmp.eq.s32.totalorder %s23, 1
    %p55 = por %p53, %p54
    %p56 = scmp.ne.s32.totalorder %s45, %s46
    %p57 = scmp.eq.s32.totalorder %s23, 0
    %p58 = por %p56, %p57
    %p59 = scmp.ne.s32.totalorder %s45, %s46
    %p60 = scmp.eq.s32.totalorder %s24, 1
    %p61 = por %p59, %p60
    %p63 = scmp.ne.s32.totalorder %s46, %s62
    %p64 = scmp.eq.s32.totalorder %s24, 0
    %p65 = por %p63, %p64
    %s67 = sadd.s32 %s66, 1
    %p70 = scmp.eq.s32.totalorder %s18, 1
    %p71 = scmp.ne.s32.totalorder %s66, %s68
    %p72 = scmp.eq.s32.totalorder %s18, 0
    %p73 = por %p71, %p72
    %p74 = scmp.ne.s32.totalorder %s66, %s68
    %p75 = scmp.eq.s32.totalorder %s23, 1
    %p76 = por %p74, %p75
    %p77 = scmp.ne.s32.totalorder %s68, %s69
    %p78 = scmp.eq.s32.totalorder %s23, 0
    %p79 = por %p77, %p78
    %p80 = scmp.ne.s32.totalorder %s68, %s69
    %p81 = scmp.eq.s32.totalorder %s24, 1
    %p82 = por %p80, %p81
    %p84 = scmp.ne.s32.totalorder %s69, %s83
    %p85 = scmp.eq.s32.totalorder %s24, 0
    %p86 = por %p84, %p85
    %s88 = sadd.s32 %s87, 1
    %p91 = scmp.eq.s32.totalorder %s18, 1
    %p92 = scmp.ne.s32.totalorder %s87, %s89
    %p93 = scmp.eq.s32.totalorder %s18, 0
    %p94 = por %p92, %p93
    %p95 = scmp.ne.s32.totalorder %s87, %s89
    %p96 = scmp.eq.s32.totalorder %s23, 1
    %p97 = por %p95, %p96
    %p98 = scmp.ne.s32.totalorder %s89, %s90
    %p99 = scmp.eq.s32.totalorder %s23, 0
    %p100 = por %p98, %p99
    %p101 = scmp.ne.s32.totalorder %s89, %s90
    %p102 = scmp.eq.s32.totalorder %s24, 1
    %p103 = por %p101, %p102
    %p105 = scmp.ne.s32.totalorder %s90, %s104
    %p106 = scmp.eq.s32.totalorder %s24, 0
    %p107 = por %p105, %p106
    %s109 = sadd.s32 %s108, 1
    %p112 = scmp.eq.s32.totalorder %s18, 1
    %p113 = scmp.ne.s32.totalorder %s108, %s110
    %p114 = scmp.eq.s32.totalorder %s18, 0
    %p115 = por %p113, %p114
    %p116 = scmp.ne.s32.totalorder %s108, %s110
    %p117 = scmp.eq.s32.totalorder %s23, 1
    %p118 = por %p116, %p117
    %p119 = scmp.ne.s32.totalorder %s110, %s111
    %p120 = scmp.eq.s32.totalorder %s23, 0
    %p121 = por %p119, %p120
    %p122 = scmp.ne.s32.totalorder %s110, %s111
    %p123 = scmp.eq.s32.totalorder %s24, 1
    %p124 = por %p122, %p123
    %p126 = scmp.ne.s32.totalorder %s111, %s125
    %p127 = scmp.eq.s32.totalorder %s24, 0
    %p128 = por %p126, %p127
    %s130 = sadd.s32 %s129, 1
    %p133 = scmp.eq.s32.totalorder %s18, 1
    %p134 = scmp.ne.s32.totalorder %s129, %s131
    %p135 = scmp.eq.s32.totalorder %s18, 0
    %p136 = por %p134, %p135
    %p137 = scmp.ne.s32.totalorder %s129, %s131
    %p138 = scmp.eq.s32.totalorder %s23, 1
    %p139 = por %p137, %p138
    %p140 = scmp.ne.s32.totalorder %s131, %s132
    %p141 = scmp.eq.s32.totalorder %s23, 0
    %p142 = por %p140, %p141
    %p143 = scmp.ne.s32.totalorder %s131, %s132
    %p144 = scmp.eq.s32.totalorder %s24, 1
    %p145 = por %p143, %p144
    %p147 = scmp.ne.s32.totalorder %s132, %s146
    %p148 = scmp.eq.s32.totalorder %s24, 0
    %p149 = por %p147, %p148
    %s151 = sadd.s32 %s150, 1
    %p154 = scmp.eq.s32.totalorder %s18, 1
    %p155 = scmp.ne.s32.totalorder %s150, %s152
    %p156 = scmp.eq.s32.totalorder %s18, 0
    %p157 = por %p155, %p156
    %p158 = scmp.ne.s32.totalorder %s150, %s152
    %p159 = scmp.eq.s32.totalorder %s23, 1
    %p160 = por %p158, %p159
    %p161 = scmp.ne.s32.totalorder %s152, %s153
    %p162 = scmp.eq.s32.totalorder %s23, 0
    %p163 = por %p161, %p162
    %p164 = scmp.ne.s32.totalorder %s152, %s153
    %p165 = scmp.eq.s32.totalorder %s24, 1
    %p166 = por %p164, %p165
    %p168 = scmp.ne.s32.totalorder %s153, %s167
    %p169 = scmp.eq.s32.totalorder %s24, 0
    %p170 = por %p168, %p169
    %s172 = sadd.s32 %s171, 1
    %p175 = scmp.eq.s32.totalorder %s18, 1
    %p176 = scmp.ne.s32.totalorder %s171, %s173
    %p177 = scmp.eq.s32.totalorder %s18, 0
    %p178 = por %p176, %p177
    %p179 = scmp.ne.s32.totalorder %s171, %s173
    %p180 = scmp.eq.s32.totalorder %s23, 1
    %p181 = por %p179, %p180
    %p182 = scmp.ne.s32.totalorder %s173, %s174
    %p183 = scmp.eq.s32.totalorder %s23, 0
    %p184 = por %p182, %p183
    %p185 = scmp.ne.s32.totalorder %s173, %s174
    %p186 = scmp.eq.s32.totalorder %s24, 1
    %p187 = por %p185, %p186
    %p189 = scmp.ne.s32.totalorder %s174, %s188
    %p190 = scmp.eq.s32.totalorder %s24, 0
    %p191 = por %p189, %p190
    %s193 = sadd.s32 %s192, 1
    %p196 = scmp.eq.s32.totalorder %s18, 1
    %p197 = scmp.ne.s32.totalorder %s192, %s194
    %p198 = scmp.eq.s32.totalorder %s18, 0
    %p199 = por %p197, %p198
    %p200 = scmp.ne.s32.totalorder %s192, %s194
    %p201 = scmp.eq.s32.totalorder %s23, 1
    %p202 = por %p200, %p201
    %p203 = scmp.ne.s32.totalorder %s194, %s195
    %p204 = scmp.eq.s32.totalorder %s23, 0
    %p205 = por %p203, %p204
    %p206 = scmp.ne.s32.totalorder %s194, %s195
    %p207 = scmp.eq.s32.totalorder %s24, 1
    %p208 = por %p206, %p207
    %p210 = scmp.ne.s32.totalorder %s195, %s209
    %p211 = scmp.eq.s32.totalorder %s24, 0
    %p212 = por %p210, %p211
    %s214 = sadd.s32 %s213, 1
    %p217 = scmp.eq.s32.totalorder %s18, 1
    %p218 = scmp.ne.s32.totalorder %s213, %s215
    %p219 = scmp.eq.s32.totalorder %s18, 0
    %p220 = por %p218, %p219
    %p221 = scmp.ne.s32.totalorder %s213, %s215
    %p222 = scmp.eq.s32.totalorder %s23, 1
    %p223 = por %p221, %p222
    %p224 = scmp.ne.s32.totalorder %s215, %s216
    %p225 = scmp.eq.s32.totalorder %s23, 0
    %p226 = por %p224, %p225
    %p227 = scmp.ne.s32.totalorder %s215, %s216
    %p228 = scmp.eq.s32.totalorder %s24, 1
    %p229 = por %p227, %p228
    %p231 = scmp.ne.s32.totalorder %s216, %s230
    %p232 = scmp.eq.s32.totalorder %s24, 0
    %p233 = por %p231, %p232
    %s235 = sadd.s32 %s234, 1
    %p238 = scmp.eq.s32.totalorder %s18, 1
    %p239 = scmp.ne.s32.totalorder %s234, %s236
    %p240 = scmp.eq.s32.totalorder %s18, 0
    %p241 = por %p239, %p240
    %p242 = scmp.ne.s32.totalorder %s234, %s236
    %p243 = scmp.eq.s32.totalorder %s23, 1
    %p244 = por %p242, %p243
    %p245 = scmp.ne.s32.totalorder %s236, %s237
    %p246 = scmp.eq.s32.totalorder %s23, 0
    %p247 = por %p245, %p246
    %p248 = scmp.ne.s32.totalorder %s236, %s237
    %p249 = scmp.eq.s32.totalorder %s24, 1
    %p250 = por %p248, %p249
    %p252 = scmp.ne.s32.totalorder %s237, %s251
    %p253 = scmp.eq.s32.totalorder %s24, 0
    %p254 = por %p252, %p253
    %s255 = ssub.s32 %s25, %s37
    %s256 = ssub.s32 %s26, %s33
    %s257 = sor.u32 %s255, %s256
    %p258 = scmp.eq.s32.totalorder %s257, 0
    %s260 = sadd.s32 %s259, 1
    %s261 = scalar_select %p258, %s259, %s260
    %p264 = pneg %p258
    %p265 = scmp.eq.s32.totalorder %s18, 1
    %p266 = por %p264, %p265
    %p267 = scmp.ne.s32.totalorder %s259, %s262
    %p268 = scmp.eq.s32.totalorder %s18, 0
    %p269 = por %p267, %p268
    %p270 = scmp.ne.s32.totalorder %s259, %s262
    %p271 = scmp.eq.s32.totalorder %s23, 1
    %p272 = por %p270, %p271
    %p273 = scmp.ne.s32.totalorder %s262, %s263
    %p274 = scmp.eq.s32.totalorder %s23, 0
    %p275 = por %p273, %p274
    %p276 = scmp.ne.s32.totalorder %s262, %s263
    %p277 = scmp.eq.s32.totalorder %s24, 1
    %p278 = por %p276, %p277
    %p280 = scmp.ne.s32.totalorder %s263, %s279
    %p281 = scmp.eq.s32.totalorder %s24, 0
    %p282 = por %p280, %p281
    %s283 = ssub.s32 %s25, %s37
    %s284 = ssub.s32 %s26, %s33
    %s285 = sor.u32 %s283, %s284
    %p286 = scmp.eq.s32.totalorder %s285, 0
    %s288 = sadd.s32 %s287, 1
    %s289 = scalar_select %p286, %s287, %s288
    %p292 = pneg %p286
    %p293 = scmp.eq.s32.totalorder %s18, 1
    %p294 = por %p292, %p293
    %p295 = scmp.ne.s32.totalorder %s287, %s290
    %p296 = scmp.eq.s32.totalorder %s18, 0
    %p297 = por %p295, %p296
    %p298 = scmp.ne.s32.totalorder %s287, %s290
    %p299 = scmp.eq.s32.totalorder %s23, 1
    %p300 = por %p298, %p299
    %p301 = scmp.ne.s32.totalorder %s290, %s291
    %p302 = scmp.eq.s32.totalorder %s23, 0
    %p303 = por %p301, %p302
    %p304 = scmp.ne.s32.totalorder %s290, %s291
    %p305 = scmp.eq.s32.totalorder %s24, 1
    %p306 = por %p304, %p305
    %p308 = scmp.ne.s32.totalorder %s291, %s307
    %p309 = scmp.eq.s32.totalorder %s24, 0
    %p310 = por %p308, %p309
    %p311 = scmp.le.s32.totalorder 1, %s18
    %p312 = scmp.lt.s32.totalorder %s18, 3
    %p313 = pnand %p311, %p312
    %p314 = pneg %p313
    // Predicated region
    $region9: #{_lambda_.5} parent=5 // pred_check
      _
    $region10: #{_lambda_.5} parent=5 // pred_check_branch
      %316 = sbr.rel (%p313) target = $region12
    $region11: #{_lambda_.5} parent=5 // pred_region
      %s317 = ssub.s32 %s18, 1
      // Predicated region
      $region13: #{_lambda_.5} parent=11 // pred_check
        %p318 = pneg %p79
      $region14: #{_lambda_.5} parent=11 // pred_check_branch
        %320 = sbr.rel (%p318) target = $region16
      $region15: #{_lambda_.5} parent=11 // pred_region
        _
      $region16: #{_lambda_.5} parent=11 // pred_fallthru
        _
      // Predicated region
      $region17: #{_lambda_.5} parent=11 // pred_check
        %p321 = pneg %p100
      $region18: #{_lambda_.5} parent=11 // pred_check_branch
        %323 = sbr.rel (%p321) target = $region20
      $region19: #{_lambda_.5} parent=11 // pred_region
        _
      $region20: #{_lambda_.5} parent=11 // pred_fallthru
        _
      // Predicated region
      $region21: #{_lambda_.5} parent=11 // pred_check
        %p324 = pneg %p121
      $region22: #{_lambda_.5} parent=11 // pred_check_branch
        %326 = sbr.rel (%p324) target = $region24
      $region23: #{_lambda_.5} parent=11 // pred_region
        _
      $region24: #{_lambda_.5} parent=11 // pred_fallthru
        _
      // Predicated region
      $region25: #{_lambda_.5} parent=11 // pred_check
        %p327 = pneg %p142
      $region26: #{_lambda_.5} parent=11 // pred_check_branch
        %329 = sbr.rel (%p327) target = $region28
      $region27: #{_lambda_.5} parent=11 // pred_region
        _
      $region28: #{_lambda_.5} parent=11 // pred_fallthru
        _
      // Predicated region
      $region29: #{_lambda_.5} parent=11 // pred_check
        %p330 = pneg %p163
      $region30: #{_lambda_.5} parent=11 // pred_check_branch
        %332 = sbr.rel (%p330) target = $region32
      $region31: #{_lambda_.5} parent=11 // pred_region
        _
      $region32: #{_lambda_.5} parent=11 // pred_fallthru
        _
      // Predicated region
      $region33: #{_lambda_.5} parent=11 // pred_check
        %p333 = pneg %p184
      $region34: #{_lambda_.5} parent=11 // pred_check_branch
        %335 = sbr.rel (%p333) target = $region36
      $region35: #{_lambda_.5} parent=11 // pred_region
        _
      $region36: #{_lambda_.5} parent=11 // pred_fallthru
        _
      // Predicated region
      $region37: #{_lambda_.5} parent=11 // pred_check
        %p336 = pneg %p205
      $region38: #{_lambda_.5} parent=11 // pred_check_branch
        %338 = sbr.rel (%p336) target = $region40
      $region39: #{_lambda_.5} parent=11 // pred_region
        _
      $region40: #{_lambda_.5} parent=11 // pred_fallthru
        _
      // Predicated region
      $region41: #{_lambda_.5} parent=11 // pred_check
        %p339 = pneg %p226
      $region42: #{_lambda_.5} parent=11 // pred_check_branch
        %341 = sbr.rel (%p339) target = $region44
      $region43: #{_lambda_.5} parent=11 // pred_region
        _
      $region44: #{_lambda_.5} parent=11 // pred_fallthru
        _
      // Predicated region
      $region45: #{_lambda_.5} parent=11 // pred_check
        %p342 = pneg %p247
      $region46: #{_lambda_.5} parent=11 // pred_check_branch
        %344 = sbr.rel (%p342) target = $region48
      $region47: #{_lambda_.5} parent=11 // pred_region
        _
      $region48: #{_lambda_.5} parent=11 // pred_fallthru
        _
    $region12: #{_lambda_.5} parent=5 // pred_fallthru
      _
    %p345 = scmp.lt.s32.totalorder %s18, 2
    // Predicated region
    $region49: #{_lambda_.5} parent=5 // pred_check
      %p346 = pneg %p345
    $region50: #{_lambda_.5} parent=5 // pred_check_branch
      %348 = sbr.rel (%p346) target = $region52
    $region51: #{_lambda_.5} parent=5 // pred_region
      // Predicated region
      $region53: #{_lambda_.5} parent=51 // pred_check
        %p349 = pneg %p52
      $region54: #{_lambda_.5} parent=51 // pred_check_branch
        %351 = sbr.rel (%p349) target = $region56
      $region55: #{_lambda_.5} parent=51 // pred_region
        %p352 = scmp.lt.s32.totalorder %s25, 1
        %s353 = scalar_select %p352, %s25, 1
        %p354 = scmp.lt.s32.totalorder %s26, 0
        %s355 = scalar_select %p354, %s26, 0
        %s356 = sadd.s32 %s355, %s353
        %s357 = smul.addr %s356, 8
        %s358 = scalar_lea.vmem %s0, %s357
      $region56: #{_lambda_.5} parent=51 // pred_fallthru
        _
    $region52: #{_lambda_.5} parent=5 // pred_fallthru
      _
    %p359 = scmp.le.s32.totalorder 1, %s18
    %p360 = scmp.lt.s32.totalorder %s18, 3
    %p361 = pnand %p359, %p360
    %p362 = pneg %p361
    // Predicated region
    $region57: #{_lambda_.5} parent=5 // pred_check
      _
    $region58: #{_lambda_.5} parent=5 // pred_check_branch
      %364 = sbr.rel (%p361) target = $region60
    $region59: #{_lambda_.5} parent=5 // pred_region
      %s365 = ssub.s32 %s18, 1
      %p366 = scmp.lt.s32.totalorder %s27, 1
      %s367 = scalar_select %p366, %s27, 1
      %p368 = scmp.lt.s32.totalorder %s28, 0
      %s369 = scalar_select %p368, %s28, 0
      %s370 = sadd.s32 %s369, %s367
      %s371 = smul.addr %s370, 8
      %s372 = scalar_lea.vmem %s0, %s371
      %p373 = pneg %p58
      %p374 = pneg %p55
      %p375 = pneg %p79
      %p376 = pneg %p76
      %p377 = pneg %p100
      %p378 = pneg %p97
      %p379 = pneg %p121
      %p380 = pneg %p118
      %p381 = pneg %p142
      %p382 = pneg %p139
      %p383 = pneg %p163
      %p384 = pneg %p160
      %p385 = pneg %p184
      %p386 = pneg %p181
      %p387 = pneg %p205
      %p388 = pneg %p202
      %p389 = pneg %p226
      %p390 = pneg %p223
      %p391 = pneg %p247
      %p392 = pneg %p244
      %p393 = pneg %p275
      %p394 = pneg %p272
      %p395 = scmp.lt.s32.totalorder %s27, 1
      %s396 = scalar_select %p395, %s27, 1
      %p397 = scmp.lt.s32.totalorder %s28, 0
      %s398 = scalar_select %p397, %s28, 0
      %s399 = sadd.s32 %s398, %s396
      %s400 = smul.addr %s399, 8
      %s401 = scalar_lea.vmem %s10, %s400
      %p402 = pneg %p303
      %p403 = pneg %p300
      %p404 = scmp.lt.s32.totalorder %s27, 1
      %s405 = scalar_select %p404, %s27, 1
      %p406 = scmp.lt.s32.totalorder %s28, 0
      %s407 = scalar_select %p406, %s28, 0
      %s408 = sadd.s32 %s407, %s405
      %s409 = smul.addr %s408, 8
      %s410 = scalar_lea.vmem %s11, %s409
      %p411 = scmp.lt.s32.totalorder %s27, 1
      %s412 = scalar_select %p411, %s27, 1
      %p413 = scmp.lt.s32.totalorder %s28, 0
      %s414 = scalar_select %p413, %s28, 0
      %s415 = sadd.s32 %s414, %s412
      %s416 = smul.addr %s415, 8
      %s417 = scalar_lea.vmem %s0, %s416
      %p418 = scmp.lt.s32.totalorder %s27, 1
      %s419 = scalar_select %p418, %s27, 1
      %p420 = scmp.lt.s32.totalorder %s28, 0
      %s421 = scalar_select %p420, %s28, 0
      %s422 = sadd.s32 %s421, %s419
      %s423 = smul.addr %s422, 8
      %s424 = scalar_lea.vmem %s10, %s423
      %p425 = scmp.lt.s32.totalorder %s27, 1
      %s426 = scalar_select %p425, %s27, 1
      %p427 = scmp.lt.s32.totalorder %s28, 0
      %s428 = scalar_select %p427, %s28, 0
      %s429 = sadd.s32 %s428, %s426
      %s430 = smul.addr %s429, 8
      %s431 = scalar_lea.vmem %s11, %s430
      %v433 = vld [vmem:[%s417] sm:$0xff]
      %p434 = scmp.eq.s32.totalorder %s28, 0
      // Predicated region
      $region61: #{_lambda_.5} parent=59 // pred_check
        %p435 = pneg %p434
      $region62: #{_lambda_.5} parent=59 // pred_check_branch
        %437 = sbr.rel (%p435) target = $region64
      $region63: #{_lambda_.5} parent=59 // pred_region
        %vm438 = vcmask 523264
        %439 = vst.msk [vmem:[#allocation6] sm:$0xff] %vm438, 0.0
        %440 = vst.msk [vmem:[#allocation6 + $0x8] sm:$0xff] %vm438, 0.0
        %vm441 = vcmask 518144
        %442 = vst.msk [vmem:[#allocation7] sm:$0x7] %vm441, 0.0
      $region64: #{_lambda_.5} parent=59 // pred_fallthru
        _
      %v443 = vmul.f32 %v433, %v433
      %vm444 = vcmask 261120
      %v445 = vsel %vm444, %v443, 0.0
      %446 = vadd.xlane.f32.xlu0 %v445
      %v447 = vpop.xlane.xlu0 %446
      %v448 = vrcp.pop 32.0
      %v449 = vmul.f32 %v447, %v448
      %v450 = vadd.f32 %v449, 1e-05
      %v451 = vrsqrt.pop %v450
      %v452 = vmul.f32 %v433, %v451
      %v453 = vld [vmem:[%s1] sm:$0x1]
      %v455 = vlaneseq
      %v456 = vshrl.u32 %v455, 7
      %v457 = vsub.s32 0, %v456
      %v458 = vrot.slane %v453, %v457
      %v460 = vmul.f32 %v452, %v458
      %v461 = vpack.c.bf16 %v460, %v460
      %v462 = vld [vmem:[%s2] sm:$0xf]
      %v463 = vld [vmem:[%s2 + $0x4] sm:$0xf]
      %v464 = vld [vmem:[%s2 + $0x8] sm:$0xf]
      %v465 = vld [vmem:[%s2 + $0xc] sm:$0xf]
      %v470 = vunpack.c.l.b16 %v462
      %v471 = vunpack.c.l.b16 %v463
      %v472 = vunpack.c.l.b16 %v464
      %v473 = vunpack.c.l.b16 %v465
      %v474 = vpack.c.b16 %v471, %v470
      %v475 = vpack.c.b16 %v473, %v472
      %v479 = vsel %vm444, %v461, 0
      %481 = vmatprep.subr.bf16.mxu0 0
      %482 = vmatpush1.bf16.msra.mxu0 %v474
      %483 = vmatprep.subr.bf16.mxu0 0
      %484 = vmatpush1.bf16.msra.mxu0 %v475
      %485 = vmatprep.subr.bf16.mxu0 0
      %486 = vmatpush1.bf16.msra.mxu0 0
      %487 = vmatprep.subr.bf16.mxu0 0
      %488 = vmatpush1.bf16.msra.mxu0 0
      %489 = vmatprep.subr.bf16.mxu0 0
      %490 = vmatpush1.bf16.msra.mxu0 0
      %491 = vmatprep.subr.bf16.mxu0 0
      %492 = vmatpush1.bf16.msra.mxu0 0
      %493 = vmatprep.subr.bf16.mxu0 0
      %494 = vmatpush1.bf16.msra.mxu0 0
      %495 = vmatprep.subr.bf16.mxu0 0
      %496 = vmatpush1.bf16.msra.mxu0 0
      %497 = vmatprep.subr.bf16.mxu0 0
      %498 = vmatpush1.bf16.msra.mxu0 0
      %499 = vmatprep.subr.bf16.mxu0 0
      %500 = vmatpush1.bf16.msra.mxu0 0
      %501 = vmatprep.subr.bf16.mxu0 0
      %502 = vmatpush1.bf16.msra.mxu0 0
      %503 = vmatprep.subr.bf16.mxu0 0
      %504 = vmatpush1.bf16.msra.mxu0 0
      %505 = vmatprep.subr.bf16.mxu0 0
      %506 = vmatpush1.bf16.msra.mxu0 0
      %507 = vmatprep.subr.bf16.mxu0 0
      %508 = vmatpush1.bf16.msra.mxu0 0
      %509 = vmatprep.subr.bf16.mxu0 0
      %510 = vmatpush1.bf16.msra.mxu0 0
      %511 = vmatprep.subr.bf16.mxu0 0
      %512 = vmatpush1.bf16.msra.mxu0 0
      %513 = vmatprep.mubr.bf16.mxu0 0
      %514 = vmatmul.mubr.bf16.gmra.mrb[0].mxu0 %v479
      %v515 = vpop.f32.mrb[0].mxu0
      %v516 = vadd.f32 0.0, %v515
      %v517 = vpop.f32.mrb[0].mxu0
      %v518 = vpop.f32.mrb[0].mxu0
      %v519 = vpop.f32.mrb[0].mxu0
      %520 = vdwg.mxu0
      %v521 = vld [vmem:[#allocation7] sm:$0x7]
      %v523 = vrot.slane %v516, 5
      %vm525 = vcmask 1042432
      %v526 = vsel %vm525, %v521, %v523
      %vm527 = vcmask 523269
      %528 = vst.msk [vmem:[#allocation7 - $0x5] sm:$0xe0] %vm527, %v516
      %v529 = vld [vmem:[%s3] sm:$0x1]
      %v530 = vlaneseq
      %v531 = vshrl.u32 %v530, 7
      %v532 = vsub.s32 0, %v531
      %v533 = vrot.slane %v529, %v532
      %v534 = vmul.f32 %v526, %v533
      %v535 = vadd.f32 %v534, 0.0
      %v536 = vld [vmem:[%s3 + $0x1] sm:$0x1]
      %v537 = vlaneseq
      %v538 = vshrl.u32 %v537, 7
      %v539 = vsub.s32 0, %v538
      %v540 = vrot.slane %v536, %v539
      %v541 = vmul.f32 %v526, %v540
      %v542 = vmul.f32 %v523, %v540
      %vm545 = vcmask 1046528
      %v546 = vrot.slane %v541, 1
      %v547 = vrot.slane %v542, 1
      %v548 = vsel %vm545, %v546, %v547
      %v550 = vadd.f32 %v535, %v548
      %v551 = vld [vmem:[%s3 + $0x2] sm:$0x1]
      %v552 = vlaneseq
      %v553 = vshrl.u32 %v552, 7
      %v554 = vsub.s32 0, %v553
      %v555 = vrot.slane %v551, %v554
      %v556 = vmul.f32 %v526, %v555
      %v557 = vmul.f32 %v523, %v555
      %vm560 = vcmask 1045504
      %v561 = vrot.slane %v556, 2
      %v562 = vrot.slane %v557, 2
      %v563 = vsel %vm560, %v561, %v562
      %v565 = vadd.f32 %v550, %v563
      %v566 = vld [vmem:[%s3 + $0x3] sm:$0x1]
      %v567 = vlaneseq
      %v568 = vshrl.u32 %v567, 7
      %v569 = vsub.s32 0, %v568
      %v570 = vrot.slane %v566, %v569
      %v571 = vmul.f32 %v526, %v570
      %v572 = vmul.f32 %v523, %v570
      %vm575 = vcmask 1044480
      %v576 = vrot.slane %v571, 3
      %v577 = vrot.slane %v572, 3
      %v578 = vsel %vm575, %v576, %v577
      %v580 = vadd.f32 %v565, %v578
      %v581 = vld [vmem:[%s4] sm:$0x1]
      %v583 = vlaneseq
      %v584 = vshrl.u32 %v583, 7
      %v585 = vsub.s32 0, %v584
      %v586 = vrot.slane %v581, %v585
      %v588 = vadd.f32 %v580, %v586
      %v589 = vxor.u32 %v588, 2147483648
      %v590 = vmul.f32 %v589, 1.442695
      %v591 = vpow.pop %v590
      %v592 = vadd.f32 %v591, 1.0
      %v593 = vrcp.pop %v592
      %v594 = vmul.f32 1.0, %v593
      %v595 = vmul.f32 %v588, %v594
      %v596 = vpack.c.bf16 %v595, %v595
      %v597 = vld [vmem:[%s5] sm:$0xf]
      %v598 = vld [vmem:[%s5 + $0x4] sm:$0xf]
      %v599 = vld [vmem:[%s5 + $0x8] sm:$0xf]
      %v600 = vld [vmem:[%s5 + $0xc] sm:$0xf]
      %v601 = vld [vmem:[%s5 + $0x10] sm:$0xf]
      %v602 = vld [vmem:[%s5 + $0x14] sm:$0xf]
      %v603 = vld [vmem:[%s5 + $0x18] sm:$0xf]
      %v604 = vld [vmem:[%s5 + $0x1c] sm:$0xf]
      %v613 = vunpack.c.l.b16 %v597
      %v614 = vunpack.c.l.b16 %v598
      %v615 = vunpack.c.l.b16 %v599
      %v616 = vunpack.c.l.b16 %v600
      %v617 = vunpack.c.l.b16 %v601
      %v618 = vunpack.c.l.b16 %v602
      %v619 = vunpack.c.l.b16 %v603
      %v620 = vunpack.c.l.b16 %v604
      %v621 = vpack.c.b16 %v614, %v613
      %v622 = vpack.c.b16 %v616, %v615
      %v623 = vpack.c.b16 %v618, %v617
      %v624 = vpack.c.b16 %v620, %v619
      %vm629 = vcmask 523264
      %v631 = vsel %vm629, %v596, 0
      %633 = vmatprep.subr.bf16.mxu0 0
      %634 = vmatpush1.bf16.msra.mxu0 %v621
      %635 = vmatprep.subr.bf16.mxu0 0
      %636 = vmatpush1.bf16.msra.mxu0 %v622
      %637 = vmatprep.subr.bf16.mxu0 0
      %638 = vmatpush1.bf16.msra.mxu0 %v623
      %639 = vmatprep.subr.bf16.mxu0 0
      %640 = vmatpush1.bf16.msra.mxu0 %v624
      %641 = vmatprep.subr.bf16.mxu0 0
      %642 = vmatpush1.bf16.msra.mxu0 0
      %643 = vmatprep.subr.bf16.mxu0 0
      %644 = vmatpush1.bf16.msra.mxu0 0
      %645 = vmatprep.subr.bf16.mxu0 0
      %646 = vmatpush1.bf16.msra.mxu0 0
      %647 = vmatprep.subr.bf16.mxu0 0
      %648 = vmatpush1.bf16.msra.mxu0 0
      %649 = vmatprep.subr.bf16.mxu0 0
      %650 = vmatpush1.bf16.msra.mxu0 0
      %651 = vmatprep.subr.bf16.mxu0 0
      %652 = vmatpush1.bf16.msra.mxu0 0
      %653 = vmatprep.subr.bf16.mxu0 0
      %654 = vmatpush1.bf16.msra.mxu0 0
      %655 = vmatprep.subr.bf16.mxu0 0
      %656 = vmatpush1.bf16.msra.mxu0 0
      %657 = vmatprep.subr.bf16.mxu0 0
      %658 = vmatpush1.bf16.msra.mxu0 0
      %659 = vmatprep.subr.bf16.mxu0 0
      %660 = vmatpush1.bf16.msra.mxu0 0
      %661 = vmatprep.subr.bf16.mxu0 0
      %662 = vmatpush1.bf16.msra.mxu0 0
      %663 = vmatprep.subr.bf16.mxu0 0
      %664 = vmatpush1.bf16.msra.mxu0 0
      %665 = vmatprep.mubr.bf16.mxu0 0
      %666 = vmatmul.mubr.bf16.gmra.mrb[0].mxu0 %v631
      %v667 = vpop.f32.mrb[0].mxu0
      %v668 = vadd.f32 0.0, %v667
      %v669 = vpop.f32.mrb[0].mxu0
      %v670 = vpop.f32.mrb[0].mxu0
      %v671 = vpop.f32.mrb[0].mxu0
      %672 = vdwg.mxu0
      %v673 = vlaneseq
      %v674 = vshrl.u32 %v673, 7
      %v675 = vsub.s32 0, %v674
      %v676 = vrot.slane %v668, %v675
      %s678 = sor.u32 256, 16
      %679 = vbcast.lane.b32.xlu0 %v676, %s678
      %v680 = vpop.permute.xlu0 %679
      %s682 = sor.u32 256, 24
      %683 = vbcast.lane.b32.xlu0 %v676, %s682
      %v684 = vpop.permute.xlu0 %683
      %v685 = vlaneseq
      %v686 = vshrl.u32 %v685, 7
      %v687 = vsub.s32 1, %v686
      %v688 = vrot.slane %v668, %v687
      %s690 = sor.u32 256, 16
      %691 = vbcast.lane.b32.xlu0 %v688, %s690
      %v692 = vpop.permute.xlu0 %691
      %s694 = sor.u32 256, 24
      %695 = vbcast.lane.b32.xlu0 %v688, %s694
      %v696 = vpop.permute.xlu0 %695
      %v697 = vlaneseq
      %v698 = vshrl.u32 %v697, 7
      %v699 = vsub.s32 2, %v698
      %v700 = vrot.slane %v668, %v699
      %s702 = sor.u32 256, 16
      %703 = vbcast.lane.b32.xlu0 %v700, %s702
      %v704 = vpop.permute.xlu0 %703
      %s706 = sor.u32 256, 24
      %707 = vbcast.lane.b32.xlu0 %v700, %s706
      %v708 = vpop.permute.xlu0 %707
      %v709 = vlaneseq
      %v710 = vshrl.u32 %v709, 7
      %v711 = vsub.s32 3, %v710
      %v712 = vrot.slane %v668, %v711
      %s714 = sor.u32 256, 16
      %715 = vbcast.lane.b32.xlu0 %v712, %s714
      %v716 = vpop.permute.xlu0 %715
      %s718 = sor.u32 256, 24
      %719 = vbcast.lane.b32.xlu0 %v712, %s718
      %v720 = vpop.permute.xlu0 %719
      %v721 = vlaneseq
      %v722 = vshrl.u32 %v721, 7
      %v723 = vsub.s32 4, %v722
      %v724 = vrot.slane %v668, %v723
      %s726 = sor.u32 256, 16
      %727 = vbcast.lane.b32.xlu0 %v724, %s726
      %v728 = vpop.permute.xlu0 %727
      %s730 = sor.u32 256, 24
      %731 = vbcast.lane.b32.xlu0 %v724, %s730
      %v732 = vpop.permute.xlu0 %731
      %v733 = vlaneseq
      %v734 = vshrl.u32 %v733, 7
      %v735 = vsub.s32 5, %v734
      %v736 = vrot.slane %v668, %v735
      %s738 = sor.u32 256, 16
      %739 = vbcast.lane.b32.xlu0 %v736, %s738
      %v740 = vpop.permute.xlu0 %739
      %s742 = sor.u32 256, 24
      %743 = vbcast.lane.b32.xlu0 %v736, %s742
      %v744 = vpop.permute.xlu0 %743
      %v745 = vlaneseq
      %v746 = vshrl.u32 %v745, 7
      %v747 = vsub.s32 6, %v746
      %v748 = vrot.slane %v668, %v747
      %s750 = sor.u32 256, 16
      %751 = vbcast.lane.b32.xlu0 %v748, %s750
      %v752 = vpop.permute.xlu0 %751
      %s754 = sor.u32 256, 24
      %755 = vbcast.lane.b32.xlu0 %v748, %s754
      %v756 = vpop.permute.xlu0 %755
      %v757 = vlaneseq
      %v758 = vshrl.u32 %v757, 7
      %v759 = vsub.s32 7, %v758
      %v760 = vrot.slane %v668, %v759
      %s762 = sor.u32 256, 16
      %763 = vbcast.lane.b32.xlu0 %v760, %s762
      %v764 = vpop.permute.xlu0 %763
      %s766 = sor.u32 256, 24
      %767 = vbcast.lane.b32.xlu0 %v760, %s766
      %v768 = vpop.permute.xlu0 %767
      %vm769 = vcmask 7168
      %770 = vst.msk [vmem:[#allocation4] sm:$0xff] %vm769, %v680
      %771 = vst.msk [vmem:[#allocation4 + $0x8] sm:$0xff] %vm769, %v684
      %772 = vst.msk [vmem:[#allocation4 + $0x10] sm:$0xff] %vm769, %v692
      %773 = vst.msk [vmem:[#allocation4 + $0x18] sm:$0xff] %vm769, %v696
      %774 = vst.msk [vmem:[#allocation4 + $0x20] sm:$0xff] %vm769, %v704
      %775 = vst.msk [vmem:[#allocation4 + $0x28] sm:$0xff] %vm769, %v708
      %776 = vst.msk [vmem:[#allocation4 + $0x30] sm:$0xff] %vm769, %v716
      %777 = vst.msk [vmem:[#allocation4 + $0x38] sm:$0xff] %vm769, %v720
      %778 = vst.msk [vmem:[#allocation4 + $0x40] sm:$0xff] %vm769, %v728
      %779 = vst.msk [vmem:[#allocation4 + $0x48] sm:$0xff] %vm769, %v732
      %780 = vst.msk [vmem:[#allocation4 + $0x50] sm:$0xff] %vm769, %v740
      %781 = vst.msk [vmem:[#allocation4 + $0x58] sm:$0xff] %vm769, %v744
      %782 = vst.msk [vmem:[#allocation4 + $0x60] sm:$0xff] %vm769, %v752
      %783 = vst.msk [vmem:[#allocation4 + $0x68] sm:$0xff] %vm769, %v756
      %784 = vst.msk [vmem:[#allocation4 + $0x70] sm:$0xff] %vm769, %v764
      %785 = vst.msk [vmem:[#allocation4 + $0x78] sm:$0xff] %vm769, %v768
      %v786 = vld [vmem:[%s6] sm:$0x1]
      %v788 = vlaneseq
      %v789 = vshrl.u32 %v788, 7
      %v790 = vsub.s32 0, %v789
      %v791 = vrot.slane %v786, %v790
      %792 = vrot.lane.b32.xlu0 %v791, 32
      %v793 = vpop.permute.xlu0 %792
      %v795 = vadd.f32 %v668, %v793
      %v796 = vmax.f32 %v795, 0.0
      %vm797 = vcmp.ne.f32.partialorder %v795, %v795
      %v798 = vadd.f32 %v795, 0.0
      %v799 = vand.u32 2147483647, %v795
      %v800 = vsub.f32 0.0, %v799
      %v801 = vmul.f32 %v800, 1.442695
      %v802 = vpow.pop %v801
      %v803 = vadd.f32 %v802, 1.0
      %v804 = vlog2.pop %v803
      %v805 = vmul.f32 %v804, 0.6931472
      %v806 = vmul.f32 -0.5, %v802
      %v807 = vadd.f32 %v806, 1.0
      %v808 = vmul.f32 %v807, %v802
      %v809 = vand.u32 2147483647, %v802
      %vm810 = vcmp.lt.f32.partialorder %v809, 0.0004427343
      %v811 = vsel %vm810, %v808, %v805
      %v812 = vadd.f32 %v796, %v811
      %v813 = vsel %vm797, %v798, %v812
      %v815 = vcombine.high %v813, %v813
      %v817 = vunpack.c.l.s4 1966171168
      %v818 = vunpack.c.0.s8 %v817
      %v819 = vlaneseq
      %v820 = vshrl.u32 %v819, 7
      %v821 = vsub.s32 %v818, %v820
      %v822 = vrot.slane %v813, %v821
      %v824 = vunpack.c.l.s4 1966171168
      %v825 = vunpack.c.0.s8 %v824
      %v826 = vlaneseq
      %v827 = vshrl.u32 %v826, 7
      %v828 = vsub.s32 %v825, %v827
      %v829 = vrot.slane %v815, %v828
      %v830 = vcombine.high %v822, %v822
      %v831 = vcombine.high %v829, %v829
      %v833 = vunpack.c.l.s4 1966171168
      %v834 = vunpack.c.0.s8 %v833
      %v835 = vlaneseq
      %v836 = vshrl.u32 %v835, 7
      %v837 = vsub.s32 %v834, %v836
      %v838 = vrot.slane %v822, %v837
      %v840 = vunpack.c.l.s4 1966171168
      %v841 = vunpack.c.0.s8 %v840
      %v842 = vlaneseq
      %v843 = vshrl.u32 %v842, 7
      %v844 = vsub.s32 %v841, %v843
      %v845 = vrot.slane %v829, %v844
      %v847 = vunpack.c.l.s4 1966171168
      %v848 = vunpack.c.0.s8 %v847
      %v849 = vlaneseq
      %v850 = vshrl.u32 %v849, 7
      %v851 = vsub.s32 %v848, %v850
      %v852 = vrot.slane %v830, %v851
      %v854 = vunpack.c.l.s4 1966171168
      %v855 = vunpack.c.0.s8 %v854
      %v856 = vlaneseq
      %v857 = vshrl.u32 %v856, 7
      %v858 = vsub.s32 %v855, %v857
      %v859 = vrot.slane %v831, %v858
      %v860 = vcombine.high %v838, %v838
      %v861 = vcombine.high %v845, %v845
      %v862 = vcombine.high %v852, %v852
      %v863 = vcombine.high %v859, %v859
      %v864 = vld [vmem:[%s7] sm:$0xff]
      %v865 = vld [vmem:[%s7 + $0x8] sm:$0xff]
      %v866 = vlaneseq
      %v867 = vshrl.u32 %v866, 7
      %v868 = vsub.s32 0, %v867
      %v869 = vrot.slane %v838, %v868
      %v870 = vlaneseq
      %v871 = vshrl.u32 %v870, 7
      %v872 = vsub.s32 0, %v871
      %v873 = vrot.slane %v852, %v872
      %v874 = vlaneseq
      %v875 = vshrl.u32 %v874, 7
      %v876 = vsub.s32 0, %v875
      %v877 = vrot.slane %v860, %v876
      %v878 = vlaneseq
      %v879 = vshrl.u32 %v878, 7
      %v880 = vsub.s32 0, %v879
      %v881 = vrot.slane %v862, %v880
      %v882 = vlaneseq
      %v883 = vshrl.u32 %v882, 7
      %v884 = vsub.s32 0, %v883
      %v885 = vrot.slane %v845, %v884
      %v886 = vlaneseq
      %v887 = vshrl.u32 %v886, 7
      %v888 = vsub.s32 0, %v887
      %v889 = vrot.slane %v859, %v888
      %v890 = vlaneseq
      %v891 = vshrl.u32 %v890, 7
      %v892 = vsub.s32 0, %v891
      %v893 = vrot.slane %v861, %v892
      %v894 = vlaneseq
      %v895 = vshrl.u32 %v894, 7
      %v896 = vsub.s32 0, %v895
      %v897 = vrot.slane %v863, %v896
      %908 = vrot.lane.b32.xlu0 %v864, 32
      %v909 = vpop.permute.xlu0 %908
      %910 = vrot.lane.b32.xlu0 %v865, 32
      %v911 = vpop.permute.xlu0 %910
      %v914 = vmul.f32 %v869, %v909
      %v915 = vmul.f32 %v869, %v911
      %v916 = vmul.f32 %v873, %v909
      %v917 = vmul.f32 %v873, %v911
      %v918 = vmul.f32 %v877, %v909
      %v919 = vmul.f32 %v877, %v911
      %v920 = vmul.f32 %v881, %v909
      %v921 = vmul.f32 %v881, %v911
      %v922 = vmul.f32 %v885, %v909
      %v923 = vmul.f32 %v885, %v911
      %v924 = vmul.f32 %v889, %v909
      %v925 = vmul.f32 %v889, %v911
      %v926 = vmul.f32 %v893, %v909
      %v927 = vmul.f32 %v893, %v911
      %v928 = vmul.f32 %v897, %v909
      %v929 = vmul.f32 %v897, %v911
      %v930 = vmul.f32 %v914, 1.442695
      %v931 = vpow.pop %v930
      %v932 = vmul.f32 %v915, 1.442695
      %v933 = vpow.pop %v932
      %v934 = vmul.f32 %v916, 1.442695
      %v935 = vpow.pop %v934
      %v936 = vmul.f32 %v917, 1.442695
      %v937 = vpow.pop %v936
      %v938 = vmul.f32 %v918, 1.442695
      %v939 = vpow.pop %v938
      %v940 = vmul.f32 %v919, 1.442695
      %v941 = vpow.pop %v940
      %v942 = vmul.f32 %v920, 1.442695
      %v943 = vpow.pop %v942
      %v944 = vmul.f32 %v921, 1.442695
      %v945 = vpow.pop %v944
      %v946 = vmul.f32 %v922, 1.442695
      %v947 = vpow.pop %v946
      %v948 = vmul.f32 %v923, 1.442695
      %v949 = vpow.pop %v948
      %v950 = vmul.f32 %v924, 1.442695
      %v951 = vpow.pop %v950
      %v952 = vmul.f32 %v925, 1.442695
      %v953 = vpow.pop %v952
      %v954 = vmul.f32 %v926, 1.442695
      %v955 = vpow.pop %v954
      %v956 = vmul.f32 %v927, 1.442695
      %v957 = vpow.pop %v956
      %v958 = vmul.f32 %v928, 1.442695
      %v959 = vpow.pop %v958
      %v960 = vmul.f32 %v929, 1.442695
      %v961 = vpow.pop %v960
      %978 = vrot.lane.b32.xlu0 %v931, 96
      %v979 = vpop.permute.xlu0 %978
      %980 = vrot.lane.b32.xlu0 %v933, 96
      %v981 = vpop.permute.xlu0 %980
      %982 = vrot.lane.b32.xlu0 %v935, 96
      %v983 = vpop.permute.xlu0 %982
      %984 = vrot.lane.b32.xlu0 %v937, 96
      %v985 = vpop.permute.xlu0 %984
      %986 = vrot.lane.b32.xlu0 %v939, 96
      %v987 = vpop.permute.xlu0 %986
      %988 = vrot.lane.b32.xlu0 %v941, 96
      %v989 = vpop.permute.xlu0 %988
      %990 = vrot.lane.b32.xlu0 %v943, 96
      %v991 = vpop.permute.xlu0 %990
      %992 = vrot.lane.b32.xlu0 %v945, 96
      %v993 = vpop.permute.xlu0 %992
      %994 = vrot.lane.b32.xlu0 %v947, 96
      %v995 = vpop.permute.xlu0 %994
      %996 = vrot.lane.b32.xlu0 %v949, 96
      %v997 = vpop.permute.xlu0 %996
      %998 = vrot.lane.b32.xlu0 %v951, 96
      %v999 = vpop.permute.xlu0 %998
      %1000 = vrot.lane.b32.xlu0 %v953, 96
      %v1001 = vpop.permute.xlu0 %1000
      %1002 = vrot.lane.b32.xlu0 %v955, 96
      %v1003 = vpop.permute.xlu0 %1002
      %1004 = vrot.lane.b32.xlu0 %v957, 96
      %v1005 = vpop.permute.xlu0 %1004
      %1006 = vrot.lane.b32.xlu0 %v959, 96
      %v1007 = vpop.permute.xlu0 %1006
      %1008 = vrot.lane.b32.xlu0 %v961, 96
      %v1009 = vpop.permute.xlu0 %1008
      %1026 = vst.msk [vmem:[#allocation2] sm:$0xff] %vm629, %v979
      %1027 = vst.msk [vmem:[#allocation2 + $0x8] sm:$0xff] %vm629, %v981
      %1028 = vst.msk [vmem:[#allocation2 + $0x10] sm:$0xff] %vm629, %v983
      %1029 = vst.msk [vmem:[#allocation2 + $0x18] sm:$0xff] %vm629, %v985
      %1030 = vst.msk [vmem:[#allocation2 + $0x20] sm:$0xff] %vm629, %v987
      %1031 = vst.msk [vmem:[#allocation2 + $0x28] sm:$0xff] %vm629, %v989
      %1032 = vst.msk [vmem:[#allocation2 + $0x30] sm:$0xff] %vm629, %v991
      %1033 = vst.msk [vmem:[#allocation2 + $0x38] sm:$0xff] %vm629, %v993
      %1034 = vst.msk [vmem:[#allocation2 + $0x40] sm:$0xff] %vm629, %v995
      %1035 = vst.msk [vmem:[#allocation2 + $0x48] sm:$0xff] %vm629, %v997
      %1036 = vst.msk [vmem:[#allocation2 + $0x50] sm:$0xff] %vm629, %v999
      %1037 = vst.msk [vmem:[#allocation2 + $0x58] sm:$0xff] %vm629, %v1001
      %1038 = vst.msk [vmem:[#allocation2 + $0x60] sm:$0xff] %vm629, %v1003
      %1039 = vst.msk [vmem:[#allocation2 + $0x68] sm:$0xff] %vm629, %v1005
      %1040 = vst.msk [vmem:[#allocation2 + $0x70] sm:$0xff] %vm629, %v1007
      %1041 = vst.msk [vmem:[#allocation2 + $0x78] sm:$0xff] %vm629, %v1009
      %1043 = vbcast.lane.b32.xlu0 %v676, 256
      %v1044 = vpop.permute.xlu0 %1043
      %s1046 = sor.u32 256, 8
      %1047 = vbcast.lane.b32.xlu0 %v676, %s1046
      %v1048 = vpop.permute.xlu0 %1047
      %1050 = vbcast.lane.b32.xlu0 %v688, 256
      %v1051 = vpop.permute.xlu0 %1050
      %s1053 = sor.u32 256, 8
      %1054 = vbcast.lane.b32.xlu0 %v688, %s1053
      %v1055 = vpop.permute.xlu0 %1054
      %1057 = vbcast.lane.b32.xlu0 %v700, 256
      %v1058 = vpop.permute.xlu0 %1057
      %s1060 = sor.u32 256, 8
      %1061 = vbcast.lane.b32.xlu0 %v700, %s1060
      %v1062 = vpop.permute.xlu0 %1061
      %1064 = vbcast.lane.b32.xlu0 %v712, 256
      %v1065 = vpop.permute.xlu0 %1064
      %s1067 = sor.u32 256, 8
      %1068 = vbcast.lane.b32.xlu0 %v712, %s1067
      %v1069 = vpop.permute.xlu0 %1068
      %1071 = vbcast.lane.b32.xlu0 %v724, 256
      %v1072 = vpop.permute.xlu0 %1071
      %s1074 = sor.u32 256, 8
      %1075 = vbcast.lane.b32.xlu0 %v724, %s1074
      %v1076 = vpop.permute.xlu0 %1075
      %1078 = vbcast.lane.b32.xlu0 %v736, 256
      %v1079 = vpop.permute.xlu0 %1078
      %s1081 = sor.u32 256, 8
      %1082 = vbcast.lane.b32.xlu0 %v736, %s1081
      %v1083 = vpop.permute.xlu0 %1082
      %1085 = vbcast.lane.b32.xlu0 %v748, 256
      %v1086 = vpop.permute.xlu0 %1085
      %s1088 = sor.u32 256, 8
      %1089 = vbcast.lane.b32.xlu0 %v748, %s1088
      %v1090 = vpop.permute.xlu0 %1089
      %1092 = vbcast.lane.b32.xlu0 %v760, 256
      %v1093 = vpop.permute.xlu0 %1092
      %s1095 = sor.u32 256, 8
      %1096 = vbcast.lane.b32.xlu0 %v760, %s1095
      %v1097 = vpop.permute.xlu0 %1096
      %1099 = vrot.lane.b32.xlu0 %v595, 32
      %v1100 = vpop.permute.xlu0 %1099
      %v1102 = vmul.f32 %v813, %v1100
      %v1104 = vcombine.high %v1102, %v1102
      %v1106 = vunpack.c.l.s4 1966171168
      %v1107 = vunpack.c.0.s8 %v1106
      %v1108 = vlaneseq
      %v1109 = vshrl.u32 %v1108, 7
      %v1110 = vsub.s32 %v1107, %v1109
      %v1111 = vrot.slane %v1102, %v1110
      %v1113 = vunpack.c.l.s4 1966171168
      %v1114 = vunpack.c.0.s8 %v1113
      %v1115 = vlaneseq
      %v1116 = vshrl.u32 %v1115, 7
      %v1117 = vsub.s32 %v1114, %v1116
      %v1118 = vrot.slane %v1104, %v1117
      %v1119 = vcombine.high %v1111, %v1111
      %v1120 = vcombine.high %v1118, %v1118
      %v1122 = vunpack.c.l.s4 1966171168
      %v1123 = vunpack.c.0.s8 %v1122
      %v1124 = vlaneseq
      %v1125 = vshrl.u32 %v1124, 7
      %v1126 = vsub.s32 %v1123, %v1125
      %v1127 = vrot.slane %v1111, %v1126
      %v1129 = vunpack.c.l.s4 1966171168
      %v1130 = vunpack.c.0.s8 %v1129
      %v1131 = vlaneseq
      %v1132 = vshrl.u32 %v1131, 7
      %v1133 = vsub.s32 %v1130, %v1132
      %v1134 = vrot.slane %v1118, %v1133
      %v1136 = vunpack.c.l.s4 1966171168
      %v1137 = vunpack.c.0.s8 %v1136
      %v1138 = vlaneseq
      %v1139 = vshrl.u32 %v1138, 7
      %v1140 = vsub.s32 %v1137, %v1139
      %v1141 = vrot.slane %v1119, %v1140
      %v1143 = vunpack.c.l.s4 1966171168
      %v1144 = vunpack.c.0.s8 %v1143
      %v1145 = vlaneseq
      %v1146 = vshrl.u32 %v1145, 7
      %v1147 = vsub.s32 %v1144, %v1146
      %v1148 = vrot.slane %v1120, %v1147
      %v1149 = vcombine.high %v1127, %v1127
      %v1150 = vcombine.high %v1134, %v1134
      %v1151 = vcombine.high %v1141, %v1141
      %v1152 = vcombine.high %v1148, %v1148
      %v1153 = vlaneseq
      %v1154 = vshrl.u32 %v1153, 7
      %v1155 = vsub.s32 0, %v1154
      %v1156 = vrot.slane %v1127, %v1155
      %v1157 = vlaneseq
      %v1158 = vshrl.u32 %v1157, 7
      %v1159 = vsub.s32 0, %v1158
      %v1160 = vrot.slane %v1141, %v1159
      %v1161 = vlaneseq
      %v1162 = vshrl.u32 %v1161, 7
      %v1163 = vsub.s32 0, %v1162
      %v1164 = vrot.slane %v1149, %v1163
      %v1165 = vlaneseq
      %v1166 = vshrl.u32 %v1165, 7
      %v1167 = vsub.s32 0, %v1166
      %v1168 = vrot.slane %v1151, %v1167
      %v1169 = vlaneseq
      %v1170 = vshrl.u32 %v1169, 7
      %v1171 = vsub.s32 0, %v1170
      %v1172 = vrot.slane %v1134, %v1171
      %v1173 = vlaneseq
      %v1174 = vshrl.u32 %v1173, 7
      %v1175 = vsub.s32 0, %v1174
      %v1176 = vrot.slane %v1148, %v1175
      %v1177 = vlaneseq
      %v1178 = vshrl.u32 %v1177, 7
      %v1179 = vsub.s32 0, %v1178
      %v1180 = vrot.slane %v1150, %v1179
      %v1181 = vlaneseq
      %v1182 = vshrl.u32 %v1181, 7
      %v1183 = vsub.s32 0, %v1182
      %v1184 = vrot.slane %v1152, %v1183
      %v1193 = vmul.f32 %v1044, %v1156
      %v1194 = vmul.f32 %v1048, %v1156
      %v1195 = vmul.f32 %v1051, %v1160
      %v1196 = vmul.f32 %v1055, %v1160
      %v1197 = vmul.f32 %v1058, %v1164
      %v1198 = vmul.f32 %v1062, %v1164
      %v1199 = vmul.f32 %v1065, %v1168
      %v1200 = vmul.f32 %v1069, %v1168
      %v1201 = vmul.f32 %v1072, %v1172
      %v1202 = vmul.f32 %v1076, %v1172
      %v1203 = vmul.f32 %v1079, %v1176
      %v1204 = vmul.f32 %v1083, %v1176
      %v1205 = vmul.f32 %v1086, %v1180
      %v1206 = vmul.f32 %v1090, %v1180
      %v1207 = vmul.f32 %v1093, %v1184
      %v1208 = vmul.f32 %v1097, %v1184
      %1225 = vrot.lane.b32.xlu0 %v1193, 96
      %v1226 = vpop.permute.xlu0 %1225
      %1227 = vrot.lane.b32.xlu0 %v1194, 96
      %v1228 = vpop.permute.xlu0 %1227
      %1229 = vrot.lane.b32.xlu0 %v1195, 96
      %v1230 = vpop.permute.xlu0 %1229
      %1231 = vrot.lane.b32.xlu0 %v1196, 96
      %v1232 = vpop.permute.xlu0 %1231
      %1233 = vrot.lane.b32.xlu0 %v1197, 96
      %v1234 = vpop.permute.xlu0 %1233
      %1235 = vrot.lane.b32.xlu0 %v1198, 96
      %v1236 = vpop.permute.xlu0 %1235
      %1237 = vrot.lane.b32.xlu0 %v1199, 96
      %v1238 = vpop.permute.xlu0 %1237
      %1239 = vrot.lane.b32.xlu0 %v1200, 96
      %v1240 = vpop.permute.xlu0 %1239
      %1241 = vrot.lane.b32.xlu0 %v1201, 96
      %v1242 = vpop.permute.xlu0 %1241
      %1243 = vrot.lane.b32.xlu0 %v1202, 96
      %v1244 = vpop.permute.xlu0 %1243
      %1245 = vrot.lane.b32.xlu0 %v1203, 96
      %v1246 = vpop.permute.xlu0 %1245
      %1247 = vrot.lane.b32.xlu0 %v1204, 96
      %v1248 = vpop.permute.xlu0 %1247
      %1249 = vrot.lane.b32.xlu0 %v1205, 96
      %v1250 = vpop.permute.xlu0 %1249
      %1251 = vrot.lane.b32.xlu0 %v1206, 96
      %v1252 = vpop.permute.xlu0 %1251
      %1253 = vrot.lane.b32.xlu0 %v1207, 96
      %v1254 = vpop.permute.xlu0 %1253
      %1255 = vrot.lane.b32.xlu0 %v1208, 96
      %v1256 = vpop.permute.xlu0 %1255
      %1273 = vst.msk [vmem:[#allocation3] sm:$0xff] %vm629, %v1226
      %1274 = vst.msk [vmem:[#allocation3 + $0x8] sm:$0xff] %vm629, %v1228
      %1275 = vst.msk [vmem:[#allocation3 + $0x10] sm:$0xff] %vm629, %v1230
      %1276 = vst.msk [vmem:[#allocation3 + $0x18] sm:$0xff] %vm629, %v1232
      %1277 = vst.msk [vmem:[#allocation3 + $0x20] sm:$0xff] %vm629, %v1234
      %1278 = vst.msk [vmem:[#allocation3 + $0x28] sm:$0xff] %vm629, %v1236
      %1279 = vst.msk [vmem:[#allocation3 + $0x30] sm:$0xff] %vm629, %v1238
      %1280 = vst.msk [vmem:[#allocation3 + $0x38] sm:$0xff] %vm629, %v1240
      %1281 = vst.msk [vmem:[#allocation3 + $0x40] sm:$0xff] %vm629, %v1242
      %1282 = vst.msk [vmem:[#allocation3 + $0x48] sm:$0xff] %vm629, %v1244
      %1283 = vst.msk [vmem:[#allocation3 + $0x50] sm:$0xff] %vm629, %v1246
      %1284 = vst.msk [vmem:[#allocation3 + $0x58] sm:$0xff] %vm629, %v1248
      %1285 = vst.msk [vmem:[#allocation3 + $0x60] sm:$0xff] %vm629, %v1250
      %1286 = vst.msk [vmem:[#allocation3 + $0x68] sm:$0xff] %vm629, %v1252
      %1287 = vst.msk [vmem:[#allocation3 + $0x70] sm:$0xff] %vm629, %v1254
      %1288 = vst.msk [vmem:[#allocation3 + $0x78] sm:$0xff] %vm629, %v1256
      %v1289 = vld [vmem:[#allocation6] sm:$0xff]
      %v1290 = vld [vmem:[#allocation6 + $0x8] sm:$0xff]
      %v1291 = vld [vmem:[#allocation2] sm:$0xff]
      %v1292 = vld [vmem:[#allocation2 + $0x8] sm:$0xff]
      %v1293 = vmul.f32 %v1291, %v1289
      %v1294 = vmul.f32 %v1292, %v1290
      %v1295 = vld [vmem:[#allocation3] sm:$0xff]
      %v1296 = vld [vmem:[#allocation3 + $0x8] sm:$0xff]
      %v1297 = vadd.f32 %v1293, %v1295
      %v1298 = vadd.f32 %v1294, %v1296
      %v1299 = vld [vmem:[#allocation4] sm:$0xff]
      %v1300 = vld [vmem:[#allocation4 + $0x8] sm:$0xff]
      %1302 = vset.pattern.permute.xlu0 0
      %1303 = vperm.xlu0 %1302, %v1299
      %v1304 = vpop.permute.xlu0 %1303
      %1307 = vset.pattern.permute.xlu0 0
      %1308 = vperm.xlu0 %1307, %v1300
      %v1309 = vpop.permute.xlu0 %1308
      %v1311 = vmul.f32 %v1297, %v1304
      %v1312 = vmul.f32 %v1298, %v1309
      %v1313 = vsel %vm629, %v1311, 0.0
      %v1314 = vsel %vm629, %v1312, 0.0
      %v1315 = vadd.f32 %v1313, %v1314
      %v1316 = vrot.slane %v1315, 4
      %v1317 = vadd.f32 %v1315, %v1316
      %v1318 = vrot.slane %v1317, 2
      %v1319 = vadd.f32 %v1317, %v1318
      %v1320 = vrot.slane %v1319, 1
      %v1321 = vadd.f32 %v1319, %v1320
      %vm1322 = vcmask 516096
      %1323 = vst.msk [vmem:[#allocation5] sm:$0x1] %vm1322, %v1321
      %s1324 = scalar_lea.vmem [#allocation2], 16
      %v1325 = vld [vmem:[%s1324] sm:$0xff]
      %v1326 = vld [vmem:[%s1324 + $0x8] sm:$0xff]
      %v1327 = vmul.f32 %v1325, %v1297
      %v1328 = vmul.f32 %v1326, %v1298
      %s1329 = scalar_lea.vmem [#allocation3], 16
      %v1330 = vld [vmem:[%s1329] sm:$0xff]
      %v1331 = vld [vmem:[%s1329 + $0x8] sm:$0xff]
      %v1332 = vadd.f32 %v1327, %v1330
      %v1333 = vadd.f32 %v1328, %v1331
      %s1334 = scalar_lea.vmem [#allocation4], 16
      %v1335 = vld [vmem:[%s1334] sm:$0xff]
      %v1336 = vld [vmem:[%s1334 + $0x8] sm:$0xff]
      %1338 = vset.pattern.permute.xlu0 0
      %1339 = vperm.xlu0 %1338, %v1335
      %v1340 = vpop.permute.xlu0 %1339
      %1343 = vset.pattern.permute.xlu0 0
      %1344 = vperm.xlu0 %1343, %v1336
      %v1345 = vpop.permute.xlu0 %1344
      %v1347 = vmul.f32 %v1332, %v1340
      %v1348 = vmul.f32 %v1333, %v1345
      %v1349 = vsel %vm629, %v1347, 0.0
      %v1350 = vsel %vm629, %v1348, 0.0
      %v1351 = vadd.f32 %v1349, %v1350
      %v1352 = vrot.slane %v1351, 4
      %v1353 = vadd.f32 %v1351, %v1352
      %v1354 = vrot.slane %v1353, 2
      %v1355 = vadd.f32 %v1353, %v1354
      %v1356 = vrot.slane %v1355, 1
      %v1357 = vadd.f32 %v1355, %v1356
      %s1358 = scalar_lea.vmem [#allocation5], 1
      %1359 = vst.msk [vmem:[%s1358] sm:$0x1] %vm1322, %v1357
      %s1360 = scalar_lea.vmem [#allocation2], 32
      %v1361 = vld [vmem:[%s1360] sm:$0xff]
      %v1362 = vld [vmem:[%s1360 + $0x8] sm:$0xff]
      %v1363 = vmul.f32 %v1361, %v1332
      %v1364 = vmul.f32 %v1362, %v1333
      %s1365 = scalar_lea.vmem [#allocation3], 32
      %v1366 = vld [vmem:[%s1365] sm:$0xff]
      %v1367 = vld [vmem:[%s1365 + $0x8] sm:$0xff]
      %v1368 = vadd.f32 %v1363, %v1366
      %v1369 = vadd.f32 %v1364, %v1367
      %s1370 = scalar_lea.vmem [#allocation4], 32
      %v1371 = vld [vmem:[%s1370] sm:$0xff]
      %v1372 = vld [vmem:[%s1370 + $0x8] sm:$0xff]
      %1374 = vset.pattern.permute.xlu0 0
      %1375 = vperm.xlu0 %1374, %v1371
      %v1376 = vpop.permute.xlu0 %1375
      %1379 = vset.pattern.permute.xlu0 0
      %1380 = vperm.xlu0 %1379, %v1372
      %v1381 = vpop.permute.xlu0 %1380
      %v1383 = vmul.f32 %v1368, %v1376
      %v1384 = vmul.f32 %v1369, %v1381
      %v1385 = vsel %vm629, %v1383, 0.0
      %v1386 = vsel %vm629, %v1384, 0.0
      %v1387 = vadd.f32 %v1385, %v1386
      %v1388 = vrot.slane %v1387, 4
      %v1389 = vadd.f32 %v1387, %v1388
      %v1390 = vrot.slane %v1389, 2
      %v1391 = vadd.f32 %v1389, %v1390
      %v1392 = vrot.slane %v1391, 1
      %v1393 = vadd.f32 %v1391, %v1392
      %s1394 = scalar_lea.vmem [#allocation5], 2
      %1395 = vst.msk [vmem:[%s1394] sm:$0x1] %vm1322, %v1393
      %s1396 = scalar_lea.vmem [#allocation2], 48
      %v1397 = vld [vmem:[%s1396] sm:$0xff]
      %v1398 = vld [vmem:[%s1396 + $0x8] sm:$0xff]
      %v1399 = vmul.f32 %v1397, %v1368
      %v1400 = vmul.f32 %v1398, %v1369
      %s1401 = scalar_lea.vmem [#allocation3], 48
      %v1402 = vld [vmem:[%s1401] sm:$0xff]
      %v1403 = vld [vmem:[%s1401 + $0x8] sm:$0xff]
      %v1404 = vadd.f32 %v1399, %v1402
      %v1405 = vadd.f32 %v1400, %v1403
      %s1406 = scalar_lea.vmem [#allocation4], 48
      %v1407 = vld [vmem:[%s1406] sm:$0xff]
      %v1408 = vld [vmem:[%s1406 + $0x8] sm:$0xff]
      %1410 = vset.pattern.permute.xlu0 0
      %1411 = vperm.xlu0 %1410, %v1407
      %v1412 = vpop.permute.xlu0 %1411
      %1415 = vset.pattern.permute.xlu0 0
      %1416 = vperm.xlu0 %1415, %v1408
      %v1417 = vpop.permute.xlu0 %1416
      %v1419 = vmul.f32 %v1404, %v1412
      %v1420 = vmul.f32 %v1405, %v1417
      %v1421 = vsel %vm629, %v1419, 0.0
      %v1422 = vsel %vm629, %v1420, 0.0
      %v1423 = vadd.f32 %v1421, %v1422
      %v1424 = vrot.slane %v1423, 4
      %v1425 = vadd.f32 %v1423, %v1424
      %v1426 = vrot.slane %v1425, 2
      %v1427 = vadd.f32 %v1425, %v1426
      %v1428 = vrot.slane %v1427, 1
      %v1429 = vadd.f32 %v1427, %v1428
      %s1430 = scalar_lea.vmem [#allocation5], 3
      %1431 = vst.msk [vmem:[%s1430] sm:$0x1] %vm1322, %v1429
      %s1432 = scalar_lea.vmem [#allocation2], 64
      %v1433 = vld [vmem:[%s1432] sm:$0xff]
      %v1434 = vld [vmem:[%s1432 + $0x8] sm:$0xff]
      %v1435 = vmul.f32 %v1433, %v1404
      %v1436 = vmul.f32 %v1434, %v1405
      %s1437 = scalar_lea.vmem [#allocation3], 64
      %v1438 = vld [vmem:[%s1437] sm:$0xff]
      %v1439 = vld [vmem:[%s1437 + $0x8] sm:$0xff]
      %v1440 = vadd.f32 %v1435, %v1438
      %v1441 = vadd.f32 %v1436, %v1439
      %s1442 = scalar_lea.vmem [#allocation4], 64
      %v1443 = vld [vmem:[%s1442] sm:$0xff]
      %v1444 = vld [vmem:[%s1442 + $0x8] sm:$0xff]
      %1446 = vset.pattern.permute.xlu0 0
      %1447 = vperm.xlu0 %1446, %v1443
      %v1448 = vpop.permute.xlu0 %1447
      %1451 = vset.pattern.permute.xlu0 0
      %1452 = vperm.xlu0 %1451, %v1444
      %v1453 = vpop.permute.xlu0 %1452
      %v1455 = vmul.f32 %v1440, %v1448
      %v1456 = vmul.f32 %v1441, %v1453
      %v1457 = vsel %vm629, %v1455, 0.0
      %v1458 = vsel %vm629, %v1456, 0.0
      %v1459 = vadd.f32 %v1457, %v1458
      %v1460 = vrot.slane %v1459, 4
      %v1461 = vadd.f32 %v1459, %v1460
      %v1462 = vrot.slane %v1461, 2
      %v1463 = vadd.f32 %v1461, %v1462
      %v1464 = vrot.slane %v1463, 1
      %v1465 = vadd.f32 %v1463, %v1464
      %s1466 = scalar_lea.vmem [#allocation5], 4
      %1467 = vst.msk [vmem:[%s1466] sm:$0x1] %vm1322, %v1465
      %s1468 = scalar_lea.vmem [#allocation2], 80
      %v1469 = vld [vmem:[%s1468] sm:$0xff]
      %v1470 = vld [vmem:[%s1468 + $0x8] sm:$0xff]
      %v1471 = vmul.f32 %v1469, %v1440
      %v1472 = vmul.f32 %v1470, %v1441
      %s1473 = scalar_lea.vmem [#allocation3], 80
      %v1474 = vld [vmem:[%s1473] sm:$0xff]
      %v1475 = vld [vmem:[%s1473 + $0x8] sm:$0xff]
      %v1476 = vadd.f32 %v1471, %v1474
      %v1477 = vadd.f32 %v1472, %v1475
      %s1478 = scalar_lea.vmem [#allocation4], 80
      %v1479 = vld [vmem:[%s1478] sm:$0xff]
      %v1480 = vld [vmem:[%s1478 + $0x8] sm:$0xff]
      %1482 = vset.pattern.permute.xlu0 0
      %1483 = vperm.xlu0 %1482, %v1479
      %v1484 = vpop.permute.xlu0 %1483
      %1487 = vset.pattern.permute.xlu0 0
      %1488 = vperm.xlu0 %1487, %v1480
      %v1489 = vpop.permute.xlu0 %1488
      %v1491 = vmul.f32 %v1476, %v1484
      %v1492 = vmul.f32 %v1477, %v1489
      %v1493 = vsel %vm629, %v1491, 0.0
      %v1494 = vsel %vm629, %v1492, 0.0
      %v1495 = vadd.f32 %v1493, %v1494
      %v1496 = vrot.slane %v1495, 4
      %v1497 = vadd.f32 %v1495, %v1496
      %v1498 = vrot.slane %v1497, 2
      %v1499 = vadd.f32 %v1497, %v1498
      %v1500 = vrot.slane %v1499, 1
      %v1501 = vadd.f32 %v1499, %v1500
      %s1502 = scalar_lea.vmem [#allocation5], 5
      %1503 = vst.msk [vmem:[%s1502] sm:$0x1] %vm1322, %v1501
      %s1504 = scalar_lea.vmem [#allocation2], 96
      %v1505 = vld [vmem:[%s1504] sm:$0xff]
      %v1506 = vld [vmem:[%s1504 + $0x8] sm:$0xff]
      %v1507 = vmul.f32 %v1505, %v1476
      %v1508 = vmul.f32 %v1506, %v1477
      %s1509 = scalar_lea.vmem [#allocation3], 96
      %v1510 = vld [vmem:[%s1509] sm:$0xff]
      %v1511 = vld [vmem:[%s1509 + $0x8] sm:$0xff]
      %v1512 = vadd.f32 %v1507, %v1510
      %v1513 = vadd.f32 %v1508, %v1511
      %s1514 = scalar_lea.vmem [#allocation4], 96
      %v1515 = vld [vmem:[%s1514] sm:$0xff]
      %v1516 = vld [vmem:[%s1514 + $0x8] sm:$0xff]
      %1518 = vset.pattern.permute.xlu0 0
      %1519 = vperm.xlu0 %1518, %v1515
      %v1520 = vpop.permute.xlu0 %1519
      %1523 = vset.pattern.permute.xlu0 0
      %1524 = vperm.xlu0 %1523, %v1516
      %v1525 = vpop.permute.xlu0 %1524
      %v1527 = vmul.f32 %v1512, %v1520
      %v1528 = vmul.f32 %v1513, %v1525
      %v1529 = vsel %vm629, %v1527, 0.0
      %v1530 = vsel %vm629, %v1528, 0.0
      %v1531 = vadd.f32 %v1529, %v1530
      %v1532 = vrot.slane %v1531, 4
      %v1533 = vadd.f32 %v1531, %v1532
      %v1534 = vrot.slane %v1533, 2
      %v1535 = vadd.f32 %v1533, %v1534
      %v1536 = vrot.slane %v1535, 1
      %v1537 = vadd.f32 %v1535, %v1536
      %s1538 = scalar_lea.vmem [#allocation5], 6
      %1539 = vst.msk [vmem:[%s1538] sm:$0x1] %vm1322, %v1537
      %s1540 = scalar_lea.vmem [#allocation2], 112
      %v1541 = vld [vmem:[%s1540] sm:$0xff]
      %v1542 = vld [vmem:[%s1540 + $0x8] sm:$0xff]
      %v1543 = vmul.f32 %v1541, %v1512
      %v1544 = vmul.f32 %v1542, %v1513
      %s1545 = scalar_lea.vmem [#allocation3], 112
      %v1546 = vld [vmem:[%s1545] sm:$0xff]
      %v1547 = vld [vmem:[%s1545 + $0x8] sm:$0xff]
      %v1548 = vadd.f32 %v1543, %v1546
      %v1549 = vadd.f32 %v1544, %v1547
      %s1550 = scalar_lea.vmem [#allocation4], 112
      %v1551 = vld [vmem:[%s1550] sm:$0xff]
      %v1552 = vld [vmem:[%s1550 + $0x8] sm:$0xff]
      %1554 = vset.pattern.permute.xlu0 0
      %1555 = vperm.xlu0 %1554, %v1551
      %v1556 = vpop.permute.xlu0 %1555
      %1559 = vset.pattern.permute.xlu0 0
      %1560 = vperm.xlu0 %1559, %v1552
      %v1561 = vpop.permute.xlu0 %1560
      %v1563 = vmul.f32 %v1548, %v1556
      %v1564 = vmul.f32 %v1549, %v1561
      %v1565 = vsel %vm629, %v1563, 0.0
      %v1566 = vsel %vm629, %v1564, 0.0
      %v1567 = vadd.f32 %v1565, %v1566
      %v1568 = vrot.slane %v1567, 4
      %v1569 = vadd.f32 %v1567, %v1568
      %v1570 = vrot.slane %v1569, 2
      %v1571 = vadd.f32 %v1569, %v1570
      %v1572 = vrot.slane %v1571, 1
      %v1573 = vadd.f32 %v1571, %v1572
      %s1574 = scalar_lea.vmem [#allocation5], 7
      %1575 = vst.msk [vmem:[%s1574] sm:$0x1] %vm1322, %v1573
      %1576 = vst.msk [vmem:[#allocation6] sm:$0xff] %vm629, %v1548
      %1577 = vst.msk [vmem:[#allocation6 + $0x8] sm:$0xff] %vm629, %v1549
      %v1578 = vld [vmem:[#allocation5] sm:$0x1]
      %v1579 = vld [vmem:[#allocation5 + $0x1] sm:$0x1]
      %v1580 = vld [vmem:[#allocation5 + $0x2] sm:$0x1]
      %v1581 = vld [vmem:[#allocation5 + $0x3] sm:$0x1]
      %v1582 = vld [vmem:[#allocation5 + $0x4] sm:$0x1]
      %v1583 = vld [vmem:[#allocation5 + $0x5] sm:$0x1]
      %v1584 = vld [vmem:[#allocation5 + $0x6] sm:$0x1]
      %v1585 = vld [vmem:[#allocation5 + $0x7] sm:$0x1]
      %v1586 = vld [vmem:[%s8] sm:$0x1]
      %v1588 = vlaneseq
      %v1589 = vshrl.u32 %v1588, 7
      %v1590 = vsub.s32 0, %v1589
      %v1591 = vrot.slane %v1586, %v1590
      %v1593 = vmul.f32 %v595, %v1591
      %v1595 = vcombine.high %v1593, %v1593
      %v1597 = vunpack.c.l.s4 1966171168
      %v1598 = vunpack.c.0.s8 %v1597
      %v1599 = vlaneseq
      %v1600 = vshrl.u32 %v1599, 7
      %v1601 = vsub.s32 %v1598, %v1600
      %v1602 = vrot.slane %v1593, %v1601
      %v1604 = vunpack.c.l.s4 1966171168
      %v1605 = vunpack.c.0.s8 %v1604
      %v1606 = vlaneseq
      %v1607 = vshrl.u32 %v1606, 7
      %v1608 = vsub.s32 %v1605, %v1607
      %v1609 = vrot.slane %v1595, %v1608
      %v1610 = vcombine.high %v1602, %v1602
      %v1611 = vcombine.high %v1609, %v1609
      %v1613 = vunpack.c.l.s4 1966171168
      %v1614 = vunpack.c.0.s8 %v1613
      %v1615 = vlaneseq
      %v1616 = vshrl.u32 %v1615, 7
      %v1617 = vsub.s32 %v1614, %v1616
      %v1618 = vrot.slane %v1602, %v1617
      %v1620 = vunpack.c.l.s4 1966171168
      %v1621 = vunpack.c.0.s8 %v1620
      %v1622 = vlaneseq
      %v1623 = vshrl.u32 %v1622, 7
      %v1624 = vsub.s32 %v1621, %v1623
      %v1625 = vrot.slane %v1609, %v1624
      %v1627 = vunpack.c.l.s4 1966171168
      %v1628 = vunpack.c.0.s8 %v1627
      %v1629 = vlaneseq
      %v1630 = vshrl.u32 %v1629, 7
      %v1631 = vsub.s32 %v1628, %v1630
      %v1632 = vrot.slane %v1610, %v1631
      %v1634 = vunpack.c.l.s4 1966171168
      %v1635 = vunpack.c.0.s8 %v1634
      %v1636 = vlaneseq
      %v1637 = vshrl.u32 %v1636, 7
      %v1638 = vsub.s32 %v1635, %v1637
      %v1639 = vrot.slane %v1611, %v1638
      %v1640 = vcombine.high %v1618, %v1618
      %v1641 = vcombine.high %v1625, %v1625
      %v1642 = vcombine.high %v1632, %v1632
      %v1643 = vcombine.high %v1639, %v1639
      %v1652 = vadd.f32 %v1578, %v1618
      %v1653 = vadd.f32 %v1579, %v1632
      %v1654 = vadd.f32 %v1580, %v1640
      %v1655 = vadd.f32 %v1581, %v1642
      %v1656 = vadd.f32 %v1582, %v1625
      %v1657 = vadd.f32 %v1583, %v1639
      %v1658 = vadd.f32 %v1584, %v1641
      %v1659 = vadd.f32 %v1585, %v1643
      %v1660 = vxor.u32 %v516, 2147483648
      %v1661 = vmul.f32 %v1660, 1.442695
      %v1662 = vpow.pop %v1661
      %v1663 = vadd.f32 %v1662, 1.0
      %v1664 = vrcp.pop %v1663
      %v1665 = vmul.f32 1.0, %v1664
      %v1666 = vmul.f32 %v516, %v1665
      %v1668 = vcombine.high %v1666, %v1666
      %v1670 = vunpack.c.l.s4 1966171168
      %v1671 = vunpack.c.0.s8 %v1670
      %v1672 = vlaneseq
      %v1673 = vshrl.u32 %v1672, 7
      %v1674 = vsub.s32 %v1671, %v1673
      %v1675 = vrot.slane %v1666, %v1674
      %v1677 = vunpack.c.l.s4 1966171168
      %v1678 = vunpack.c.0.s8 %v1677
      %v1679 = vlaneseq
      %v1680 = vshrl.u32 %v1679, 7
      %v1681 = vsub.s32 %v1678, %v1680
      %v1682 = vrot.slane %v1668, %v1681
      %v1683 = vcombine.high %v1675, %v1675
      %v1684 = vcombine.high %v1682, %v1682
      %v1686 = vunpack.c.l.s4 1966171168
      %v1687 = vunpack.c.0.s8 %v1686
      %v1688 = vlaneseq
      %v1689 = vshrl.u32 %v1688, 7
      %v1690 = vsub.s32 %v1687, %v1689
      %v1691 = vrot.slane %v1675, %v1690
      %v1693 = vunpack.c.l.s4 1966171168
      %v1694 = vunpack.c.0.s8 %v1693
      %v1695 = vlaneseq
      %v1696 = vshrl.u32 %v1695, 7
      %v1697 = vsub.s32 %v1694, %v1696
      %v1698 = vrot.slane %v1682, %v1697
      %v1700 = vunpack.c.l.s4 1966171168
      %v1701 = vunpack.c.0.s8 %v1700
      %v1702 = vlaneseq
      %v1703 = vshrl.u32 %v1702, 7
      %v1704 = vsub.s32 %v1701, %v1703
      %v1705 = vrot.slane %v1683, %v1704
      %v1707 = vunpack.c.l.s4 1966171168
      %v1708 = vunpack.c.0.s8 %v1707
      %v1709 = vlaneseq
      %v1710 = vshrl.u32 %v1709, 7
      %v1711 = vsub.s32 %v1708, %v1710
      %v1712 = vrot.slane %v1684, %v1711
      %v1713 = vcombine.high %v1691, %v1691
      %v1714 = vcombine.high %v1698, %v1698
      %v1715 = vcombine.high %v1705, %v1705
      %v1716 = vcombine.high %v1712, %v1712
      %1717 = vrot.lane.b32.xlu0 %v1691, 64
      %v1718 = vpop.permute.xlu0 %1717
      %1719 = vrot.lane.b32.xlu0 %v1705, 64
      %v1720 = vpop.permute.xlu0 %1719
      %1721 = vrot.lane.b32.xlu0 %v1713, 64
      %v1722 = vpop.permute.xlu0 %1721
      %1723 = vrot.lane.b32.xlu0 %v1715, 64
      %v1724 = vpop.permute.xlu0 %1723
      %1725 = vrot.lane.b32.xlu0 %v1698, 64
      %v1726 = vpop.permute.xlu0 %1725
      %1727 = vrot.lane.b32.xlu0 %v1712, 64
      %v1728 = vpop.permute.xlu0 %1727
      %1729 = vrot.lane.b32.xlu0 %v1714, 64
      %v1730 = vpop.permute.xlu0 %1729
      %1731 = vrot.lane.b32.xlu0 %v1716, 64
      %v1732 = vpop.permute.xlu0 %1731
      %v1741 = vmul.f32 %v1652, %v1718
      %v1742 = vmul.f32 %v1653, %v1720
      %v1743 = vmul.f32 %v1654, %v1722
      %v1744 = vmul.f32 %v1655, %v1724
      %v1745 = vmul.f32 %v1656, %v1726
      %v1746 = vmul.f32 %v1657, %v1728
      %v1747 = vmul.f32 %v1658, %v1730
      %v1748 = vmul.f32 %v1659, %v1732
      %v1749 = vpack.c.bf16 %v1741, %v1741
      %v1750 = vpack.c.bf16 %v1742, %v1742
      %v1751 = vpack.c.bf16 %v1743, %v1743
      %v1752 = vpack.c.bf16 %v1744, %v1744
      %v1753 = vpack.c.bf16 %v1745, %v1745
      %v1754 = vpack.c.bf16 %v1746, %v1746
      %v1755 = vpack.c.bf16 %v1747, %v1747
      %v1756 = vpack.c.bf16 %v1748, %v1748
      %v1757 = vld [vmem:[%s9] sm:$0xf]
      %v1758 = vld [vmem:[%s9 + $0x4] sm:$0xf]
      %v1759 = vld [vmem:[%s9 + $0x8] sm:$0xf]
      %v1760 = vld [vmem:[%s9 + $0xc] sm:$0xf]
      %v1761 = vld [vmem:[%s9 + $0x10] sm:$0xf]
      %v1762 = vld [vmem:[%s9 + $0x14] sm:$0xf]
      %v1763 = vld [vmem:[%s9 + $0x18] sm:$0xf]
      %v1764 = vld [vmem:[%s9 + $0x1c] sm:$0xf]
      %v1773 = vunpack.c.l.b16 %v1749
      %v1774 = vunpack.c.l.b16 %v1750
      %v1775 = vunpack.c.l.b16 %v1751
      %v1776 = vunpack.c.l.b16 %v1752
      %v1777 = vunpack.c.l.b16 %v1753
      %v1778 = vunpack.c.l.b16 %v1754
      %v1779 = vunpack.c.l.b16 %v1755
      %v1780 = vunpack.c.l.b16 %v1756
      %v1781 = vrot.slane %v1774, 7
      %vm1782 = vcmask 1041409
      %v1783 = vsel %vm1782, %v1781, %v1773
      %v1784 = vrot.slane %v1775, 6
      %vm1785 = vcmask 1042434
      %v1786 = vsel %vm1785, %v1784, %v1783
      %v1787 = vrot.slane %v1776, 5
      %vm1788 = vcmask 1043459
      %v1789 = vsel %vm1788, %v1787, %v1786
      %v1790 = vrot.slane %v1777, 4
      %vm1791 = vcmask 1044484
      %v1792 = vsel %vm1791, %v1790, %v1789
      %v1793 = vrot.slane %v1778, 3
      %vm1794 = vcmask 1045509
      %v1795 = vsel %vm1794, %v1793, %v1792
      %v1796 = vrot.slane %v1779, 2
      %vm1797 = vcmask 1046534
      %v1798 = vsel %vm1797, %v1796, %v1795
      %v1799 = vrot.slane %v1780, 1
      %vm1800 = vcmask 1047559
      %v1801 = vsel %vm1800, %v1799, %v1798
      %v1802 = vpack.c.b16 %v1801, %v1801
      %v1811 = vunpack.c.l.b16 %v1757
      %v1812 = vunpack.c.l.b16 %v1758
      %v1813 = vunpack.c.l.b16 %v1759
      %v1814 = vunpack.c.l.b16 %v1760
      %v1815 = vunpack.c.l.b16 %v1761
      %v1816 = vunpack.c.l.b16 %v1762
      %v1817 = vunpack.c.l.b16 %v1763
      %v1818 = vunpack.c.l.b16 %v1764
      %v1819 = vpack.c.b16 %v1812, %v1811
      %v1820 = vpack.c.b16 %v1814, %v1813
      %v1821 = vpack.c.b16 %v1816, %v1815
      %v1822 = vpack.c.b16 %v1818, %v1817
      %v1828 = vsel %vm629, %v1802, 0
      %1830 = vmatprep.subr.bf16.mxu0 0
      %1831 = vmatpush1.bf16.msra.mxu0 %v1819
      %1832 = vmatprep.subr.bf16.mxu0 0
      %1833 = vmatpush1.bf16.msra.mxu0 %v1820
      %1834 = vmatprep.subr.bf16.mxu0 0
      %1835 = vmatpush1.bf16.msra.mxu0 %v1821
      %1836 = vmatprep.subr.bf16.mxu0 0
      %1837 = vmatpush1.bf16.msra.mxu0 %v1822
      %1838 = vmatprep.subr.bf16.mxu0 0
      %1839 = vmatpush1.bf16.msra.mxu0 0
      %1840 = vmatprep.subr.bf16.mxu0 0
      %1841 = vmatpush1.bf16.msra.mxu0 0
      %1842 = vmatprep.subr.bf16.mxu0 0
      %1843 = vmatpush1.bf16.msra.mxu0 0
      %1844 = vmatprep.subr.bf16.mxu0 0
      %1845 = vmatpush1.bf16.msra.mxu0 0
      %1846 = vmatprep.subr.bf16.mxu0 0
      %1847 = vmatpush1.bf16.msra.mxu0 0
      %1848 = vmatprep.subr.bf16.mxu0 0
      %1849 = vmatpush1.bf16.msra.mxu0 0
      %1850 = vmatprep.subr.bf16.mxu0 0
      %1851 = vmatpush1.bf16.msra.mxu0 0
      %1852 = vmatprep.subr.bf16.mxu0 0
      %1853 = vmatpush1.bf16.msra.mxu0 0
      %1854 = vmatprep.subr.bf16.mxu0 0
      %1855 = vmatpush1.bf16.msra.mxu0 0
      %1856 = vmatprep.subr.bf16.mxu0 0
      %1857 = vmatpush1.bf16.msra.mxu0 0
      %1858 = vmatprep.subr.bf16.mxu0 0
      %1859 = vmatpush1.bf16.msra.mxu0 0
      %1860 = vmatprep.subr.bf16.mxu0 0
      %1861 = vmatpush1.bf16.msra.mxu0 0
      %1862 = vmatprep.mubr.bf16.mxu0 0
      %1863 = vmatmul.mubr.bf16.gmra.mrb[0].mxu0 %v1828
      %v1864 = vpop.f32.mrb[0].mxu0
      %v1865 = vadd.f32 0.0, %v1864
      %v1866 = vpop.f32.mrb[0].mxu0
      %v1867 = vpop.f32.mrb[0].mxu0
      %v1868 = vpop.f32.mrb[0].mxu0
      %1869 = vdwg.mxu0
      %1870 = vst.msk [vmem:[%s424] sm:$0xff] %vm444, %v1865
      %1871 = vst.msk [vmem:[%s431] sm:$0xff] %vm444, %v433
      %p1872 = scmp.lt.s32.totalorder %s27, 1
      %s1873 = scalar_select %p1872, %s27, 1
      %p1874 = scmp.lt.s32.totalorder %s28, 0
      %s1875 = scalar_select %p1874, %s28, 0
      %s1876 = sadd.s32 %s1875, %s1873
      %s1877 = smul.addr %s1876, 8
      %s1878 = scalar_lea.vmem %s10, %s1877
      %p1879 = scmp.lt.s32.totalorder %s27, 1
      %s1880 = scalar_select %p1879, %s27, 1
      %p1881 = scmp.lt.s32.totalorder %s28, 0
      %s1882 = scalar_select %p1881, %s28, 0
      %s1883 = sadd.s32 %s1882, %s1880
      %s1884 = smul.addr %s1883, 8
      %s1885 = scalar_lea.vmem %s11, %s1884
      // Predicated region
      $region65: #{_lambda_.5} parent=59 // pred_check
        %p1886 = pneg %p272
      $region66: #{_lambda_.5} parent=59 // pred_check_branch
        %1888 = sbr.rel (%p1886) target = $region68
      $region67: #{_lambda_.5} parent=59 // pred_region
        _
      $region68: #{_lambda_.5} parent=59 // pred_fallthru
        _
      // Predicated region
      $region69: #{_lambda_.5} parent=59 // pred_check
        %p1889 = pneg %p300
      $region70: #{_lambda_.5} parent=59 // pred_check_branch
        %1891 = sbr.rel (%p1889) target = $region72
      $region71: #{_lambda_.5} parent=59 // pred_region
        _
      $region72: #{_lambda_.5} parent=59 // pred_fallthru
        _
    $region60: #{_lambda_.5} parent=5 // pred_fallthru
      _
    %p1892 = scmp.le.s32.totalorder 2, %s18
    // Predicated region
    $region73: #{_lambda_.5} parent=5 // pred_check
      %p1893 = pneg %p1892
    $region74: #{_lambda_.5} parent=5 // pred_check_branch
      %1895 = sbr.rel (%p1893) target = $region76
    $region75: #{_lambda_.5} parent=5 // pred_region
      %s1896 = ssub.s32 %s18, 2
      // Predicated region
      $region77: #{_lambda_.5} parent=75 // pred_check
        %p1897 = pneg %p278
      $region78: #{_lambda_.5} parent=75 // pred_check_branch
        %1899 = sbr.rel (%p1897) target = $region80
      $region79: #{_lambda_.5} parent=75 // pred_region
        %p1900 = scmp.lt.s32.totalorder %s29, 1
        %s1901 = scalar_select %p1900, %s29, 1
        %p1902 = scmp.lt.s32.totalorder %s30, 0
        %s1903 = scalar_select %p1902, %s30, 0
        %s1904 = sadd.s32 %s1903, %s1901
        %s1905 = smul.addr %s1904, 8
        %s1906 = scalar_lea.vmem %s10, %s1905
      $region80: #{_lambda_.5} parent=75 // pred_fallthru
        _
      // Predicated region
      $region81: #{_lambda_.5} parent=75 // pred_check
        %p1907 = pneg %p306
      $region82: #{_lambda_.5} parent=75 // pred_check_branch
        %1909 = sbr.rel (%p1907) target = $region84
      $region83: #{_lambda_.5} parent=75 // pred_region
        %p1910 = scmp.lt.s32.totalorder %s29, 1
        %s1911 = scalar_select %p1910, %s29, 1
        %p1912 = scmp.lt.s32.totalorder %s30, 0
        %s1913 = scalar_select %p1912, %s30, 0
        %s1914 = sadd.s32 %s1913, %s1911
        %s1915 = smul.addr %s1914, 8
        %s1916 = scalar_lea.vmem %s11, %s1915
      $region84: #{_lambda_.5} parent=75 // pred_fallthru
        _
    $region76: #{_lambda_.5} parent=5 // pred_fallthru
      _
  $region6: #{_lambda_.5} parent=0 // loop_footer
    %s22 = sadd.s32 1, %s18
  $region7: #{_lambda_.5} parent=0 // loop_footer_branch
    %17 = sbr.rel target = $region3
  $region8: #{_lambda_.5} parent=0 // loop_exit
    _

</llo_original>
